<compile_context>
chip_gen: v7x
topology: tpu7x:2x2x1
jax: 0.10.0
libtpu: 0.0.40
codegen_flags: <defaults>
</compile_context>

<pallas_src>
import functools

import jax
import jax.numpy as jnp
from jax.experimental import pallas as pl
from jax.experimental.pallas import tpu as pltpu

LANE = 128


def _round_up(x, m):
    return (x + m - 1) // m * m


def _vmem_limit_bytes():
    cap = 64 * 1024 * 1024
    try:
        info = pltpu.get_tpu_info()
        cap = int(getattr(info, "vmem_capacity_bytes", cap))
    except Exception:
        pass
    # Leave headroom for Mosaic internal scratch; 96 MiB on 128 MiB parts,
    # ~48 MiB on v7x's 64 MiB.
    return min(cap * 3 // 4, 96 * 1024 * 1024)


VMEM_LIMIT = _vmem_limit_bytes()


def _pick_tm(M, Kp, OCp):
    """M-tile size: big (<=1024), >=2 tiles when possible (v7x megacore),
    and VMEM-footprint aware (double-buffered patches + resident weight)."""
    m8 = _round_up(M, 8)
    if m8 <= 8:
        return 8
    tm = min(1024, m8)
    if _round_up(M, tm) // tm < 2:          # force >=2 megacore-parallel tiles
        tm = _round_up((m8 + 1) // 2, 8)

    def footprint(t):
        patches = 2 * t * Kp * 2            # double-buffered bf16 input tiles
        weight = Kp * OCp * 2               # resident bf16 weight
        out = 2 * t * OCp * 4               # double-buffered output (f32 worst case)
        return patches + weight + out + (1 << 16)

    while tm > 8 and footprint(tm) > VMEM_LIMIT // 2:
        tm = max(8, _round_up(tm // 2, 8))
    return tm


# ---------------------------------------------------------------------------
# Pallas kernels (grid over M tiles only; weight is VMEM-resident)
# ---------------------------------------------------------------------------
def _matmul_bias_act_kernel(activation, p_ref, w_ref, b_ref, o_ref):
    """Non-BN layers: full-K matmul + bias + activation for one M tile."""
    y = jnp.dot(p_ref[...], w_ref[...], preferred_element_type=jnp.float32)
    y = y + b_ref[...]
    if activation == "leaky":
        y = jnp.where(y > 0, y, 0.2 * y)
    elif activation == "sigmoid":
        y = 1.0 / (1.0 + jnp.exp(-y))
    o_ref[...] = y.astype(o_ref.dtype)


def _matmul_stats_kernel(p_ref, w_ref, y_ref, stats_ref):
    """BN pass 1: full-K matmul; emit bf16 activation + per-tile channel
    sum / sum-of-squares taken from the f32 MXU result."""
    y = jnp.dot(p_ref[...], w_ref[...], preferred_element_type=jnp.float32)
    y_ref[...] = y.astype(y_ref.dtype)
    stats_ref[...] = jnp.zeros_like(stats_ref)
    stats_ref[0, 0:1, :] = jnp.sum(y, axis=0, keepdims=True)
    stats_ref[0, 1:2, :] = jnp.sum(y * y, axis=0, keepdims=True)


# ---------------------------------------------------------------------------
# Plain-XLA glue: NHWC im2col on real channels (bf16)
# ---------------------------------------------------------------------------
def _im2col_nhwc(x, k, stride, pad):
    N, H, W, C = x.shape
    xp = jnp.pad(x, ((0, 0), (pad, pad), (pad, pad), (0, 0)))
    OH = (H + 2 * pad - k) // stride + 1
    OW = (W + 2 * pad - k) // stride + 1
    idx_h = (jnp.arange(OH) * stride)[:, None] + jnp.arange(k)[None, :]   # (OH, k)
    idx_w = (jnp.arange(OW) * stride)[:, None] + jnp.arange(k)[None, :]   # (OW, k)
    # (N, OH, k, OW, k, C) -> (N, OH, OW, k, k, C)
    patches = xp[:, idx_h[:, :, None, None], idx_w[None, None, :, :], :]
    patches = patches.transpose(0, 1, 3, 2, 4, 5)
    return patches.reshape(N * OH * OW, k * k * C), OH, OW


# ---------------------------------------------------------------------------
# One conv layer (real-channel NHWC in / out)
# ---------------------------------------------------------------------------
def _conv_layer(x_nhwc, params, *, stride, pad, use_bn, activation):
    w = params["w"]                              # (OC, C_real, k, k) f32
    OC, C_real, k, _ = w.shape
    N = x_nhwc.shape[0]
    assert x_nhwc.shape[-1] == C_real
    OCp = _round_up(OC, LANE)

    # Cast BEFORE im2col so the gather/pad runs in bf16.
    x_bf16 = x_nhwc.astype(jnp.bfloat16)
    patches, OH, OW = _im2col_nhwc(x_bf16, k, stride, pad)   # (M, k*k*C_real)
    M, Kr = patches.shape
    Kp = _round_up(Kr, LANE)

    tm = _pick_tm(M, Kp, OCp)
    Mp = _round_up(M, tm)
    n_m = Mp // tm

    patches = jnp.pad(patches, ((0, Mp - M), (0, Kp - Kr)))

    # (OC, C_real, k, k) -> (k, k, C_real, OC) -> (Kr, OC) -> pad (Kp, OCp), bf16
    w_mat = jnp.transpose(w, (2, 3, 1, 0)).reshape(Kr, OC)
    w_mat = jnp.pad(w_mat, ((0, Kp - Kr), (0, OCp - OC))).astype(jnp.bfloat16)

    cparams = pltpu.CompilerParams(
        dimension_semantics=("parallel",),
        vmem_limit_bytes=VMEM_LIMIT,
    )

    if not use_bn:
        b_p = jnp.pad(params["b"], (0, OCp - OC)).reshape(1, OCp).astype(jnp.float32)
        out_dtype = jnp.float32 if activation == "sigmoid" else jnp.bfloat16
        y = pl.pallas_call(
            functools.partial(_matmul_bias_act_kernel, activation),
            grid=(n_m,),
            in_specs=[
                pl.BlockSpec((tm, Kp), lambda i: (i, 0)),
                pl.BlockSpec((Kp, OCp), lambda i: (0, 0)),   # weight: resident
                pl.BlockSpec((1, OCp), lambda i: (0, 0)),
            ],
            out_specs=pl.BlockSpec((tm, OCp), lambda i: (i, 0)),
            out_shape=jax.ShapeDtypeStruct((Mp, OCp), out_dtype),
            compiler_params=cparams,
        )(patches, w_mat, b_p)
        out = y[:M, :OC]
    else:
        # Pass 1: matmul + per-M-tile channel sum / sum-of-squares.
        # (Conv bias omitted: training-mode BN's mean subtraction cancels it.)
        y, partial = pl.pallas_call(
            _matmul_stats_kernel,
            grid=(n_m,),
            in_specs=[
                pl.BlockSpec((tm, Kp), lambda i: (i, 0)),
                pl.BlockSpec((Kp, OCp), lambda i: (0, 0)),   # weight: resident
            ],
            out_specs=(
                pl.BlockSpec((tm, OCp), lambda i: (i, 0)),
                pl.BlockSpec((1, 8, OCp), lambda i: (i, 0, 0)),
            ),
            out_shape=(
                jax.ShapeDtypeStruct((Mp, OCp), jnp.bfloat16),
                jax.ShapeDtypeStruct((n_m, 8, OCp), jnp.float32),
            ),
            compiler_params=cparams,
        )(patches, w_mat)

        # Finalize full-batch (biased, training-mode) BN stats.  Padded rows
        # are zero so they contribute nothing; divide by the true M.
        ch_sum = jnp.sum(partial[:, 0, :OC], axis=0)
        ch_sq = jnp.sum(partial[:, 1, :OC], axis=0)
        mean = ch_sum / M
        # NOTE: E[y^2]-E[y]^2 is cancellation-prone for large-mean activations;
        # fine for the 0.02-scaled DCGAN init.
        var = jnp.maximum(ch_sq / M - mean * mean, 0.0)
        scale = params["gamma"] * jax.lax.rsqrt(var + 1e-5)
        shift = params["beta"] - mean * scale

        # "Pass 2" (affine + LeakyReLU) in plain XLA: fuses with the next
        # layer's im2col gather instead of a dedicated Pallas round trip.
        yb = y[:M, :OC].astype(jnp.float32) * scale + shift
        out = jnp.where(yb > 0, yb, 0.2 * yb).astype(jnp.bfloat16)

    return out.reshape(N, OH, OW, OC)


# ---------------------------------------------------------------------------
# Discriminator: parameter init + forward (NCHW at the API boundary)
# ---------------------------------------------------------------------------
def init_discriminator_params(key, n_channels, feature_dim):
    fd = feature_dim
    layer_dims = [
        (n_channels, fd),
        (fd, fd * 2),
        (fd * 2, fd * 4),
        (fd * 4, fd * 8),
        (fd * 8, 1),
    ]
    params = []
    for cin, cout in layer_dims:
        key, kw, kb, kg = jax.random.split(key, 4)
        # Spec's initialize_weights: normal(0.0, 0.02) for Conv2d AND
        # BatchNorm2d weights; biases keep PyTorch defaults.
        w = 0.02 * jax.random.normal(kw, (cout, cin, 4, 4), jnp.float32)
        bound = float(cin * 16) ** -0.5
        b = jax.random.uniform(kb, (cout,), jnp.float32, -bound, bound)
        gamma = 0.02 * jax.random.normal(kg, (cout,), jnp.float32)
        beta = jnp.zeros((cout,), jnp.float32)
        params.append({"w": w, "b": b, "gamma": gamma, "beta": beta})
    return params


def discriminator_forward(params, x_nchw):
    # TODO(synk): BatchNorm running_mean/var are not tracked (training-mode
    # batch statistics only, matching the PyTorch module's training forward).
    x = jnp.transpose(x_nchw, (0, 2, 3, 1))  # NCHW -> NHWC, real channels
    h = _conv_layer(x, params[0], stride=2, pad=1, use_bn=False, activation="leaky")
    h = _conv_layer(h, params[1], stride=2, pad=1, use_bn=True, activation="leaky")
    h = _conv_layer(h, params[2], stride=2, pad=1, use_bn=True, activation="leaky")
    h = _conv_layer(h, params[3], stride=2, pad=1, use_bn=True, activation="leaky")
    out = _conv_layer(h, params[4], stride=2, pad=0, use_bn=False, activation="sigmoid")
    # (N, 1, 1, 1) NHWC -> NCHW
    return jnp.transpose(out, (0, 3, 1, 2))


if __name__ == "__main__":
    # 64x64 input is the minimal spatial size that yields a 1x1 output after
    # the final stride-2 / no-pad conv of the DCGAN discriminator.
    batch, n_channels, feature_dim, spatial = 2, 3, 8, 64

    key = jax.random.PRNGKey(0)
    key, kx = jax.random.split(key)
    x = jax.random.normal(kx, (batch, n_channels, spatial, spatial), jnp.float32)

    params = init_discriminator_params(key, n_channels, feature_dim)

    fwd = jax.jit(functools.partial(discriminator_forward, params))
    out = jax.block_until_ready(fwd(x))

    assert out.shape == (batch, 1, 1, 1), out.shape
    assert bool(jnp.all(jnp.isfinite(out)))
    assert bool(jnp.all((out >= 0.0) & (out <= 1.0)))  # sigmoid output range
    print("KERNEL_OK")
</pallas_src>

<mosaic_0001>
module attributes {stable_mosaic.version = 11 : i64} {
  func.func @_matmul_bias_act_kernel(%arg0: i32, %arg1: memref<1024x128xbf16, #tpu.memory_space<vmem>>, %arg2: memref<128x128xbf16, #tpu.memory_space<vmem>>, %arg3: memref<1x128xf32, #tpu.memory_space<vmem>>, %arg4: memref<1024x128xbf16, #tpu.memory_space<vmem>>) attributes {dimension_semantics = [#tpu.dimension_semantics<parallel>], iteration_bounds = array<i64: 2>, scalar_prefetch = 0 : i64, scratch_operands = 0 : i64, tpu.core_type = #tpu.core_type<tc>, window_params = [{transform_indices = @transform_0, window_bounds = array<i64: 1024, 128>}, {pipeline_mode = #tpu.pipeline_mode<synchronous>, transform_indices = @transform_1, window_bounds = array<i64: 128, 128>}, {pipeline_mode = #tpu.pipeline_mode<synchronous>, transform_indices = @transform_2, window_bounds = array<i64: 1, 128>}, {transform_indices = @transform_3, window_bounds = array<i64: 1024, 128>}]} {
    %c0 = arith.constant 0 : index
    %c0_0 = arith.constant 0 : index
    %0 = vector.load %arg1[%c0, %c0_0] : memref<1024x128xbf16, #tpu.memory_space<vmem>>, vector<1024x128xbf16>
    %c0_1 = arith.constant 0 : index
    %c0_2 = arith.constant 0 : index
    %1 = vector.load %arg2[%c0_1, %c0_2] : memref<128x128xbf16, #tpu.memory_space<vmem>>, vector<128x128xbf16>
    %cst = arith.constant dense<0.000000e+00> : vector<1024x128xf32>
    %2 = tpu.matmul %0, %1, %cst {dimension_numbers = #tpu.dot_dimension_numbers<[1], [0], [0], [1], [0, 0, 1, 1], [], []>} : vector<1024x128xbf16>, vector<128x128xbf16>, vector<1024x128xf32> -> vector<1024x128xf32>
    %c0_3 = arith.constant 0 : index
    %c0_4 = arith.constant 0 : index
    %3 = vector.load %arg3[%c0_3, %c0_4] : memref<1x128xf32, #tpu.memory_space<vmem>>, vector<1x128xf32>
    %4 = vector.broadcast %3 : vector<1x128xf32> to vector<1024x128xf32>
    %5 = arith.addf %2, %4 : vector<1024x128xf32>
    %cst_5 = arith.constant 0.000000e+00 : f32
    %6 = vector.broadcast %cst_5 : f32 to vector<1024x128xf32>
    %7 = arith.cmpf ogt, %5, %6 : vector<1024x128xf32>
    %cst_6 = arith.constant 2.000000e-01 : f32
    %8 = vector.broadcast %cst_6 : f32 to vector<1024x128xf32>
    %9 = arith.mulf %8, %5 : vector<1024x128xf32>
    %10 = arith.select %7, %5, %9 : vector<1024x128xi1>, vector<1024x128xf32>
    %11 = arith.truncf %10 : vector<1024x128xf32> to vector<1024x128xbf16>
    %c0_7 = arith.constant 0 : index
    %c0_8 = arith.constant 0 : index
    %12 = vector.load %arg4[%c0_7, %c0_8] : memref<1024x128xbf16, #tpu.memory_space<vmem>>, vector<1024x128xbf16>
    tpu.vector_store %arg4[%c0_7, %c0_8], %11 {strides = array<i32>} : memref<1024x128xbf16, #tpu.memory_space<vmem>>, vector<1024x128xbf16>,
    return
  }
  func.func @transform_0(%arg0: i32) -> (i32, i32) {
    %c0_i32 = arith.constant 0 : i32
    %c0_i32_0 = arith.constant 0 : i32
    return %arg0, %c0_i32 : i32, i32
  }
  func.func @transform_1(%arg0: i32) -> (i32, i32) {
    %c0_i32 = arith.constant 0 : i32
    %c0_i32_0 = arith.constant 0 : i32
    %c0_i32_1 = arith.constant 0 : i32
    return %c0_i32, %c0_i32_0 : i32, i32
  }
  func.func @transform_2(%arg0: i32) -> (i32, i32) {
    %c0_i32 = arith.constant 0 : i32
    %c0_i32_0 = arith.constant 0 : i32
    %c0_i32_1 = arith.constant 0 : i32
    return %c0_i32, %c0_i32_0 : i32, i32
  }
  func.func @transform_3(%arg0: i32) -> (i32, i32) {
    %c0_i32 = arith.constant 0 : i32
    %c0_i32_0 = arith.constant 0 : i32
    return %arg0, %c0_i32 : i32, i32
  }
}

module attributes {stable_mosaic.version = 11 : i64} {
  func.func @_matmul_stats_kernel(%arg0: i32, %arg1: memref<256x128xbf16, #tpu.memory_space<vmem>>, %arg2: memref<128x128xbf16, #tpu.memory_space<vmem>>, %arg3: memref<256x128xbf16, #tpu.memory_space<vmem>>, %arg4: memref<1x8x128xf32, #tpu.memory_space<vmem>>) attributes {dimension_semantics = [#tpu.dimension_semantics<parallel>], iteration_bounds = array<i64: 2>, scalar_prefetch = 0 : i64, scratch_operands = 0 : i64, tpu.core_type = #tpu.core_type<tc>, window_params = [{transform_indices = @transform_0, window_bounds = array<i64: 256, 128>}, {pipeline_mode = #tpu.pipeline_mode<synchronous>, transform_indices = @transform_1, window_bounds = array<i64: 128, 128>}, {transform_indices = @transform_2, window_bounds = array<i64: 256, 128>}, {transform_indices = @transform_3, window_bounds = array<i64: 1, 8, 128>}]} {
    %c0 = arith.constant 0 : index
    %c0_0 = arith.constant 0 : index
    %0 = vector.load %arg1[%c0, %c0_0] : memref<256x128xbf16, #tpu.memory_space<vmem>>, vector<256x128xbf16>
    %c0_1 = arith.constant 0 : index
    %c0_2 = arith.constant 0 : index
    %1 = vector.load %arg2[%c0_1, %c0_2] : memref<128x128xbf16, #tpu.memory_space<vmem>>, vector<128x128xbf16>
    %cst = arith.constant dense<0.000000e+00> : vector<256x128xf32>
    %2 = tpu.matmul %0, %1, %cst {dimension_numbers = #tpu.dot_dimension_numbers<[1], [0], [0], [1], [0, 0, 1, 1], [], []>} : vector<256x128xbf16>, vector<128x128xbf16>, vector<256x128xf32> -> vector<256x128xf32>
    %3 = arith.truncf %2 : vector<256x128xf32> to vector<256x128xbf16>
    %c0_3 = arith.constant 0 : index
    %c0_4 = arith.constant 0 : index
    %4 = vector.load %arg3[%c0_3, %c0_4] : memref<256x128xbf16, #tpu.memory_space<vmem>>, vector<256x128xbf16>
    tpu.vector_store %arg3[%c0_3, %c0_4], %3 {strides = array<i32>} : memref<256x128xbf16, #tpu.memory_space<vmem>>, vector<256x128xbf16>,
    %cst_5 = arith.constant 0.000000e+00 : f32
    %5 = vector.broadcast %cst_5 : f32 to vector<1x8x128xf32>
    %c0_6 = arith.constant 0 : index
    %c0_7 = arith.constant 0 : index
    %c0_8 = arith.constant 0 : index
    %6 = vector.load %arg4[%c0_6, %c0_7, %c0_8] : memref<1x8x128xf32, #tpu.memory_space<vmem>>, vector<1x8x128xf32>
    tpu.vector_store %arg4[%c0_6, %c0_7, %c0_8], %5 {strides = array<i32>} : memref<1x8x128xf32, #tpu.memory_space<vmem>>, vector<1x8x128xf32>,
    %cst_9 = arith.constant dense<0.000000e+00> : vector<128xf32>
    %7 = vector.multi_reduction <add>, %2, %cst_9 [0] : vector<256x128xf32> to vector<128xf32>
    %8 = vector.shape_cast %7 : vector<128xf32> to vector<1x128xf32>
    %c0_10 = arith.constant 0 : index
    %c0_11 = arith.constant 0 : index
    %c0_12 = arith.constant 0 : index
    %9 = vector.load %arg4[%c0_10, %c0_11, %c0_12] : memref<1x8x128xf32, #tpu.memory_space<vmem>>, vector<1x1x128xf32>
    %10 = vector.shape_cast %9 : vector<1x1x128xf32> to vector<1x128xf32>
    %11 = vector.shape_cast %8 : vector<1x128xf32> to vector<1x1x128xf32>
    tpu.vector_store %arg4[%c0_10, %c0_11, %c0_12], %11 {strides = array<i32>} : memref<1x8x128xf32, #tpu.memory_space<vmem>>, vector<1x1x128xf32>,
    %12 = arith.mulf %2, %2 : vector<256x128xf32>
    %cst_13 = arith.constant dense<0.000000e+00> : vector<128xf32>
    %13 = vector.multi_reduction <add>, %12, %cst_13 [0] : vector<256x128xf32> to vector<128xf32>
    %14 = vector.shape_cast %13 : vector<128xf32> to vector<1x128xf32>
    %c0_14 = arith.constant 0 : index
    %c1 = arith.constant 1 : index
    %c0_15 = arith.constant 0 : index
    %15 = vector.load %arg4[%c0_14, %c1, %c0_15] : memref<1x8x128xf32, #tpu.memory_space<vmem>>, vector<1x1x128xf32>
    %16 = vector.shape_cast %15 : vector<1x1x128xf32> to vector<1x128xf32>
    %17 = vector.shape_cast %14 : vector<1x128xf32> to vector<1x1x128xf32>
    tpu.vector_store %arg4[%c0_14, %c1, %c0_15], %17 {strides = array<i32>} : memref<1x8x128xf32, #tpu.memory_space<vmem>>, vector<1x1x128xf32>,
    return
  }
  func.func @transform_0(%arg0: i32) -> (i32, i32) {
    %c0_i32 = arith.constant 0 : i32
    %c0_i32_0 = arith.constant 0 : i32
    return %arg0, %c0_i32 : i32, i32
  }
  func.func @transform_1(%arg0: i32) -> (i32, i32) {
    %c0_i32 = arith.constant 0 : i32
    %c0_i32_0 = arith.constant 0 : i32
    %c0_i32_1 = arith.constant 0 : i32
    return %c0_i32, %c0_i32_0 : i32, i32
  }
  func.func @transform_2(%arg0: i32) -> (i32, i32) {
    %c0_i32 = arith.constant 0 : i32
    %c0_i32_0 = arith.constant 0 : i32
    return %arg0, %c0_i32 : i32, i32
  }
  func.func @transform_3(%arg0: i32) -> (i32, i32, i32) {
    %c0_i32 = arith.constant 0 : i32
    %c0_i32_0 = arith.constant 0 : i32
    %c0_i32_1 = arith.constant 0 : i32
    return %arg0, %c0_i32, %c0_i32_0 : i32, i32, i32
  }
}

module attributes {stable_mosaic.version = 11 : i64} {
  func.func @_matmul_stats_kernel(%arg0: i32, %arg1: memref<64x256xbf16, #tpu.memory_space<vmem>>, %arg2: memref<256x128xbf16, #tpu.memory_space<vmem>>, %arg3: memref<64x128xbf16, #tpu.memory_space<vmem>>, %arg4: memref<1x8x128xf32, #tpu.memory_space<vmem>>) attributes {dimension_semantics = [#tpu.dimension_semantics<parallel>], iteration_bounds = array<i64: 2>, scalar_prefetch = 0 : i64, scratch_operands = 0 : i64, tpu.core_type = #tpu.core_type<tc>, window_params = [{transform_indices = @transform_0, window_bounds = array<i64: 64, 256>}, {pipeline_mode = #tpu.pipeline_mode<synchronous>, transform_indices = @transform_1, window_bounds = array<i64: 256, 128>}, {transform_indices = @transform_2, window_bounds = array<i64: 64, 128>}, {transform_indices = @transform_3, window_bounds = array<i64: 1, 8, 128>}]} {
    %c0 = arith.constant 0 : index
    %c0_0 = arith.constant 0 : index
    %0 = vector.load %arg1[%c0, %c0_0] : memref<64x256xbf16, #tpu.memory_space<vmem>>, vector<64x256xbf16>
    %c0_1 = arith.constant 0 : index
    %c0_2 = arith.constant 0 : index
    %1 = vector.load %arg2[%c0_1, %c0_2] : memref<256x128xbf16, #tpu.memory_space<vmem>>, vector<256x128xbf16>
    %cst = arith.constant dense<0.000000e+00> : vector<64x128xf32>
    %2 = tpu.matmul %0, %1, %cst {dimension_numbers = #tpu.dot_dimension_numbers<[1], [0], [0], [1], [0, 0, 1, 1], [], []>} : vector<64x256xbf16>, vector<256x128xbf16>, vector<64x128xf32> -> vector<64x128xf32>
    %3 = arith.truncf %2 : vector<64x128xf32> to vector<64x128xbf16>
    %c0_3 = arith.constant 0 : index
    %c0_4 = arith.constant 0 : index
    %4 = vector.load %arg3[%c0_3, %c0_4] : memref<64x128xbf16, #tpu.memory_space<vmem>>, vector<64x128xbf16>
    tpu.vector_store %arg3[%c0_3, %c0_4], %3 {strides = array<i32>} : memref<64x128xbf16, #tpu.memory_space<vmem>>, vector<64x128xbf16>,
    %cst_5 = arith.constant 0.000000e+00 : f32
    %5 = vector.broadcast %cst_5 : f32 to vector<1x8x128xf32>
    %c0_6 = arith.constant 0 : index
    %c0_7 = arith.constant 0 : index
    %c0_8 = arith.constant 0 : index
    %6 = vector.load %arg4[%c0_6, %c0_7, %c0_8] : memref<1x8x128xf32, #tpu.memory_space<vmem>>, vector<1x8x128xf32>
    tpu.vector_store %arg4[%c0_6, %c0_7, %c0_8], %5 {strides = array<i32>} : memref<1x8x128xf32, #tpu.memory_space<vmem>>, vector<1x8x128xf32>,
    %cst_9 = arith.constant dense<0.000000e+00> : vector<128xf32>
    %7 = vector.multi_reduction <add>, %2, %cst_9 [0] : vector<64x128xf32> to vector<128xf32>
    %8 = vector.shape_cast %7 : vector<128xf32> to vector<1x128xf32>
    %c0_10 = arith.constant 0 : index
    %c0_11 = arith.constant 0 : index
    %c0_12 = arith.constant 0 : index
    %9 = vector.load %arg4[%c0_10, %c0_11, %c0_12] : memref<1x8x128xf32, #tpu.memory_space<vmem>>, vector<1x1x128xf32>
    %10 = vector.shape_cast %9 : vector<1x1x128xf32> to vector<1x128xf32>
    %11 = vector.shape_cast %8 : vector<1x128xf32> to vector<1x1x128xf32>
    tpu.vector_store %arg4[%c0_10, %c0_11, %c0_12], %11 {strides = array<i32>} : memref<1x8x128xf32, #tpu.memory_space<vmem>>, vector<1x1x128xf32>,
    %12 = arith.mulf %2, %2 : vector<64x128xf32>
    %cst_13 = arith.constant dense<0.000000e+00> : vector<128xf32>
    %13 = vector.multi_reduction <add>, %12, %cst_13 [0] : vector<64x128xf32> to vector<128xf32>
    %14 = vector.shape_cast %13 : vector<128xf32> to vector<1x128xf32>
    %c0_14 = arith.constant 0 : index
    %c1 = arith.constant 1 : index
    %c0_15 = arith.constant 0 : index
    %15 = vector.load %arg4[%c0_14, %c1, %c0_15] : memref<1x8x128xf32, #tpu.memory_space<vmem>>, vector<1x1x128xf32>
    %16 = vector.shape_cast %15 : vector<1x1x128xf32> to vector<1x128xf32>
    %17 = vector.shape_cast %14 : vector<1x128xf32> to vector<1x1x128xf32>
    tpu.vector_store %arg4[%c0_14, %c1, %c0_15], %17 {strides = array<i32>} : memref<1x8x128xf32, #tpu.memory_space<vmem>>, vector<1x1x128xf32>,
    return
  }
  func.func @transform_0(%arg0: i32) -> (i32, i32) {
    %c0_i32 = arith.constant 0 : i32
    %c0_i32_0 = arith.constant 0 : i32
    return %arg0, %c0_i32 : i32, i32
  }
  func.func @transform_1(%arg0: i32) -> (i32, i32) {
    %c0_i32 = arith.constant 0 : i32
    %c0_i32_0 = arith.constant 0 : i32
    %c0_i32_1 = arith.constant 0 : i32
    return %c0_i32, %c0_i32_0 : i32, i32
  }
  func.func @transform_2(%arg0: i32) -> (i32, i32) {
    %c0_i32 = arith.constant 0 : i32
    %c0_i32_0 = arith.constant 0 : i32
    return %arg0, %c0_i32 : i32, i32
  }
  func.func @transform_3(%arg0: i32) -> (i32, i32, i32) {
    %c0_i32 = arith.constant 0 : i32
    %c0_i32_0 = arith.constant 0 : i32
    %c0_i32_1 = arith.constant 0 : i32
    return %arg0, %c0_i32, %c0_i32_0 : i32, i32, i32
  }
}

module attributes {stable_mosaic.version = 11 : i64} {
  func.func @_matmul_stats_kernel(%arg0: i32, %arg1: memref<16x512xbf16, #tpu.memory_space<vmem>>, %arg2: memref<512x128xbf16, #tpu.memory_space<vmem>>, %arg3: memref<16x128xbf16, #tpu.memory_space<vmem>>, %arg4: memref<1x8x128xf32, #tpu.memory_space<vmem>>) attributes {dimension_semantics = [#tpu.dimension_semantics<parallel>], iteration_bounds = array<i64: 2>, scalar_prefetch = 0 : i64, scratch_operands = 0 : i64, tpu.core_type = #tpu.core_type<tc>, window_params = [{transform_indices = @transform_0, window_bounds = array<i64: 16, 512>}, {pipeline_mode = #tpu.pipeline_mode<synchronous>, transform_indices = @transform_1, window_bounds = array<i64: 512, 128>}, {transform_indices = @transform_2, window_bounds = array<i64: 16, 128>}, {transform_indices = @transform_3, window_bounds = array<i64: 1, 8, 128>}]} {
    %c0 = arith.constant 0 : index
    %c0_0 = arith.constant 0 : index
    %0 = vector.load %arg1[%c0, %c0_0] : memref<16x512xbf16, #tpu.memory_space<vmem>>, vector<16x512xbf16>
    %c0_1 = arith.constant 0 : index
    %c0_2 = arith.constant 0 : index
    %1 = vector.load %arg2[%c0_1, %c0_2] : memref<512x128xbf16, #tpu.memory_space<vmem>>, vector<512x128xbf16>
    %cst = arith.constant dense<0.000000e+00> : vector<16x128xf32>
    %2 = tpu.matmul %0, %1, %cst {dimension_numbers = #tpu.dot_dimension_numbers<[1], [0], [0], [1], [0, 0, 1, 1], [], []>} : vector<16x512xbf16>, vector<512x128xbf16>, vector<16x128xf32> -> vector<16x128xf32>
    %3 = arith.truncf %2 : vector<16x128xf32> to vector<16x128xbf16>
    %c0_3 = arith.constant 0 : index
    %c0_4 = arith.constant 0 : index
    %4 = vector.load %arg3[%c0_3, %c0_4] : memref<16x128xbf16, #tpu.memory_space<vmem>>, vector<16x128xbf16>
    tpu.vector_store %arg3[%c0_3, %c0_4], %3 {strides = array<i32>} : memref<16x128xbf16, #tpu.memory_space<vmem>>, vector<16x128xbf16>,
    %cst_5 = arith.constant 0.000000e+00 : f32
    %5 = vector.broadcast %cst_5 : f32 to vector<1x8x128xf32>
    %c0_6 = arith.constant 0 : index
    %c0_7 = arith.constant 0 : index
    %c0_8 = arith.constant 0 : index
    %6 = vector.load %arg4[%c0_6, %c0_7, %c0_8] : memref<1x8x128xf32, #tpu.memory_space<vmem>>, vector<1x8x128xf32>
    tpu.vector_store %arg4[%c0_6, %c0_7, %c0_8], %5 {strides = array<i32>} : memref<1x8x128xf32, #tpu.memory_space<vmem>>, vector<1x8x128xf32>,
    %cst_9 = arith.constant dense<0.000000e+00> : vector<128xf32>
    %7 = vector.multi_reduction <add>, %2, %cst_9 [0] : vector<16x128xf32> to vector<128xf32>
    %8 = vector.shape_cast %7 : vector<128xf32> to vector<1x128xf32>
    %c0_10 = arith.constant 0 : index
    %c0_11 = arith.constant 0 : index
    %c0_12 = arith.constant 0 : index
    %9 = vector.load %arg4[%c0_10, %c0_11, %c0_12] : memref<1x8x128xf32, #tpu.memory_space<vmem>>, vector<1x1x128xf32>
    %10 = vector.shape_cast %9 : vector<1x1x128xf32> to vector<1x128xf32>
    %11 = vector.shape_cast %8 : vector<1x128xf32> to vector<1x1x128xf32>
    tpu.vector_store %arg4[%c0_10, %c0_11, %c0_12], %11 {strides = array<i32>} : memref<1x8x128xf32, #tpu.memory_space<vmem>>, vector<1x1x128xf32>,
    %12 = arith.mulf %2, %2 : vector<16x128xf32>
    %cst_13 = arith.constant dense<0.000000e+00> : vector<128xf32>
    %13 = vector.multi_reduction <add>, %12, %cst_13 [0] : vector<16x128xf32> to vector<128xf32>
    %14 = vector.shape_cast %13 : vector<128xf32> to vector<1x128xf32>
    %c0_14 = arith.constant 0 : index
    %c1 = arith.constant 1 : index
    %c0_15 = arith.constant 0 : index
    %15 = vector.load %arg4[%c0_14, %c1, %c0_15] : memref<1x8x128xf32, #tpu.memory_space<vmem>>, vector<1x1x128xf32>
    %16 = vector.shape_cast %15 : vector<1x1x128xf32> to vector<1x128xf32>
    %17 = vector.shape_cast %14 : vector<1x128xf32> to vector<1x1x128xf32>
    tpu.vector_store %arg4[%c0_14, %c1, %c0_15], %17 {strides = array<i32>} : memref<1x8x128xf32, #tpu.memory_space<vmem>>, vector<1x1x128xf32>,
    return
  }
  func.func @transform_0(%arg0: i32) -> (i32, i32) {
    %c0_i32 = arith.constant 0 : i32
    %c0_i32_0 = arith.constant 0 : i32
    return %arg0, %c0_i32 : i32, i32
  }
  func.func @transform_1(%arg0: i32) -> (i32, i32) {
    %c0_i32 = arith.constant 0 : i32
    %c0_i32_0 = arith.constant 0 : i32
    %c0_i32_1 = arith.constant 0 : i32
    return %c0_i32, %c0_i32_0 : i32, i32
  }
  func.func @transform_2(%arg0: i32) -> (i32, i32) {
    %c0_i32 = arith.constant 0 : i32
    %c0_i32_0 = arith.constant 0 : i32
    return %arg0, %c0_i32 : i32, i32
  }
  func.func @transform_3(%arg0: i32) -> (i32, i32, i32) {
    %c0_i32 = arith.constant 0 : i32
    %c0_i32_0 = arith.constant 0 : i32
    %c0_i32_1 = arith.constant 0 : i32
    return %arg0, %c0_i32, %c0_i32_0 : i32, i32, i32
  }
}

module attributes {stable_mosaic.version = 11 : i64} {
  func.func @_matmul_bias_act_kernel(%arg0: i32, %arg1: memref<8x1024xbf16, #tpu.memory_space<vmem>>, %arg2: memref<1024x128xbf16, #tpu.memory_space<vmem>>, %arg3: memref<1x128xf32, #tpu.memory_space<vmem>>, %arg4: memref<8x128xf32, #tpu.memory_space<vmem>>) attributes {dimension_semantics = [#tpu.dimension_semantics<parallel>], iteration_bounds = array<i64: 1>, scalar_prefetch = 0 : i64, scratch_operands = 0 : i64, tpu.core_type = #tpu.core_type<tc>, window_params = [{transform_indices = @transform_0, window_bounds = array<i64: 8, 1024>}, {pipeline_mode = #tpu.pipeline_mode<synchronous>, transform_indices = @transform_1, window_bounds = array<i64: 1024, 128>}, {pipeline_mode = #tpu.pipeline_mode<synchronous>, transform_indices = @transform_2, window_bounds = array<i64: 1, 128>}, {transform_indices = @transform_3, window_bounds = array<i64: 8, 128>}]} {
    %c0 = arith.constant 0 : index
    %c0_0 = arith.constant 0 : index
    %0 = vector.load %arg1[%c0, %c0_0] : memref<8x1024xbf16, #tpu.memory_space<vmem>>, vector<8x1024xbf16>
    %c0_1 = arith.constant 0 : index
    %c0_2 = arith.constant 0 : index
    %1 = vector.load %arg2[%c0_1, %c0_2] : memref<1024x128xbf16, #tpu.memory_space<vmem>>, vector<1024x128xbf16>
    %cst = arith.constant dense<0.000000e+00> : vector<8x128xf32>
    %2 = tpu.matmul %0, %1, %cst {dimension_numbers = #tpu.dot_dimension_numbers<[1], [0], [0], [1], [0, 0, 1, 1], [], []>} : vector<8x1024xbf16>, vector<1024x128xbf16>, vector<8x128xf32> -> vector<8x128xf32>
    %c0_3 = arith.constant 0 : index
    %c0_4 = arith.constant 0 : index
    %3 = vector.load %arg3[%c0_3, %c0_4] : memref<1x128xf32, #tpu.memory_space<vmem>>, vector<1x128xf32>
    %4 = vector.broadcast %3 : vector<1x128xf32> to vector<8x128xf32>
    %5 = arith.addf %2, %4 : vector<8x128xf32>
    %cst_5 = arith.constant 0.000000e+00 : f32
    %6 = vector.broadcast %cst_5 : f32 to vector<8x128xf32>
    %7 = arith.subf %6, %5 : vector<8x128xf32>
    %8 = math.exp %7 : vector<8x128xf32>
    %cst_6 = arith.constant 1.000000e+00 : f32
    %9 = vector.broadcast %cst_6 : f32 to vector<8x128xf32>
    %10 = arith.addf %9, %8 : vector<8x128xf32>
    %cst_7 = arith.constant 1.000000e+00 : f32
    %11 = vector.broadcast %cst_7 : f32 to vector<8x128xf32>
    %12 = arith.divf %11, %10 : vector<8x128xf32>
    %c0_8 = arith.constant 0 : index
    %c0_9 = arith.constant 0 : index
    %13 = vector.load %arg4[%c0_8, %c0_9] : memref<8x128xf32, #tpu.memory_space<vmem>>, vector<8x128xf32>
    tpu.vector_store %arg4[%c0_8, %c0_9], %12 {strides = array<i32>} : memref<8x128xf32, #tpu.memory_space<vmem>>, vector<8x128xf32>,
    return
  }
  func.func @transform_0(%arg0: i32) -> (i32, i32) {
    %c0_i32 = arith.constant 0 : i32
    %c0_i32_0 = arith.constant 0 : i32
    return %arg0, %c0_i32 : i32, i32
  }
  func.func @transform_1(%arg0: i32) -> (i32, i32) {
    %c0_i32 = arith.constant 0 : i32
    %c0_i32_0 = arith.constant 0 : i32
    %c0_i32_1 = arith.constant 0 : i32
    return %c0_i32, %c0_i32_0 : i32, i32
  }
  func.func @transform_2(%arg0: i32) -> (i32, i32) {
    %c0_i32 = arith.constant 0 : i32
    %c0_i32_0 = arith.constant 0 : i32
    %c0_i32_1 = arith.constant 0 : i32
    return %c0_i32, %c0_i32_0 : i32, i32
  }
  func.func @transform_3(%arg0: i32) -> (i32, i32) {
    %c0_i32 = arith.constant 0 : i32
    %c0_i32_0 = arith.constant 0 : i32
    return %arg0, %c0_i32 : i32, i32
  }
}

</mosaic_0001>

<llo_original>
// kernel: discriminator_forward.5
$region0: #{discriminator_forward.5}
  #allocation0 [shape = 'u32[]', space=smem, size = 0x4, offset = 0x4, fixed_abs, tag = 'smem constant byte address 0x4 - core index']
  #allocation1 [shape = 'u32[144,128]{1,0:T(1,128)}', space=vmem, size = 0x12000, scoped, tag = 'internal scratch']
  %s0 = inlined_call_operand.vmem [shape: bf16[2048,128], index: 0, kind: input, shape index: {}]
  %s1 = inlined_call_operand.vmem [shape: bf16[128,128], index: 1, kind: input, shape index: {}]
  %s2 = inlined_call_operand.vmem [shape: f32[1,128], index: 2, kind: input, shape index: {}]
  %s3 = inlined_call_operand.vmem [shape: bf16[2048,128], index: 3, kind: output, shape index: {}]
  %s4 = sld [smem:[#allocation0]]
  $region45: #{discriminator_forward.5} parent=0
    _
  %s6 = ssub.s32 1, %s4
  %s7 = scalar_select 0, %s6, %s4
  loop: start=0, step=1, limit=4
  $region2: #{discriminator_forward.5} parent=0 // loop_pre_header
    _
  $region3: #{discriminator_forward.5} parent=0 // loop_header
    %s9 = sphi 0, %s13
    %p10 = scmp.ge.s32.totalorder %s9, 4
    %s19 = sphi 0, %s21
    %s22 = sphi 0, %s19
    %s23 = sphi 0, %s22
    %s39 = sphi 0, %s23
    %s43 = sphi 0, %s43
    %s45 = sphi 0, %s43
    %s46 = sphi 0, %s45
    %s60 = sphi 0, %s46
    %s64 = sphi 0, %s64
    %s66 = sphi 0, %s64
    %s67 = sphi 0, %s66
    %s81 = sphi 0, %s67
    %s87 = sphi 0, %s89
    %s90 = sphi 0, %s87
    %s91 = sphi 0, %s90
    %s107 = sphi 0, %s91
  $region4: #{discriminator_forward.5} parent=0 // loop_header_branch
    %12 = sbr.rel (%p10) target = $region8
  $region5: #{discriminator_forward.5} parent=0 // loop_body
    %s14 = ssub.s32 %s9, 1
    %s15 = ssub.s32 %s9, 2
    %s16 = sadd.s32 %s9, 1
    %s17 = ssub.s32 %s9, %s16
    %p18 = scmp.eq.s32.totalorder %s17, 0
    %s20 = sadd.s32 %s19, 1
    %s21 = scalar_select %p18, %s19, %s20
    %p24 = pneg %p18
    %p25 = scmp.eq.s32.totalorder %s9, 1
    %p26 = por %p24, %p25
    %p27 = scmp.ne.s32.totalorder %s19, %s22
    %p28 = scmp.eq.s32.totalorder %s9, 0
    %p29 = por %p27, %p28
    %p30 = scmp.ne.s32.totalorder %s19, %s22
    %p31 = scmp.eq.s32.totalorder %s14, 1
    %p32 = por %p30, %p31
    %p33 = scmp.ne.s32.totalorder %s22, %s23
    %p34 = scmp.eq.s32.totalorder %s14, 0
    %p35 = por %p33, %p34
    %p36 = scmp.ne.s32.totalorder %s22, %s23
    %p37 = scmp.eq.s32.totalorder %s15, 1
    %p38 = por %p36, %p37
    %p40 = scmp.ne.s32.totalorder %s23, %s39
    %p41 = scmp.eq.s32.totalorder %s15, 0
    %p42 = por %p40, %p41
    %s44 = sadd.s32 %s43, 1
    %p47 = scmp.eq.s32.totalorder %s9, 1
    %p48 = scmp.ne.s32.totalorder %s43, %s45
    %p49 = scmp.eq.s32.totalorder %s9, 0
    %p50 = por %p48, %p49
    %p51 = scmp.ne.s32.totalorder %s43, %s45
    %p52 = scmp.eq.s32.totalorder %s14, 1
    %p53 = por %p51, %p52
    %p54 = scmp.ne.s32.totalorder %s45, %s46
    %p55 = scmp.eq.s32.totalorder %s14, 0
    %p56 = por %p54, %p55
    %p57 = scmp.ne.s32.totalorder %s45, %s46
    %p58 = scmp.eq.s32.totalorder %s15, 1
    %p59 = por %p57, %p58
    %p61 = scmp.ne.s32.totalorder %s46, %s60
    %p62 = scmp.eq.s32.totalorder %s15, 0
    %p63 = por %p61, %p62
    %s65 = sadd.s32 %s64, 1
    %p68 = scmp.eq.s32.totalorder %s9, 1
    %p69 = scmp.ne.s32.totalorder %s64, %s66
    %p70 = scmp.eq.s32.totalorder %s9, 0
    %p71 = por %p69, %p70
    %p72 = scmp.ne.s32.totalorder %s64, %s66
    %p73 = scmp.eq.s32.totalorder %s14, 1
    %p74 = por %p72, %p73
    %p75 = scmp.ne.s32.totalorder %s66, %s67
    %p76 = scmp.eq.s32.totalorder %s14, 0
    %p77 = por %p75, %p76
    %p78 = scmp.ne.s32.totalorder %s66, %s67
    %p79 = scmp.eq.s32.totalorder %s15, 1
    %p80 = por %p78, %p79
    %p82 = scmp.ne.s32.totalorder %s67, %s81
    %p83 = scmp.eq.s32.totalorder %s15, 0
    %p84 = por %p82, %p83
    %s85 = ssub.s32 %s9, %s16
    %p86 = scmp.eq.s32.totalorder %s85, 0
    %s88 = sadd.s32 %s87, 1
    %s89 = scalar_select %p86, %s87, %s88
    %p92 = pneg %p86
    %p93 = scmp.eq.s32.totalorder %s9, 1
    %p94 = por %p92, %p93
    %p95 = scmp.ne.s32.totalorder %s87, %s90
    %p96 = scmp.eq.s32.totalorder %s9, 0
    %p97 = por %p95, %p96
    %p98 = scmp.ne.s32.totalorder %s87, %s90
    %p99 = scmp.eq.s32.totalorder %s14, 1
    %p100 = por %p98, %p99
    %p101 = scmp.ne.s32.totalorder %s90, %s91
    %p102 = scmp.eq.s32.totalorder %s14, 0
    %p103 = por %p101, %p102
    %p104 = scmp.ne.s32.totalorder %s90, %s91
    %p105 = scmp.eq.s32.totalorder %s15, 1
    %p106 = por %p104, %p105
    %p108 = scmp.ne.s32.totalorder %s91, %s107
    %p109 = scmp.eq.s32.totalorder %s15, 0
    %p110 = por %p108, %p109
    %p111 = scmp.le.s32.totalorder 1, %s9
    %p112 = scmp.lt.s32.totalorder %s9, 3
    %p113 = pnand %p111, %p112
    %p114 = pneg %p113
    // Predicated region
    $region9: #{discriminator_forward.5} parent=5 // pred_check
      _
    $region10: #{discriminator_forward.5} parent=5 // pred_check_branch
      %116 = sbr.rel (%p113) target = $region12
    $region11: #{discriminator_forward.5} parent=5 // pred_region
      %s117 = ssub.s32 %s9, 1
      // Predicated region
      $region13: #{discriminator_forward.5} parent=11 // pred_check
        %p118 = pneg %p56
      $region14: #{discriminator_forward.5} parent=11 // pred_check_branch
        %120 = sbr.rel (%p118) target = $region16
      $region15: #{discriminator_forward.5} parent=11 // pred_region
        _
      $region16: #{discriminator_forward.5} parent=11 // pred_fallthru
        _
      // Predicated region
      $region17: #{discriminator_forward.5} parent=11 // pred_check
        %p121 = pneg %p77
      $region18: #{discriminator_forward.5} parent=11 // pred_check_branch
        %123 = sbr.rel (%p121) target = $region20
      $region19: #{discriminator_forward.5} parent=11 // pred_region
        _
      $region20: #{discriminator_forward.5} parent=11 // pred_fallthru
        _
    $region12: #{discriminator_forward.5} parent=5 // pred_fallthru
      _
    %p124 = scmp.lt.s32.totalorder %s9, 2
    // Predicated region
    $region21: #{discriminator_forward.5} parent=5 // pred_check
      %p125 = pneg %p124
    $region22: #{discriminator_forward.5} parent=5 // pred_check_branch
      %127 = sbr.rel (%p125) target = $region24
    $region23: #{discriminator_forward.5} parent=5 // pred_region
      // Predicated region
      $region25: #{discriminator_forward.5} parent=23 // pred_check
        %p128 = pneg %p29
      $region26: #{discriminator_forward.5} parent=23 // pred_check_branch
        %130 = sbr.rel (%p128) target = $region28
      $region27: #{discriminator_forward.5} parent=23 // pred_region
        %s131 = smul.u32 128, %s9
        %p132 = scmp.lt.s32.totalorder %s131, 255
        %s133 = scalar_select %p132, %s131, 255
        %s134 = smul.addr %s133, 4
        %s135 = scalar_lea.vmem %s0, %s134
        %s136 = smul.u32 128, %s9
      $region28: #{discriminator_forward.5} parent=23 // pred_fallthru
        _
    $region24: #{discriminator_forward.5} parent=5 // pred_fallthru
      _
    %p137 = scmp.le.s32.totalorder 1, %s9
    %p138 = scmp.lt.s32.totalorder %s9, 3
    %p139 = pnand %p137, %p138
    %p140 = pneg %p139
    // Predicated region
    $region29: #{discriminator_forward.5} parent=5 // pred_check
      _
    $region30: #{discriminator_forward.5} parent=5 // pred_check_branch
      %142 = sbr.rel (%p139) target = $region32
    $region31: #{discriminator_forward.5} parent=5 // pred_region
      %s143 = ssub.s32 %s9, 1
      %s144 = smul.u32 128, %s14
      %p145 = scmp.lt.s32.totalorder %s144, 255
      %s146 = scalar_select %p145, %s144, 255
      %s147 = smul.addr %s146, 4
      %s148 = scalar_lea.vmem %s0, %s147
      %p149 = pneg %p35
      %p150 = pneg %p32
      %p151 = pneg %p56
      %p152 = pneg %p53
      %p153 = pneg %p77
      %p154 = pneg %p74
      %p155 = pneg %p103
      %p156 = pneg %p100
      %s157 = smul.u32 128, %s14
      %p158 = scmp.lt.s32.totalorder %s157, 255
      %s159 = scalar_select %p158, %s157, 255
      %s160 = smul.addr %s159, 4
      %s161 = scalar_lea.vmem %s3, %s160
      %s162 = smul.u32 128, %s14
      %p163 = scmp.lt.s32.totalorder %s162, 255
      %s164 = scalar_select %p163, %s162, 255
      %s165 = smul.addr %s164, 4
      %s166 = scalar_lea.vmem %s0, %s165
      %s167 = smul.u32 128, %s14
      %s168 = smul.u32 128, %s14
      %p169 = scmp.lt.s32.totalorder %s168, 255
      %s170 = scalar_select %p169, %s168, 255
      %s171 = smul.addr %s170, 4
      %s172 = scalar_lea.vmem %s3, %s171
      %s173 = smul.u32 128, %s14
      %v175 = vld [vmem:[%s166] sm:$0xf]
      %v176 = vld [vmem:[%s166 + $0x4] sm:$0xf]
      %v177 = vld [vmem:[%s166 + $0x8] sm:$0xf]
      %v178 = vld [vmem:[%s166 + $0xc] sm:$0xf]
      %v179 = vld [vmem:[%s166 + $0x10] sm:$0xf]
      %v180 = vld [vmem:[%s166 + $0x14] sm:$0xf]
      %v181 = vld [vmem:[%s166 + $0x18] sm:$0xf]
      %v182 = vld [vmem:[%s166 + $0x1c] sm:$0xf]
      %v183 = vld [vmem:[%s166 + $0x20] sm:$0xf]
      %v184 = vld [vmem:[%s166 + $0x24] sm:$0xf]
      %v185 = vld [vmem:[%s166 + $0x28] sm:$0xf]
      %v186 = vld [vmem:[%s166 + $0x2c] sm:$0xf]
      %v187 = vld [vmem:[%s166 + $0x30] sm:$0xf]
      %v188 = vld [vmem:[%s166 + $0x34] sm:$0xf]
      %v189 = vld [vmem:[%s166 + $0x38] sm:$0xf]
      %v190 = vld [vmem:[%s166 + $0x3c] sm:$0xf]
      %v191 = vld [vmem:[%s166 + $0x40] sm:$0xf]
      %v192 = vld [vmem:[%s166 + $0x44] sm:$0xf]
      %v193 = vld [vmem:[%s166 + $0x48] sm:$0xf]
      %v194 = vld [vmem:[%s166 + $0x4c] sm:$0xf]
      %v195 = vld [vmem:[%s166 + $0x50] sm:$0xf]
      %v196 = vld [vmem:[%s166 + $0x54] sm:$0xf]
      %v197 = vld [vmem:[%s166 + $0x58] sm:$0xf]
      %v198 = vld [vmem:[%s166 + $0x5c] sm:$0xf]
      %v199 = vld [vmem:[%s166 + $0x60] sm:$0xf]
      %v200 = vld [vmem:[%s166 + $0x64] sm:$0xf]
      %v201 = vld [vmem:[%s166 + $0x68] sm:$0xf]
      %v202 = vld [vmem:[%s166 + $0x6c] sm:$0xf]
      %v203 = vld [vmem:[%s166 + $0x70] sm:$0xf]
      %v204 = vld [vmem:[%s166 + $0x74] sm:$0xf]
      %v205 = vld [vmem:[%s166 + $0x78] sm:$0xf]
      %v206 = vld [vmem:[%s166 + $0x7c] sm:$0xf]
      %v207 = vld [vmem:[%s166 + $0x80] sm:$0xf]
      %v208 = vld [vmem:[%s166 + $0x84] sm:$0xf]
      %v209 = vld [vmem:[%s166 + $0x88] sm:$0xf]
      %v210 = vld [vmem:[%s166 + $0x8c] sm:$0xf]
      %v211 = vld [vmem:[%s166 + $0x90] sm:$0xf]
      %v212 = vld [vmem:[%s166 + $0x94] sm:$0xf]
      %v213 = vld [vmem:[%s166 + $0x98] sm:$0xf]
      %v214 = vld [vmem:[%s166 + $0x9c] sm:$0xf]
      %v215 = vld [vmem:[%s166 + $0xa0] sm:$0xf]
      %v216 = vld [vmem:[%s166 + $0xa4] sm:$0xf]
      %v217 = vld [vmem:[%s166 + $0xa8] sm:$0xf]
      %v218 = vld [vmem:[%s166 + $0xac] sm:$0xf]
      %v219 = vld [vmem:[%s166 + $0xb0] sm:$0xf]
      %v220 = vld [vmem:[%s166 + $0xb4] sm:$0xf]
      %v221 = vld [vmem:[%s166 + $0xb8] sm:$0xf]
      %v222 = vld [vmem:[%s166 + $0xbc] sm:$0xf]
      %v223 = vld [vmem:[%s166 + $0xc0] sm:$0xf]
      %v224 = vld [vmem:[%s166 + $0xc4] sm:$0xf]
      %v225 = vld [vmem:[%s166 + $0xc8] sm:$0xf]
      %v226 = vld [vmem:[%s166 + $0xcc] sm:$0xf]
      %v227 = vld [vmem:[%s166 + $0xd0] sm:$0xf]
      %v228 = vld [vmem:[%s166 + $0xd4] sm:$0xf]
      %v229 = vld [vmem:[%s166 + $0xd8] sm:$0xf]
      %v230 = vld [vmem:[%s166 + $0xdc] sm:$0xf]
      %v231 = vld [vmem:[%s166 + $0xe0] sm:$0xf]
      %v232 = vld [vmem:[%s166 + $0xe4] sm:$0xf]
      %v233 = vld [vmem:[%s166 + $0xe8] sm:$0xf]
      %v234 = vld [vmem:[%s166 + $0xec] sm:$0xf]
      %v235 = vld [vmem:[%s166 + $0xf0] sm:$0xf]
      %v236 = vld [vmem:[%s166 + $0xf4] sm:$0xf]
      %v237 = vld [vmem:[%s166 + $0xf8] sm:$0xf]
      %v238 = vld [vmem:[%s166 + $0xfc] sm:$0xf]
      %v239 = vld [vmem:[%s166 + $0x100] sm:$0xf]
      %v240 = vld [vmem:[%s166 + $0x104] sm:$0xf]
      %v241 = vld [vmem:[%s166 + $0x108] sm:$0xf]
      %v242 = vld [vmem:[%s166 + $0x10c] sm:$0xf]
      %v243 = vld [vmem:[%s166 + $0x110] sm:$0xf]
      %v244 = vld [vmem:[%s166 + $0x114] sm:$0xf]
      %v245 = vld [vmem:[%s166 + $0x118] sm:$0xf]
      %v246 = vld [vmem:[%s166 + $0x11c] sm:$0xf]
      %v247 = vld [vmem:[%s166 + $0x120] sm:$0xf]
      %v248 = vld [vmem:[%s166 + $0x124] sm:$0xf]
      %v249 = vld [vmem:[%s166 + $0x128] sm:$0xf]
      %v250 = vld [vmem:[%s166 + $0x12c] sm:$0xf]
      %v251 = vld [vmem:[%s166 + $0x130] sm:$0xf]
      %v252 = vld [vmem:[%s166 + $0x134] sm:$0xf]
      %v253 = vld [vmem:[%s166 + $0x138] sm:$0xf]
      %v254 = vld [vmem:[%s166 + $0x13c] sm:$0xf]
      %v255 = vld [vmem:[%s166 + $0x140] sm:$0xf]
      %v256 = vld [vmem:[%s166 + $0x144] sm:$0xf]
      %v257 = vld [vmem:[%s166 + $0x148] sm:$0xf]
      %v258 = vld [vmem:[%s166 + $0x14c] sm:$0xf]
      %v259 = vld [vmem:[%s166 + $0x150] sm:$0xf]
      %v260 = vld [vmem:[%s166 + $0x154] sm:$0xf]
      %v261 = vld [vmem:[%s166 + $0x158] sm:$0xf]
      %v262 = vld [vmem:[%s166 + $0x15c] sm:$0xf]
      %v263 = vld [vmem:[%s166 + $0x160] sm:$0xf]
      %v264 = vld [vmem:[%s166 + $0x164] sm:$0xf]
      %v265 = vld [vmem:[%s166 + $0x168] sm:$0xf]
      %v266 = vld [vmem:[%s166 + $0x16c] sm:$0xf]
      %v267 = vld [vmem:[%s166 + $0x170] sm:$0xf]
      %v268 = vld [vmem:[%s166 + $0x174] sm:$0xf]
      %v269 = vld [vmem:[%s166 + $0x178] sm:$0xf]
      %v270 = vld [vmem:[%s166 + $0x17c] sm:$0xf]
      %v271 = vld [vmem:[%s166 + $0x180] sm:$0xf]
      %v272 = vld [vmem:[%s166 + $0x184] sm:$0xf]
      %v273 = vld [vmem:[%s166 + $0x188] sm:$0xf]
      %v274 = vld [vmem:[%s166 + $0x18c] sm:$0xf]
      %v275 = vld [vmem:[%s166 + $0x190] sm:$0xf]
      %v276 = vld [vmem:[%s166 + $0x194] sm:$0xf]
      %v277 = vld [vmem:[%s166 + $0x198] sm:$0xf]
      %v278 = vld [vmem:[%s166 + $0x19c] sm:$0xf]
      %v279 = vld [vmem:[%s166 + $0x1a0] sm:$0xf]
      %v280 = vld [vmem:[%s166 + $0x1a4] sm:$0xf]
      %v281 = vld [vmem:[%s166 + $0x1a8] sm:$0xf]
      %v282 = vld [vmem:[%s166 + $0x1ac] sm:$0xf]
      %v283 = vld [vmem:[%s166 + $0x1b0] sm:$0xf]
      %v284 = vld [vmem:[%s166 + $0x1b4] sm:$0xf]
      %v285 = vld [vmem:[%s166 + $0x1b8] sm:$0xf]
      %v286 = vld [vmem:[%s166 + $0x1bc] sm:$0xf]
      %v287 = vld [vmem:[%s166 + $0x1c0] sm:$0xf]
      %v288 = vld [vmem:[%s166 + $0x1c4] sm:$0xf]
      %v289 = vld [vmem:[%s166 + $0x1c8] sm:$0xf]
      %v290 = vld [vmem:[%s166 + $0x1cc] sm:$0xf]
      %v291 = vld [vmem:[%s166 + $0x1d0] sm:$0xf]
      %v292 = vld [vmem:[%s166 + $0x1d4] sm:$0xf]
      %v293 = vld [vmem:[%s166 + $0x1d8] sm:$0xf]
      %v294 = vld [vmem:[%s166 + $0x1dc] sm:$0xf]
      %v295 = vld [vmem:[%s166 + $0x1e0] sm:$0xf]
      %v296 = vld [vmem:[%s166 + $0x1e4] sm:$0xf]
      %v297 = vld [vmem:[%s166 + $0x1e8] sm:$0xf]
      %v298 = vld [vmem:[%s166 + $0x1ec] sm:$0xf]
      %v299 = vld [vmem:[%s166 + $0x1f0] sm:$0xf]
      %v300 = vld [vmem:[%s166 + $0x1f4] sm:$0xf]
      %v301 = vld [vmem:[%s166 + $0x1f8] sm:$0xf]
      %v302 = vld [vmem:[%s166 + $0x1fc] sm:$0xf]
      %v303 = vld [vmem:[%s1] sm:$0xf]
      %v304 = vld [vmem:[%s1 + $0x4] sm:$0xf]
      %v305 = vld [vmem:[%s1 + $0x8] sm:$0xf]
      %v306 = vld [vmem:[%s1 + $0xc] sm:$0xf]
      %v307 = vld [vmem:[%s1 + $0x10] sm:$0xf]
      %v308 = vld [vmem:[%s1 + $0x14] sm:$0xf]
      %v309 = vld [vmem:[%s1 + $0x18] sm:$0xf]
      %v310 = vld [vmem:[%s1 + $0x1c] sm:$0xf]
      %v311 = vld [vmem:[%s1 + $0x20] sm:$0xf]
      %v312 = vld [vmem:[%s1 + $0x24] sm:$0xf]
      %v313 = vld [vmem:[%s1 + $0x28] sm:$0xf]
      %v314 = vld [vmem:[%s1 + $0x2c] sm:$0xf]
      %v315 = vld [vmem:[%s1 + $0x30] sm:$0xf]
      %v316 = vld [vmem:[%s1 + $0x34] sm:$0xf]
      %v317 = vld [vmem:[%s1 + $0x38] sm:$0xf]
      %v318 = vld [vmem:[%s1 + $0x3c] sm:$0xf]
      %v319 = vld [vmem:[%s2] sm:$0x1]
      %v321 = vlaneseq
      %v322 = vshrl.u32 %v321, 7
      %v323 = vsub.s32 0, %v322
      %v324 = vrot.slane %v319, %v323
      %v454 = vunpack.c.l.b16 %v175
      %v455 = vunpack.c.l.b16 %v176
      %v456 = vunpack.c.l.b16 %v177
      %v457 = vunpack.c.l.b16 %v178
      %v458 = vunpack.c.l.b16 %v179
      %v459 = vunpack.c.l.b16 %v180
      %v460 = vunpack.c.l.b16 %v181
      %v461 = vunpack.c.l.b16 %v182
      %v462 = vunpack.c.l.b16 %v183
      %v463 = vunpack.c.l.b16 %v184
      %v464 = vunpack.c.l.b16 %v185
      %v465 = vunpack.c.l.b16 %v186
      %v466 = vunpack.c.l.b16 %v187
      %v467 = vunpack.c.l.b16 %v188
      %v468 = vunpack.c.l.b16 %v189
      %v469 = vunpack.c.l.b16 %v190
      %v470 = vunpack.c.l.b16 %v191
      %v471 = vunpack.c.l.b16 %v192
      %v472 = vunpack.c.l.b16 %v193
      %v473 = vunpack.c.l.b16 %v194
      %v474 = vunpack.c.l.b16 %v195
      %v475 = vunpack.c.l.b16 %v196
      %v476 = vunpack.c.l.b16 %v197
      %v477 = vunpack.c.l.b16 %v198
      %v478 = vunpack.c.l.b16 %v199
      %v479 = vunpack.c.l.b16 %v200
      %v480 = vunpack.c.l.b16 %v201
      %v481 = vunpack.c.l.b16 %v202
      %v482 = vunpack.c.l.b16 %v203
      %v483 = vunpack.c.l.b16 %v204
      %v484 = vunpack.c.l.b16 %v205
      %v485 = vunpack.c.l.b16 %v206
      %v486 = vunpack.c.l.b16 %v207
      %v487 = vunpack.c.l.b16 %v208
      %v488 = vunpack.c.l.b16 %v209
      %v489 = vunpack.c.l.b16 %v210
      %v490 = vunpack.c.l.b16 %v211
      %v491 = vunpack.c.l.b16 %v212
      %v492 = vunpack.c.l.b16 %v213
      %v493 = vunpack.c.l.b16 %v214
      %v494 = vunpack.c.l.b16 %v215
      %v495 = vunpack.c.l.b16 %v216
      %v496 = vunpack.c.l.b16 %v217
      %v497 = vunpack.c.l.b16 %v218
      %v498 = vunpack.c.l.b16 %v219
      %v499 = vunpack.c.l.b16 %v220
      %v500 = vunpack.c.l.b16 %v221
      %v501 = vunpack.c.l.b16 %v222
      %v502 = vunpack.c.l.b16 %v223
      %v503 = vunpack.c.l.b16 %v224
      %v504 = vunpack.c.l.b16 %v225
      %v505 = vunpack.c.l.b16 %v226
      %v506 = vunpack.c.l.b16 %v227
      %v507 = vunpack.c.l.b16 %v228
      %v508 = vunpack.c.l.b16 %v229
      %v509 = vunpack.c.l.b16 %v230
      %v510 = vunpack.c.l.b16 %v231
      %v511 = vunpack.c.l.b16 %v232
      %v512 = vunpack.c.l.b16 %v233
      %v513 = vunpack.c.l.b16 %v234
      %v514 = vunpack.c.l.b16 %v235
      %v515 = vunpack.c.l.b16 %v236
      %v516 = vunpack.c.l.b16 %v237
      %v517 = vunpack.c.l.b16 %v238
      %v518 = vunpack.c.l.b16 %v239
      %v519 = vunpack.c.l.b16 %v240
      %v520 = vunpack.c.l.b16 %v241
      %v521 = vunpack.c.l.b16 %v242
      %v522 = vunpack.c.l.b16 %v243
      %v523 = vunpack.c.l.b16 %v244
      %v524 = vunpack.c.l.b16 %v245
      %v525 = vunpack.c.l.b16 %v246
      %v526 = vunpack.c.l.b16 %v247
      %v527 = vunpack.c.l.b16 %v248
      %v528 = vunpack.c.l.b16 %v249
      %v529 = vunpack.c.l.b16 %v250
      %v530 = vunpack.c.l.b16 %v251
      %v531 = vunpack.c.l.b16 %v252
      %v532 = vunpack.c.l.b16 %v253
      %v533 = vunpack.c.l.b16 %v254
      %v534 = vunpack.c.l.b16 %v255
      %v535 = vunpack.c.l.b16 %v256
      %v536 = vunpack.c.l.b16 %v257
      %v537 = vunpack.c.l.b16 %v258
      %v538 = vunpack.c.l.b16 %v259
      %v539 = vunpack.c.l.b16 %v260
      %v540 = vunpack.c.l.b16 %v261
      %v541 = vunpack.c.l.b16 %v262
      %v542 = vunpack.c.l.b16 %v263
      %v543 = vunpack.c.l.b16 %v264
      %v544 = vunpack.c.l.b16 %v265
      %v545 = vunpack.c.l.b16 %v266
      %v546 = vunpack.c.l.b16 %v267
      %v547 = vunpack.c.l.b16 %v268
      %v548 = vunpack.c.l.b16 %v269
      %v549 = vunpack.c.l.b16 %v270
      %v550 = vunpack.c.l.b16 %v271
      %v551 = vunpack.c.l.b16 %v272
      %v552 = vunpack.c.l.b16 %v273
      %v553 = vunpack.c.l.b16 %v274
      %v554 = vunpack.c.l.b16 %v275
      %v555 = vunpack.c.l.b16 %v276
      %v556 = vunpack.c.l.b16 %v277
      %v557 = vunpack.c.l.b16 %v278
      %v558 = vunpack.c.l.b16 %v279
      %v559 = vunpack.c.l.b16 %v280
      %v560 = vunpack.c.l.b16 %v281
      %v561 = vunpack.c.l.b16 %v282
      %v562 = vunpack.c.l.b16 %v283
      %v563 = vunpack.c.l.b16 %v284
      %v564 = vunpack.c.l.b16 %v285
      %v565 = vunpack.c.l.b16 %v286
      %v566 = vunpack.c.l.b16 %v287
      %v567 = vunpack.c.l.b16 %v288
      %v568 = vunpack.c.l.b16 %v289
      %v569 = vunpack.c.l.b16 %v290
      %v570 = vunpack.c.l.b16 %v291
      %v571 = vunpack.c.l.b16 %v292
      %v572 = vunpack.c.l.b16 %v293
      %v573 = vunpack.c.l.b16 %v294
      %v574 = vunpack.c.l.b16 %v295
      %v575 = vunpack.c.l.b16 %v296
      %v576 = vunpack.c.l.b16 %v297
      %v577 = vunpack.c.l.b16 %v298
      %v578 = vunpack.c.l.b16 %v299
      %v579 = vunpack.c.l.b16 %v300
      %v580 = vunpack.c.l.b16 %v301
      %v581 = vunpack.c.l.b16 %v302
      %v582 = vpack.c.b16 %v455, %v454
      %v583 = vpack.c.b16 %v457, %v456
      %v584 = vpack.c.b16 %v459, %v458
      %v585 = vpack.c.b16 %v461, %v460
      %v586 = vpack.c.b16 %v463, %v462
      %v587 = vpack.c.b16 %v465, %v464
      %v588 = vpack.c.b16 %v467, %v466
      %v589 = vpack.c.b16 %v469, %v468
      %v590 = vpack.c.b16 %v471, %v470
      %v591 = vpack.c.b16 %v473, %v472
      %v592 = vpack.c.b16 %v475, %v474
      %v593 = vpack.c.b16 %v477, %v476
      %v594 = vpack.c.b16 %v479, %v478
      %v595 = vpack.c.b16 %v481, %v480
      %v596 = vpack.c.b16 %v483, %v482
      %v597 = vpack.c.b16 %v485, %v484
      %v598 = vpack.c.b16 %v487, %v486
      %v599 = vpack.c.b16 %v489, %v488
      %v600 = vpack.c.b16 %v491, %v490
      %v601 = vpack.c.b16 %v493, %v492
      %v602 = vpack.c.b16 %v495, %v494
      %v603 = vpack.c.b16 %v497, %v496
      %v604 = vpack.c.b16 %v499, %v498
      %v605 = vpack.c.b16 %v501, %v500
      %v606 = vpack.c.b16 %v503, %v502
      %v607 = vpack.c.b16 %v505, %v504
      %v608 = vpack.c.b16 %v507, %v506
      %v609 = vpack.c.b16 %v509, %v508
      %v610 = vpack.c.b16 %v511, %v510
      %v611 = vpack.c.b16 %v513, %v512
      %v612 = vpack.c.b16 %v515, %v514
      %v613 = vpack.c.b16 %v517, %v516
      %v614 = vpack.c.b16 %v519, %v518
      %v615 = vpack.c.b16 %v521, %v520
      %v616 = vpack.c.b16 %v523, %v522
      %v617 = vpack.c.b16 %v525, %v524
      %v618 = vpack.c.b16 %v527, %v526
      %v619 = vpack.c.b16 %v529, %v528
      %v620 = vpack.c.b16 %v531, %v530
      %v621 = vpack.c.b16 %v533, %v532
      %v622 = vpack.c.b16 %v535, %v534
      %v623 = vpack.c.b16 %v537, %v536
      %v624 = vpack.c.b16 %v539, %v538
      %v625 = vpack.c.b16 %v541, %v540
      %v626 = vpack.c.b16 %v543, %v542
      %v627 = vpack.c.b16 %v545, %v544
      %v628 = vpack.c.b16 %v547, %v546
      %v629 = vpack.c.b16 %v549, %v548
      %v630 = vpack.c.b16 %v551, %v550
      %v631 = vpack.c.b16 %v553, %v552
      %v632 = vpack.c.b16 %v555, %v554
      %v633 = vpack.c.b16 %v557, %v556
      %v634 = vpack.c.b16 %v559, %v558
      %v635 = vpack.c.b16 %v561, %v560
      %v636 = vpack.c.b16 %v563, %v562
      %v637 = vpack.c.b16 %v565, %v564
      %v638 = vpack.c.b16 %v567, %v566
      %v639 = vpack.c.b16 %v569, %v568
      %v640 = vpack.c.b16 %v571, %v570
      %v641 = vpack.c.b16 %v573, %v572
      %v642 = vpack.c.b16 %v575, %v574
      %v643 = vpack.c.b16 %v577, %v576
      %v644 = vpack.c.b16 %v579, %v578
      %v645 = vpack.c.b16 %v581, %v580
      %v726 = vunpack.c.l.b16 %v303
      %v727 = vunpack.c.l.b16 %v304
      %v728 = vunpack.c.l.b16 %v305
      %v729 = vunpack.c.l.b16 %v306
      %v730 = vunpack.c.l.b16 %v307
      %v731 = vunpack.c.l.b16 %v308
      %v732 = vunpack.c.l.b16 %v309
      %v733 = vunpack.c.l.b16 %v310
      %v734 = vunpack.c.l.b16 %v311
      %v735 = vunpack.c.l.b16 %v312
      %v736 = vunpack.c.l.b16 %v313
      %v737 = vunpack.c.l.b16 %v314
      %v738 = vunpack.c.l.b16 %v315
      %v739 = vunpack.c.l.b16 %v316
      %v740 = vunpack.c.l.b16 %v317
      %v741 = vunpack.c.l.b16 %v318
      %v742 = vpack.c.b16 %v727, %v726
      %v743 = vpack.c.b16 %v729, %v728
      %v744 = vpack.c.b16 %v731, %v730
      %v745 = vpack.c.b16 %v733, %v732
      %v746 = vpack.c.b16 %v735, %v734
      %v747 = vpack.c.b16 %v737, %v736
      %v748 = vpack.c.b16 %v739, %v738
      %v749 = vpack.c.b16 %v741, %v740
      %758 = vmatprep.subr.bf16.mxu0 0
      %759 = vmatpush1.bf16.msra.mxu0 %v742
      %760 = vmatprep.subr.bf16.mxu0 0
      %761 = vmatpush1.bf16.msra.mxu0 %v743
      %762 = vmatprep.subr.bf16.mxu0 0
      %763 = vmatpush1.bf16.msra.mxu0 %v744
      %764 = vmatprep.subr.bf16.mxu0 0
      %765 = vmatpush1.bf16.msra.mxu0 %v745
      %766 = vmatprep.subr.bf16.mxu0 0
      %767 = vmatpush1.bf16.msra.mxu0 %v746
      %768 = vmatprep.subr.bf16.mxu0 0
      %769 = vmatpush1.bf16.msra.mxu0 %v747
      %770 = vmatprep.subr.bf16.mxu0 0
      %771 = vmatpush1.bf16.msra.mxu0 %v748
      %772 = vmatprep.subr.bf16.mxu0 0
      %773 = vmatpush1.bf16.msra.mxu0 %v749
      %774 = vmatprep.subr.bf16.mxu0 0
      %775 = vmatpush1.bf16.msra.mxu0 0
      %776 = vmatprep.subr.bf16.mxu0 0
      %777 = vmatpush1.bf16.msra.mxu0 0
      %778 = vmatprep.subr.bf16.mxu0 0
      %779 = vmatpush1.bf16.msra.mxu0 0
      %780 = vmatprep.subr.bf16.mxu0 0
      %781 = vmatpush1.bf16.msra.mxu0 0
      %782 = vmatprep.subr.bf16.mxu0 0
      %783 = vmatpush1.bf16.msra.mxu0 0
      %784 = vmatprep.subr.bf16.mxu0 0
      %785 = vmatpush1.bf16.msra.mxu0 0
      %786 = vmatprep.subr.bf16.mxu0 0
      %787 = vmatpush1.bf16.msra.mxu0 0
      %788 = vmatprep.subr.bf16.mxu0 0
      %789 = vmatpush1.bf16.msra.mxu0 0
      %790 = vmatprep.mubr.bf16.mxu0 0
      %791 = vmatmul.mubr.bf16.gmra.mrb[0].mxu0 %v582
      %v792 = vpop.f32.mrb[0].mxu0
      %v793 = vadd.f32 %v324, %v792
      %v794 = vpop.f32.mrb[0].mxu0
      %v795 = vpop.f32.mrb[0].mxu0
      %v796 = vadd.f32 %v324, %v795
      %v797 = vpop.f32.mrb[0].mxu0
      %798 = vmatprep.mubr.bf16.mxu0 0
      %799 = vmatmul.mubr.bf16.gmra.mrb[0].mxu0 %v583
      %v800 = vpop.f32.mrb[0].mxu0
      %v801 = vadd.f32 %v324, %v800
      %v802 = vpop.f32.mrb[0].mxu0
      %v803 = vpop.f32.mrb[0].mxu0
      %v804 = vadd.f32 %v324, %v803
      %v805 = vpop.f32.mrb[0].mxu0
      %806 = vmatprep.mubr.bf16.mxu0 0
      %807 = vmatmul.mubr.bf16.gmra.mrb[0].mxu0 %v584
      %v808 = vpop.f32.mrb[0].mxu0
      %v809 = vadd.f32 %v324, %v808
      %v810 = vpop.f32.mrb[0].mxu0
      %v811 = vpop.f32.mrb[0].mxu0
      %v812 = vadd.f32 %v324, %v811
      %v813 = vpop.f32.mrb[0].mxu0
      %814 = vmatprep.mubr.bf16.mxu0 0
      %815 = vmatmul.mubr.bf16.gmra.mrb[0].mxu0 %v585
      %v816 = vpop.f32.mrb[0].mxu0
      %v817 = vadd.f32 %v324, %v816
      %v818 = vpop.f32.mrb[0].mxu0
      %v819 = vpop.f32.mrb[0].mxu0
      %v820 = vadd.f32 %v324, %v819
      %v821 = vpop.f32.mrb[0].mxu0
      %822 = vmatprep.mubr.bf16.mxu0 0
      %823 = vmatmul.mubr.bf16.gmra.mrb[0].mxu0 %v586
      %v824 = vpop.f32.mrb[0].mxu0
      %v825 = vadd.f32 %v324, %v824
      %v826 = vpop.f32.mrb[0].mxu0
      %v827 = vpop.f32.mrb[0].mxu0
      %v828 = vadd.f32 %v324, %v827
      %v829 = vpop.f32.mrb[0].mxu0
      %830 = vmatprep.mubr.bf16.mxu0 0
      %831 = vmatmul.mubr.bf16.gmra.mrb[0].mxu0 %v587
      %v832 = vpop.f32.mrb[0].mxu0
      %v833 = vadd.f32 %v324, %v832
      %v834 = vpop.f32.mrb[0].mxu0
      %v835 = vpop.f32.mrb[0].mxu0
      %v836 = vadd.f32 %v324, %v835
      %v837 = vpop.f32.mrb[0].mxu0
      %838 = vmatprep.mubr.bf16.mxu0 0
      %839 = vmatmul.mubr.bf16.gmra.mrb[0].mxu0 %v588
      %v840 = vpop.f32.mrb[0].mxu0
      %v841 = vadd.f32 %v324, %v840
      %v842 = vpop.f32.mrb[0].mxu0
      %v843 = vpop.f32.mrb[0].mxu0
      %v844 = vadd.f32 %v324, %v843
      %v845 = vpop.f32.mrb[0].mxu0
      %846 = vmatprep.mubr.bf16.mxu0 0
      %847 = vmatmul.mubr.bf16.gmra.mrb[0].mxu0 %v589
      %v848 = vpop.f32.mrb[0].mxu0
      %v849 = vadd.f32 %v324, %v848
      %v850 = vpop.f32.mrb[0].mxu0
      %v851 = vpop.f32.mrb[0].mxu0
      %v852 = vadd.f32 %v324, %v851
      %v853 = vpop.f32.mrb[0].mxu0
      %854 = vmatprep.mubr.bf16.mxu0 0
      %855 = vmatmul.mubr.bf16.gmra.mrb[0].mxu0 %v590
      %v856 = vpop.f32.mrb[0].mxu0
      %v857 = vadd.f32 %v324, %v856
      %v858 = vpop.f32.mrb[0].mxu0
      %v859 = vpop.f32.mrb[0].mxu0
      %v860 = vadd.f32 %v324, %v859
      %v861 = vpop.f32.mrb[0].mxu0
      %862 = vmatprep.mubr.bf16.mxu0 0
      %863 = vmatmul.mubr.bf16.gmra.mrb[0].mxu0 %v591
      %v864 = vpop.f32.mrb[0].mxu0
      %v865 = vadd.f32 %v324, %v864
      %v866 = vpop.f32.mrb[0].mxu0
      %v867 = vpop.f32.mrb[0].mxu0
      %v868 = vadd.f32 %v324, %v867
      %v869 = vpop.f32.mrb[0].mxu0
      %870 = vmatprep.mubr.bf16.mxu0 0
      %871 = vmatmul.mubr.bf16.gmra.mrb[0].mxu0 %v592
      %v872 = vpop.f32.mrb[0].mxu0
      %v873 = vadd.f32 %v324, %v872
      %v874 = vpop.f32.mrb[0].mxu0
      %v875 = vpop.f32.mrb[0].mxu0
      %v876 = vadd.f32 %v324, %v875
      %v877 = vpop.f32.mrb[0].mxu0
      %878 = vmatprep.mubr.bf16.mxu0 0
      %879 = vmatmul.mubr.bf16.gmra.mrb[0].mxu0 %v593
      %v880 = vpop.f32.mrb[0].mxu0
      %v881 = vadd.f32 %v324, %v880
      %v882 = vpop.f32.mrb[0].mxu0
      %v883 = vpop.f32.mrb[0].mxu0
      %v884 = vadd.f32 %v324, %v883
      %v885 = vpop.f32.mrb[0].mxu0
      %886 = vmatprep.mubr.bf16.mxu0 0
      %887 = vmatmul.mubr.bf16.gmra.mrb[0].mxu0 %v594
      %v888 = vpop.f32.mrb[0].mxu0
      %v889 = vadd.f32 %v324, %v888
      %v890 = vpop.f32.mrb[0].mxu0
      %v891 = vpop.f32.mrb[0].mxu0
      %v892 = vadd.f32 %v324, %v891
      %v893 = vpop.f32.mrb[0].mxu0
      %894 = vmatprep.mubr.bf16.mxu0 0
      %895 = vmatmul.mubr.bf16.gmra.mrb[0].mxu0 %v595
      %v896 = vpop.f32.mrb[0].mxu0
      %v897 = vadd.f32 %v324, %v896
      %v898 = vpop.f32.mrb[0].mxu0
      %v899 = vpop.f32.mrb[0].mxu0
      %v900 = vadd.f32 %v324, %v899
      %v901 = vpop.f32.mrb[0].mxu0
      %902 = vmatprep.mubr.bf16.mxu0 0
      %903 = vmatmul.mubr.bf16.gmra.mrb[0].mxu0 %v596
      %v904 = vpop.f32.mrb[0].mxu0
      %v905 = vadd.f32 %v324, %v904
      %v906 = vpop.f32.mrb[0].mxu0
      %v907 = vpop.f32.mrb[0].mxu0
      %v908 = vadd.f32 %v324, %v907
      %v909 = vpop.f32.mrb[0].mxu0
      %910 = vmatprep.mubr.bf16.mxu0 0
      %911 = vmatmul.mubr.bf16.gmra.mrb[0].mxu0 %v597
      %v912 = vpop.f32.mrb[0].mxu0
      %v913 = vadd.f32 %v324, %v912
      %v914 = vpop.f32.mrb[0].mxu0
      %v915 = vpop.f32.mrb[0].mxu0
      %v916 = vadd.f32 %v324, %v915
      %v917 = vpop.f32.mrb[0].mxu0
      %918 = vmatprep.mubr.bf16.mxu0 0
      %919 = vmatmul.mubr.bf16.gmra.mrb[0].mxu0 %v598
      %v920 = vpop.f32.mrb[0].mxu0
      %v921 = vadd.f32 %v324, %v920
      %v922 = vpop.f32.mrb[0].mxu0
      %v923 = vpop.f32.mrb[0].mxu0
      %v924 = vadd.f32 %v324, %v923
      %v925 = vpop.f32.mrb[0].mxu0
      %926 = vmatprep.mubr.bf16.mxu0 0
      %927 = vmatmul.mubr.bf16.gmra.mrb[0].mxu0 %v599
      %v928 = vpop.f32.mrb[0].mxu0
      %v929 = vadd.f32 %v324, %v928
      %v930 = vpop.f32.mrb[0].mxu0
      %v931 = vpop.f32.mrb[0].mxu0
      %v932 = vadd.f32 %v324, %v931
      %v933 = vpop.f32.mrb[0].mxu0
      %934 = vmatprep.mubr.bf16.mxu0 0
      %935 = vmatmul.mubr.bf16.gmra.mrb[0].mxu0 %v600
      %v936 = vpop.f32.mrb[0].mxu0
      %v937 = vadd.f32 %v324, %v936
      %v938 = vpop.f32.mrb[0].mxu0
      %v939 = vpop.f32.mrb[0].mxu0
      %v940 = vadd.f32 %v324, %v939
      %v941 = vpop.f32.mrb[0].mxu0
      %942 = vmatprep.mubr.bf16.mxu0 0
      %943 = vmatmul.mubr.bf16.gmra.mrb[0].mxu0 %v601
      %v944 = vpop.f32.mrb[0].mxu0
      %v945 = vadd.f32 %v324, %v944
      %v946 = vpop.f32.mrb[0].mxu0
      %v947 = vpop.f32.mrb[0].mxu0
      %v948 = vadd.f32 %v324, %v947
      %v949 = vpop.f32.mrb[0].mxu0
      %950 = vmatprep.mubr.bf16.mxu0 0
      %951 = vmatmul.mubr.bf16.gmra.mrb[0].mxu0 %v602
      %v952 = vpop.f32.mrb[0].mxu0
      %v953 = vadd.f32 %v324, %v952
      %v954 = vpop.f32.mrb[0].mxu0
      %v955 = vpop.f32.mrb[0].mxu0
      %v956 = vadd.f32 %v324, %v955
      %v957 = vpop.f32.mrb[0].mxu0
      %958 = vmatprep.mubr.bf16.mxu0 0
      %959 = vmatmul.mubr.bf16.gmra.mrb[0].mxu0 %v603
      %v960 = vpop.f32.mrb[0].mxu0
      %v961 = vadd.f32 %v324, %v960
      %v962 = vpop.f32.mrb[0].mxu0
      %v963 = vpop.f32.mrb[0].mxu0
      %v964 = vadd.f32 %v324, %v963
      %v965 = vpop.f32.mrb[0].mxu0
      %966 = vmatprep.mubr.bf16.mxu0 0
      %967 = vmatmul.mubr.bf16.gmra.mrb[0].mxu0 %v604
      %v968 = vpop.f32.mrb[0].mxu0
      %v969 = vadd.f32 %v324, %v968
      %v970 = vpop.f32.mrb[0].mxu0
      %v971 = vpop.f32.mrb[0].mxu0
      %v972 = vadd.f32 %v324, %v971
      %v973 = vpop.f32.mrb[0].mxu0
      %974 = vmatprep.mubr.bf16.mxu0 0
      %975 = vmatmul.mubr.bf16.gmra.mrb[0].mxu0 %v605
      %v976 = vpop.f32.mrb[0].mxu0
      %v977 = vadd.f32 %v324, %v976
      %v978 = vpop.f32.mrb[0].mxu0
      %v979 = vpop.f32.mrb[0].mxu0
      %v980 = vadd.f32 %v324, %v979
      %v981 = vpop.f32.mrb[0].mxu0
      %982 = vmatprep.mubr.bf16.mxu0 0
      %983 = vmatmul.mubr.bf16.gmra.mrb[0].mxu0 %v606
      %v984 = vpop.f32.mrb[0].mxu0
      %v985 = vadd.f32 %v324, %v984
      %v986 = vpop.f32.mrb[0].mxu0
      %v987 = vpop.f32.mrb[0].mxu0
      %v988 = vadd.f32 %v324, %v987
      %v989 = vpop.f32.mrb[0].mxu0
      %990 = vmatprep.mubr.bf16.mxu0 0
      %991 = vmatmul.mubr.bf16.gmra.mrb[0].mxu0 %v607
      %v992 = vpop.f32.mrb[0].mxu0
      %v993 = vadd.f32 %v324, %v992
      %v994 = vpop.f32.mrb[0].mxu0
      %v995 = vpop.f32.mrb[0].mxu0
      %v996 = vadd.f32 %v324, %v995
      %v997 = vpop.f32.mrb[0].mxu0
      %998 = vmatprep.mubr.bf16.mxu0 0
      %999 = vmatmul.mubr.bf16.gmra.mrb[0].mxu0 %v608
      %v1000 = vpop.f32.mrb[0].mxu0
      %v1001 = vadd.f32 %v324, %v1000
      %v1002 = vpop.f32.mrb[0].mxu0
      %v1003 = vpop.f32.mrb[0].mxu0
      %v1004 = vadd.f32 %v324, %v1003
      %v1005 = vpop.f32.mrb[0].mxu0
      %1006 = vmatprep.mubr.bf16.mxu0 0
      %1007 = vmatmul.mubr.bf16.gmra.mrb[0].mxu0 %v609
      %v1008 = vpop.f32.mrb[0].mxu0
      %v1009 = vadd.f32 %v324, %v1008
      %v1010 = vpop.f32.mrb[0].mxu0
      %v1011 = vpop.f32.mrb[0].mxu0
      %v1012 = vadd.f32 %v324, %v1011
      %v1013 = vpop.f32.mrb[0].mxu0
      %1014 = vmatprep.mubr.bf16.mxu0 0
      %1015 = vmatmul.mubr.bf16.gmra.mrb[0].mxu0 %v610
      %v1016 = vpop.f32.mrb[0].mxu0
      %v1017 = vadd.f32 %v324, %v1016
      %v1018 = vpop.f32.mrb[0].mxu0
      %v1019 = vpop.f32.mrb[0].mxu0
      %v1020 = vadd.f32 %v324, %v1019
      %v1021 = vpop.f32.mrb[0].mxu0
      %1022 = vmatprep.mubr.bf16.mxu0 0
      %1023 = vmatmul.mubr.bf16.gmra.mrb[0].mxu0 %v611
      %v1024 = vpop.f32.mrb[0].mxu0
      %v1025 = vadd.f32 %v324, %v1024
      %v1026 = vpop.f32.mrb[0].mxu0
      %v1027 = vpop.f32.mrb[0].mxu0
      %v1028 = vadd.f32 %v324, %v1027
      %v1029 = vpop.f32.mrb[0].mxu0
      %1030 = vmatprep.mubr.bf16.mxu0 0
      %1031 = vmatmul.mubr.bf16.gmra.mrb[0].mxu0 %v612
      %v1032 = vpop.f32.mrb[0].mxu0
      %v1033 = vadd.f32 %v324, %v1032
      %v1034 = vpop.f32.mrb[0].mxu0
      %v1035 = vpop.f32.mrb[0].mxu0
      %v1036 = vadd.f32 %v324, %v1035
      %v1037 = vpop.f32.mrb[0].mxu0
      %1038 = vmatprep.mubr.bf16.mxu0 0
      %1039 = vmatmul.mubr.bf16.gmra.mrb[0].mxu0 %v613
      %v1040 = vpop.f32.mrb[0].mxu0
      %v1041 = vadd.f32 %v324, %v1040
      %v1042 = vpop.f32.mrb[0].mxu0
      %v1043 = vpop.f32.mrb[0].mxu0
      %v1044 = vadd.f32 %v324, %v1043
      %v1045 = vpop.f32.mrb[0].mxu0
      %1046 = vmatprep.mubr.bf16.mxu0 0
      %1047 = vmatmul.mubr.bf16.gmra.mrb[0].mxu0 %v614
      %v1048 = vpop.f32.mrb[0].mxu0
      %v1049 = vadd.f32 %v324, %v1048
      %v1050 = vpop.f32.mrb[0].mxu0
      %v1051 = vpop.f32.mrb[0].mxu0
      %v1052 = vadd.f32 %v324, %v1051
      %v1053 = vpop.f32.mrb[0].mxu0
      %1054 = vmatprep.mubr.bf16.mxu0 0
      %1055 = vmatmul.mubr.bf16.gmra.mrb[0].mxu0 %v615
      %v1056 = vpop.f32.mrb[0].mxu0
      %v1057 = vadd.f32 %v324, %v1056
      %v1058 = vpop.f32.mrb[0].mxu0
      %v1059 = vpop.f32.mrb[0].mxu0
      %v1060 = vadd.f32 %v324, %v1059
      %v1061 = vpop.f32.mrb[0].mxu0
      %1062 = vmatprep.mubr.bf16.mxu0 0
      %1063 = vmatmul.mubr.bf16.gmra.mrb[0].mxu0 %v616
      %v1064 = vpop.f32.mrb[0].mxu0
      %v1065 = vadd.f32 %v324, %v1064
      %v1066 = vpop.f32.mrb[0].mxu0
      %v1067 = vpop.f32.mrb[0].mxu0
      %v1068 = vadd.f32 %v324, %v1067
      %v1069 = vpop.f32.mrb[0].mxu0
      %1070 = vmatprep.mubr.bf16.mxu0 0
      %1071 = vmatmul.mubr.bf16.gmra.mrb[0].mxu0 %v617
      %v1072 = vpop.f32.mrb[0].mxu0
      %v1073 = vadd.f32 %v324, %v1072
      %v1074 = vpop.f32.mrb[0].mxu0
      %v1075 = vpop.f32.mrb[0].mxu0
      %v1076 = vadd.f32 %v324, %v1075
      %v1077 = vpop.f32.mrb[0].mxu0
      %1078 = vmatprep.mubr.bf16.mxu0 0
      %1079 = vmatmul.mubr.bf16.gmra.mrb[0].mxu0 %v618
      %v1080 = vpop.f32.mrb[0].mxu0
      %v1081 = vadd.f32 %v324, %v1080
      %v1082 = vpop.f32.mrb[0].mxu0
      %v1083 = vpop.f32.mrb[0].mxu0
      %v1084 = vadd.f32 %v324, %v1083
      %v1085 = vpop.f32.mrb[0].mxu0
      %1086 = vmatprep.mubr.bf16.mxu0 0
      %1087 = vmatmul.mubr.bf16.gmra.mrb[0].mxu0 %v619
      %v1088 = vpop.f32.mrb[0].mxu0
      %v1089 = vadd.f32 %v324, %v1088
      %v1090 = vpop.f32.mrb[0].mxu0
      %v1091 = vpop.f32.mrb[0].mxu0
      %v1092 = vadd.f32 %v324, %v1091
      %v1093 = vpop.f32.mrb[0].mxu0
      %1094 = vmatprep.mubr.bf16.mxu0 0
      %1095 = vmatmul.mubr.bf16.gmra.mrb[0].mxu0 %v620
      %v1096 = vpop.f32.mrb[0].mxu0
      %v1097 = vadd.f32 %v324, %v1096
      %v1098 = vpop.f32.mrb[0].mxu0
      %v1099 = vpop.f32.mrb[0].mxu0
      %v1100 = vadd.f32 %v324, %v1099
      %v1101 = vpop.f32.mrb[0].mxu0
      %1102 = vmatprep.mubr.bf16.mxu0 0
      %1103 = vmatmul.mubr.bf16.gmra.mrb[0].mxu0 %v621
      %v1104 = vpop.f32.mrb[0].mxu0
      %v1105 = vadd.f32 %v324, %v1104
      %v1106 = vpop.f32.mrb[0].mxu0
      %v1107 = vpop.f32.mrb[0].mxu0
      %v1108 = vadd.f32 %v324, %v1107
      %v1109 = vpop.f32.mrb[0].mxu0
      %1110 = vmatprep.mubr.bf16.mxu0 0
      %1111 = vmatmul.mubr.bf16.gmra.mrb[0].mxu0 %v622
      %v1112 = vpop.f32.mrb[0].mxu0
      %v1113 = vadd.f32 %v324, %v1112
      %v1114 = vpop.f32.mrb[0].mxu0
      %v1115 = vpop.f32.mrb[0].mxu0
      %v1116 = vadd.f32 %v324, %v1115
      %v1117 = vpop.f32.mrb[0].mxu0
      %1118 = vmatprep.mubr.bf16.mxu0 0
      %1119 = vmatmul.mubr.bf16.gmra.mrb[0].mxu0 %v623
      %v1120 = vpop.f32.mrb[0].mxu0
      %v1121 = vadd.f32 %v324, %v1120
      %v1122 = vpop.f32.mrb[0].mxu0
      %v1123 = vpop.f32.mrb[0].mxu0
      %v1124 = vadd.f32 %v324, %v1123
      %v1125 = vpop.f32.mrb[0].mxu0
      %1126 = vmatprep.mubr.bf16.mxu0 0
      %1127 = vmatmul.mubr.bf16.gmra.mrb[0].mxu0 %v624
      %v1128 = vpop.f32.mrb[0].mxu0
      %v1129 = vadd.f32 %v324, %v1128
      %v1130 = vpop.f32.mrb[0].mxu0
      %v1131 = vpop.f32.mrb[0].mxu0
      %v1132 = vadd.f32 %v324, %v1131
      %v1133 = vpop.f32.mrb[0].mxu0
      %1134 = vmatprep.mubr.bf16.mxu0 0
      %1135 = vmatmul.mubr.bf16.gmra.mrb[0].mxu0 %v625
      %v1136 = vpop.f32.mrb[0].mxu0
      %v1137 = vadd.f32 %v324, %v1136
      %v1138 = vpop.f32.mrb[0].mxu0
      %v1139 = vpop.f32.mrb[0].mxu0
      %v1140 = vadd.f32 %v324, %v1139
      %v1141 = vpop.f32.mrb[0].mxu0
      %1142 = vmatprep.mubr.bf16.mxu0 0
      %1143 = vmatmul.mubr.bf16.gmra.mrb[0].mxu0 %v626
      %v1144 = vpop.f32.mrb[0].mxu0
      %v1145 = vadd.f32 %v324, %v1144
      %v1146 = vpop.f32.mrb[0].mxu0
      %v1147 = vpop.f32.mrb[0].mxu0
      %v1148 = vadd.f32 %v324, %v1147
      %v1149 = vpop.f32.mrb[0].mxu0
      %1150 = vmatprep.mubr.bf16.mxu0 0
      %1151 = vmatmul.mubr.bf16.gmra.mrb[0].mxu0 %v627
      %v1152 = vpop.f32.mrb[0].mxu0
      %v1153 = vadd.f32 %v324, %v1152
      %v1154 = vpop.f32.mrb[0].mxu0
      %v1155 = vpop.f32.mrb[0].mxu0
      %v1156 = vadd.f32 %v324, %v1155
      %v1157 = vpop.f32.mrb[0].mxu0
      %1158 = vmatprep.mubr.bf16.mxu0 0
      %1159 = vmatmul.mubr.bf16.gmra.mrb[0].mxu0 %v628
      %v1160 = vpop.f32.mrb[0].mxu0
      %v1161 = vadd.f32 %v324, %v1160
      %v1162 = vpop.f32.mrb[0].mxu0
      %v1163 = vpop.f32.mrb[0].mxu0
      %v1164 = vadd.f32 %v324, %v1163
      %v1165 = vpop.f32.mrb[0].mxu0
      %1166 = vmatprep.mubr.bf16.mxu0 0
      %1167 = vmatmul.mubr.bf16.gmra.mrb[0].mxu0 %v629
      %v1168 = vpop.f32.mrb[0].mxu0
      %v1169 = vadd.f32 %v324, %v1168
      %v1170 = vpop.f32.mrb[0].mxu0
      %v1171 = vpop.f32.mrb[0].mxu0
      %v1172 = vadd.f32 %v324, %v1171
      %v1173 = vpop.f32.mrb[0].mxu0
      %1174 = vmatprep.mubr.bf16.mxu0 0
      %1175 = vmatmul.mubr.bf16.gmra.mrb[0].mxu0 %v630
      %v1176 = vpop.f32.mrb[0].mxu0
      %v1177 = vadd.f32 %v324, %v1176
      %v1178 = vpop.f32.mrb[0].mxu0
      %v1179 = vpop.f32.mrb[0].mxu0
      %v1180 = vadd.f32 %v324, %v1179
      %v1181 = vpop.f32.mrb[0].mxu0
      %1182 = vmatprep.mubr.bf16.mxu0 0
      %1183 = vmatmul.mubr.bf16.gmra.mrb[0].mxu0 %v631
      %v1184 = vpop.f32.mrb[0].mxu0
      %v1185 = vadd.f32 %v324, %v1184
      %v1186 = vpop.f32.mrb[0].mxu0
      %v1187 = vpop.f32.mrb[0].mxu0
      %v1188 = vadd.f32 %v324, %v1187
      %v1189 = vpop.f32.mrb[0].mxu0
      %1190 = vmatprep.mubr.bf16.mxu0 0
      %1191 = vmatmul.mubr.bf16.gmra.mrb[0].mxu0 %v632
      %v1192 = vpop.f32.mrb[0].mxu0
      %v1193 = vadd.f32 %v324, %v1192
      %v1194 = vpop.f32.mrb[0].mxu0
      %v1195 = vpop.f32.mrb[0].mxu0
      %v1196 = vadd.f32 %v324, %v1195
      %v1197 = vpop.f32.mrb[0].mxu0
      %1198 = vmatprep.mubr.bf16.mxu0 0
      %1199 = vmatmul.mubr.bf16.gmra.mrb[0].mxu0 %v633
      %v1200 = vpop.f32.mrb[0].mxu0
      %v1201 = vadd.f32 %v324, %v1200
      %v1202 = vpop.f32.mrb[0].mxu0
      %v1203 = vpop.f32.mrb[0].mxu0
      %v1204 = vadd.f32 %v324, %v1203
      %v1205 = vpop.f32.mrb[0].mxu0
      %1206 = vmatprep.mubr.bf16.mxu0 0
      %1207 = vmatmul.mubr.bf16.gmra.mrb[0].mxu0 %v634
      %v1208 = vpop.f32.mrb[0].mxu0
      %v1209 = vadd.f32 %v324, %v1208
      %v1210 = vpop.f32.mrb[0].mxu0
      %v1211 = vpop.f32.mrb[0].mxu0
      %v1212 = vadd.f32 %v324, %v1211
      %v1213 = vpop.f32.mrb[0].mxu0
      %1214 = vmatprep.mubr.bf16.mxu0 0
      %1215 = vmatmul.mubr.bf16.gmra.mrb[0].mxu0 %v635
      %v1216 = vpop.f32.mrb[0].mxu0
      %v1217 = vadd.f32 %v324, %v1216
      %v1218 = vpop.f32.mrb[0].mxu0
      %v1219 = vpop.f32.mrb[0].mxu0
      %v1220 = vadd.f32 %v324, %v1219
      %v1221 = vpop.f32.mrb[0].mxu0
      %1222 = vmatprep.mubr.bf16.mxu0 0
      %1223 = vmatmul.mubr.bf16.gmra.mrb[0].mxu0 %v636
      %v1224 = vpop.f32.mrb[0].mxu0
      %v1225 = vadd.f32 %v324, %v1224
      %v1226 = vpop.f32.mrb[0].mxu0
      %v1227 = vpop.f32.mrb[0].mxu0
      %v1228 = vadd.f32 %v324, %v1227
      %v1229 = vpop.f32.mrb[0].mxu0
      %1230 = vmatprep.mubr.bf16.mxu0 0
      %1231 = vmatmul.mubr.bf16.gmra.mrb[0].mxu0 %v637
      %v1232 = vpop.f32.mrb[0].mxu0
      %v1233 = vadd.f32 %v324, %v1232
      %v1234 = vpop.f32.mrb[0].mxu0
      %v1235 = vpop.f32.mrb[0].mxu0
      %v1236 = vadd.f32 %v324, %v1235
      %v1237 = vpop.f32.mrb[0].mxu0
      %1238 = vmatprep.mubr.bf16.mxu0 0
      %1239 = vmatmul.mubr.bf16.gmra.mrb[0].mxu0 %v638
      %v1240 = vpop.f32.mrb[0].mxu0
      %v1241 = vadd.f32 %v324, %v1240
      %v1242 = vpop.f32.mrb[0].mxu0
      %v1243 = vpop.f32.mrb[0].mxu0
      %v1244 = vadd.f32 %v324, %v1243
      %v1245 = vpop.f32.mrb[0].mxu0
      %1246 = vmatprep.mubr.bf16.mxu0 0
      %1247 = vmatmul.mubr.bf16.gmra.mrb[0].mxu0 %v639
      %v1248 = vpop.f32.mrb[0].mxu0
      %v1249 = vadd.f32 %v324, %v1248
      %v1250 = vpop.f32.mrb[0].mxu0
      %v1251 = vpop.f32.mrb[0].mxu0
      %v1252 = vadd.f32 %v324, %v1251
      %v1253 = vpop.f32.mrb[0].mxu0
      %1254 = vmatprep.mubr.bf16.mxu0 0
      %1255 = vmatmul.mubr.bf16.gmra.mrb[0].mxu0 %v640
      %v1256 = vpop.f32.mrb[0].mxu0
      %v1257 = vadd.f32 %v324, %v1256
      %v1258 = vpop.f32.mrb[0].mxu0
      %v1259 = vpop.f32.mrb[0].mxu0
      %v1260 = vadd.f32 %v324, %v1259
      %v1261 = vpop.f32.mrb[0].mxu0
      %1262 = vmatprep.mubr.bf16.mxu0 0
      %1263 = vmatmul.mubr.bf16.gmra.mrb[0].mxu0 %v641
      %v1264 = vpop.f32.mrb[0].mxu0
      %v1265 = vadd.f32 %v324, %v1264
      %v1266 = vpop.f32.mrb[0].mxu0
      %v1267 = vpop.f32.mrb[0].mxu0
      %v1268 = vadd.f32 %v324, %v1267
      %v1269 = vpop.f32.mrb[0].mxu0
      %1270 = vmatprep.mubr.bf16.mxu0 0
      %1271 = vmatmul.mubr.bf16.gmra.mrb[0].mxu0 %v642
      %v1272 = vpop.f32.mrb[0].mxu0
      %v1273 = vadd.f32 %v324, %v1272
      %v1274 = vpop.f32.mrb[0].mxu0
      %v1275 = vpop.f32.mrb[0].mxu0
      %v1276 = vadd.f32 %v324, %v1275
      %v1277 = vpop.f32.mrb[0].mxu0
      %1278 = vmatprep.mubr.bf16.mxu0 0
      %1279 = vmatmul.mubr.bf16.gmra.mrb[0].mxu0 %v643
      %v1280 = vpop.f32.mrb[0].mxu0
      %v1281 = vadd.f32 %v324, %v1280
      %v1282 = vpop.f32.mrb[0].mxu0
      %v1283 = vpop.f32.mrb[0].mxu0
      %v1284 = vadd.f32 %v324, %v1283
      %v1285 = vpop.f32.mrb[0].mxu0
      %1286 = vmatprep.mubr.bf16.mxu0 0
      %1287 = vmatmul.mubr.bf16.gmra.mrb[0].mxu0 %v644
      %v1288 = vpop.f32.mrb[0].mxu0
      %v1289 = vadd.f32 %v324, %v1288
      %v1290 = vpop.f32.mrb[0].mxu0
      %v1291 = vpop.f32.mrb[0].mxu0
      %v1292 = vadd.f32 %v324, %v1291
      %v1293 = vpop.f32.mrb[0].mxu0
      %1294 = vmatprep.mubr.bf16.mxu0 0
      %1295 = vmatmul.mubr.bf16.gmra.mrb[0].mxu0 %v645
      %v1296 = vpop.f32.mrb[0].mxu0
      %v1297 = vadd.f32 %v324, %v1296
      %v1298 = vpop.f32.mrb[0].mxu0
      %v1299 = vpop.f32.mrb[0].mxu0
      %v1300 = vadd.f32 %v324, %v1299
      %v1301 = vpop.f32.mrb[0].mxu0
      %1302 = vdwg.mxu0
      %vm1303 = vcmp.gt.f32.partialorder %v793, 0.0
      %vm1304 = vcmp.gt.f32.partialorder %v796, 0.0
      %vm1305 = vcmp.gt.f32.partialorder %v801, 0.0
      %vm1306 = vcmp.gt.f32.partialorder %v804, 0.0
      %vm1307 = vcmp.gt.f32.partialorder %v809, 0.0
      %vm1308 = vcmp.gt.f32.partialorder %v812, 0.0
      %vm1309 = vcmp.gt.f32.partialorder %v817, 0.0
      %vm1310 = vcmp.gt.f32.partialorder %v820, 0.0
      %vm1311 = vcmp.gt.f32.partialorder %v825, 0.0
      %vm1312 = vcmp.gt.f32.partialorder %v828, 0.0
      %vm1313 = vcmp.gt.f32.partialorder %v833, 0.0
      %vm1314 = vcmp.gt.f32.partialorder %v836, 0.0
      %vm1315 = vcmp.gt.f32.partialorder %v841, 0.0
      %vm1316 = vcmp.gt.f32.partialorder %v844, 0.0
      %vm1317 = vcmp.gt.f32.partialorder %v849, 0.0
      %vm1318 = vcmp.gt.f32.partialorder %v852, 0.0
      %vm1319 = vcmp.gt.f32.partialorder %v857, 0.0
      %vm1320 = vcmp.gt.f32.partialorder %v860, 0.0
      %vm1321 = vcmp.gt.f32.partialorder %v865, 0.0
      %vm1322 = vcmp.gt.f32.partialorder %v868, 0.0
      %vm1323 = vcmp.gt.f32.partialorder %v873, 0.0
      %vm1324 = vcmp.gt.f32.partialorder %v876, 0.0
      %vm1325 = vcmp.gt.f32.partialorder %v881, 0.0
      %vm1326 = vcmp.gt.f32.partialorder %v884, 0.0
      %vm1327 = vcmp.gt.f32.partialorder %v889, 0.0
      %vm1328 = vcmp.gt.f32.partialorder %v892, 0.0
      %vm1329 = vcmp.gt.f32.partialorder %v897, 0.0
      %vm1330 = vcmp.gt.f32.partialorder %v900, 0.0
      %vm1331 = vcmp.gt.f32.partialorder %v905, 0.0
      %vm1332 = vcmp.gt.f32.partialorder %v908, 0.0
      %vm1333 = vcmp.gt.f32.partialorder %v913, 0.0
      %vm1334 = vcmp.gt.f32.partialorder %v916, 0.0
      %vm1335 = vcmp.gt.f32.partialorder %v921, 0.0
      %vm1336 = vcmp.gt.f32.partialorder %v924, 0.0
      %vm1337 = vcmp.gt.f32.partialorder %v929, 0.0
      %vm1338 = vcmp.gt.f32.partialorder %v932, 0.0
      %vm1339 = vcmp.gt.f32.partialorder %v937, 0.0
      %vm1340 = vcmp.gt.f32.partialorder %v940, 0.0
      %vm1341 = vcmp.gt.f32.partialorder %v945, 0.0
      %vm1342 = vcmp.gt.f32.partialorder %v948, 0.0
      %vm1343 = vcmp.gt.f32.partialorder %v953, 0.0
      %vm1344 = vcmp.gt.f32.partialorder %v956, 0.0
      %vm1345 = vcmp.gt.f32.partialorder %v961, 0.0
      %vm1346 = vcmp.gt.f32.partialorder %v964, 0.0
      %vm1347 = vcmp.gt.f32.partialorder %v969, 0.0
      %vm1348 = vcmp.gt.f32.partialorder %v972, 0.0
      %vm1349 = vcmp.gt.f32.partialorder %v977, 0.0
      %vm1350 = vcmp.gt.f32.partialorder %v980, 0.0
      %vm1351 = vcmp.gt.f32.partialorder %v985, 0.0
      %vm1352 = vcmp.gt.f32.partialorder %v988, 0.0
      %vm1353 = vcmp.gt.f32.partialorder %v993, 0.0
      %vm1354 = vcmp.gt.f32.partialorder %v996, 0.0
      %vm1355 = vcmp.gt.f32.partialorder %v1001, 0.0
      %vm1356 = vcmp.gt.f32.partialorder %v1004, 0.0
      %vm1357 = vcmp.gt.f32.partialorder %v1009, 0.0
      %vm1358 = vcmp.gt.f32.partialorder %v1012, 0.0
      %vm1359 = vcmp.gt.f32.partialorder %v1017, 0.0
      %vm1360 = vcmp.gt.f32.partialorder %v1020, 0.0
      %vm1361 = vcmp.gt.f32.partialorder %v1025, 0.0
      %vm1362 = vcmp.gt.f32.partialorder %v1028, 0.0
      %vm1363 = vcmp.gt.f32.partialorder %v1033, 0.0
      %vm1364 = vcmp.gt.f32.partialorder %v1036, 0.0
      %vm1365 = vcmp.gt.f32.partialorder %v1041, 0.0
      %vm1366 = vcmp.gt.f32.partialorder %v1044, 0.0
      %vm1367 = vcmp.gt.f32.partialorder %v1049, 0.0
      %vm1368 = vcmp.gt.f32.partialorder %v1052, 0.0
      %vm1369 = vcmp.gt.f32.partialorder %v1057, 0.0
      %vm1370 = vcmp.gt.f32.partialorder %v1060, 0.0
      %vm1371 = vcmp.gt.f32.partialorder %v1065, 0.0
      %vm1372 = vcmp.gt.f32.partialorder %v1068, 0.0
      %vm1373 = vcmp.gt.f32.partialorder %v1073, 0.0
      %vm1374 = vcmp.gt.f32.partialorder %v1076, 0.0
      %vm1375 = vcmp.gt.f32.partialorder %v1081, 0.0
      %vm1376 = vcmp.gt.f32.partialorder %v1084, 0.0
      %vm1377 = vcmp.gt.f32.partialorder %v1089, 0.0
      %vm1378 = vcmp.gt.f32.partialorder %v1092, 0.0
      %vm1379 = vcmp.gt.f32.partialorder %v1097, 0.0
      %vm1380 = vcmp.gt.f32.partialorder %v1100, 0.0
      %vm1381 = vcmp.gt.f32.partialorder %v1105, 0.0
      %vm1382 = vcmp.gt.f32.partialorder %v1108, 0.0
      %vm1383 = vcmp.gt.f32.partialorder %v1113, 0.0
      %vm1384 = vcmp.gt.f32.partialorder %v1116, 0.0
      %vm1385 = vcmp.gt.f32.partialorder %v1121, 0.0
      %vm1386 = vcmp.gt.f32.partialorder %v1124, 0.0
      %vm1387 = vcmp.gt.f32.partialorder %v1129, 0.0
      %vm1388 = vcmp.gt.f32.partialorder %v1132, 0.0
      %vm1389 = vcmp.gt.f32.partialorder %v1137, 0.0
      %vm1390 = vcmp.gt.f32.partialorder %v1140, 0.0
      %vm1391 = vcmp.gt.f32.partialorder %v1145, 0.0
      %vm1392 = vcmp.gt.f32.partialorder %v1148, 0.0
      %vm1393 = vcmp.gt.f32.partialorder %v1153, 0.0
      %vm1394 = vcmp.gt.f32.partialorder %v1156, 0.0
      %vm1395 = vcmp.gt.f32.partialorder %v1161, 0.0
      %vm1396 = vcmp.gt.f32.partialorder %v1164, 0.0
      %vm1397 = vcmp.gt.f32.partialorder %v1169, 0.0
      %vm1398 = vcmp.gt.f32.partialorder %v1172, 0.0
      %vm1399 = vcmp.gt.f32.partialorder %v1177, 0.0
      %vm1400 = vcmp.gt.f32.partialorder %v1180, 0.0
      %vm1401 = vcmp.gt.f32.partialorder %v1185, 0.0
      %vm1402 = vcmp.gt.f32.partialorder %v1188, 0.0
      %vm1403 = vcmp.gt.f32.partialorder %v1193, 0.0
      %vm1404 = vcmp.gt.f32.partialorder %v1196, 0.0
      %vm1405 = vcmp.gt.f32.partialorder %v1201, 0.0
      %vm1406 = vcmp.gt.f32.partialorder %v1204, 0.0
      %vm1407 = vcmp.gt.f32.partialorder %v1209, 0.0
      %vm1408 = vcmp.gt.f32.partialorder %v1212, 0.0
      %vm1409 = vcmp.gt.f32.partialorder %v1217, 0.0
      %vm1410 = vcmp.gt.f32.partialorder %v1220, 0.0
      %vm1411 = vcmp.gt.f32.partialorder %v1225, 0.0
      %vm1412 = vcmp.gt.f32.partialorder %v1228, 0.0
      %vm1413 = vcmp.gt.f32.partialorder %v1233, 0.0
      %vm1414 = vcmp.gt.f32.partialorder %v1236, 0.0
      %vm1415 = vcmp.gt.f32.partialorder %v1241, 0.0
      %vm1416 = vcmp.gt.f32.partialorder %v1244, 0.0
      %vm1417 = vcmp.gt.f32.partialorder %v1249, 0.0
      %vm1418 = vcmp.gt.f32.partialorder %v1252, 0.0
      %vm1419 = vcmp.gt.f32.partialorder %v1257, 0.0
      %vm1420 = vcmp.gt.f32.partialorder %v1260, 0.0
      %vm1421 = vcmp.gt.f32.partialorder %v1265, 0.0
      %vm1422 = vcmp.gt.f32.partialorder %v1268, 0.0
      %vm1423 = vcmp.gt.f32.partialorder %v1273, 0.0
      %vm1424 = vcmp.gt.f32.partialorder %v1276, 0.0
      %vm1425 = vcmp.gt.f32.partialorder %v1281, 0.0
      %vm1426 = vcmp.gt.f32.partialorder %v1284, 0.0
      %vm1427 = vcmp.gt.f32.partialorder %v1289, 0.0
      %vm1428 = vcmp.gt.f32.partialorder %v1292, 0.0
      %vm1429 = vcmp.gt.f32.partialorder %v1297, 0.0
      %vm1430 = vcmp.gt.f32.partialorder %v1300, 0.0
      %v1431 = vmul.f32 %v793, 0.2
      %v1432 = vmul.f32 %v796, 0.2
      %v1433 = vmul.f32 %v801, 0.2
      %v1434 = vmul.f32 %v804, 0.2
      %v1435 = vmul.f32 %v809, 0.2
      %v1436 = vmul.f32 %v812, 0.2
      %v1437 = vmul.f32 %v817, 0.2
      %v1438 = vmul.f32 %v820, 0.2
      %v1439 = vmul.f32 %v825, 0.2
      %v1440 = vmul.f32 %v828, 0.2
      %v1441 = vmul.f32 %v833, 0.2
      %v1442 = vmul.f32 %v836, 0.2
      %v1443 = vmul.f32 %v841, 0.2
      %v1444 = vmul.f32 %v844, 0.2
      %v1445 = vmul.f32 %v849, 0.2
      %v1446 = vmul.f32 %v852, 0.2
      %v1447 = vmul.f32 %v857, 0.2
      %v1448 = vmul.f32 %v860, 0.2
      %v1449 = vmul.f32 %v865, 0.2
      %v1450 = vmul.f32 %v868, 0.2
      %v1451 = vmul.f32 %v873, 0.2
      %v1452 = vmul.f32 %v876, 0.2
      %v1453 = vmul.f32 %v881, 0.2
      %v1454 = vmul.f32 %v884, 0.2
      %v1455 = vmul.f32 %v889, 0.2
      %v1456 = vmul.f32 %v892, 0.2
      %v1457 = vmul.f32 %v897, 0.2
      %v1458 = vmul.f32 %v900, 0.2
      %v1459 = vmul.f32 %v905, 0.2
      %v1460 = vmul.f32 %v908, 0.2
      %v1461 = vmul.f32 %v913, 0.2
      %v1462 = vmul.f32 %v916, 0.2
      %v1463 = vmul.f32 %v921, 0.2
      %v1464 = vmul.f32 %v924, 0.2
      %v1465 = vmul.f32 %v929, 0.2
      %v1466 = vmul.f32 %v932, 0.2
      %v1467 = vmul.f32 %v937, 0.2
      %v1468 = vmul.f32 %v940, 0.2
      %v1469 = vmul.f32 %v945, 0.2
      %v1470 = vmul.f32 %v948, 0.2
      %v1471 = vmul.f32 %v953, 0.2
      %v1472 = vmul.f32 %v956, 0.2
      %v1473 = vmul.f32 %v961, 0.2
      %v1474 = vmul.f32 %v964, 0.2
      %v1475 = vmul.f32 %v969, 0.2
      %v1476 = vmul.f32 %v972, 0.2
      %v1477 = vmul.f32 %v977, 0.2
      %v1478 = vmul.f32 %v980, 0.2
      %v1479 = vmul.f32 %v985, 0.2
      %v1480 = vmul.f32 %v988, 0.2
      %v1481 = vmul.f32 %v993, 0.2
      %v1482 = vmul.f32 %v996, 0.2
      %v1483 = vmul.f32 %v1001, 0.2
      %v1484 = vmul.f32 %v1004, 0.2
      %v1485 = vmul.f32 %v1009, 0.2
      %v1486 = vmul.f32 %v1012, 0.2
      %v1487 = vmul.f32 %v1017, 0.2
      %v1488 = vmul.f32 %v1020, 0.2
      %v1489 = vmul.f32 %v1025, 0.2
      %v1490 = vmul.f32 %v1028, 0.2
      %v1491 = vmul.f32 %v1033, 0.2
      %v1492 = vmul.f32 %v1036, 0.2
      %v1493 = vmul.f32 %v1041, 0.2
      %v1494 = vmul.f32 %v1044, 0.2
      %v1495 = vmul.f32 %v1049, 0.2
      %v1496 = vmul.f32 %v1052, 0.2
      %v1497 = vmul.f32 %v1057, 0.2
      %v1498 = vmul.f32 %v1060, 0.2
      %v1499 = vmul.f32 %v1065, 0.2
      %v1500 = vmul.f32 %v1068, 0.2
      %v1501 = vmul.f32 %v1073, 0.2
      %v1502 = vmul.f32 %v1076, 0.2
      %v1503 = vmul.f32 %v1081, 0.2
      %v1504 = vmul.f32 %v1084, 0.2
      %v1505 = vmul.f32 %v1089, 0.2
      %v1506 = vmul.f32 %v1092, 0.2
      %v1507 = vmul.f32 %v1097, 0.2
      %v1508 = vmul.f32 %v1100, 0.2
      %v1509 = vmul.f32 %v1105, 0.2
      %v1510 = vmul.f32 %v1108, 0.2
      %v1511 = vmul.f32 %v1113, 0.2
      %v1512 = vmul.f32 %v1116, 0.2
      %v1513 = vmul.f32 %v1121, 0.2
      %v1514 = vmul.f32 %v1124, 0.2
      %v1515 = vmul.f32 %v1129, 0.2
      %v1516 = vmul.f32 %v1132, 0.2
      %v1517 = vmul.f32 %v1137, 0.2
      %v1518 = vmul.f32 %v1140, 0.2
      %v1519 = vmul.f32 %v1145, 0.2
      %v1520 = vmul.f32 %v1148, 0.2
      %v1521 = vmul.f32 %v1153, 0.2
      %v1522 = vmul.f32 %v1156, 0.2
      %v1523 = vmul.f32 %v1161, 0.2
      %v1524 = vmul.f32 %v1164, 0.2
      %v1525 = vmul.f32 %v1169, 0.2
      %v1526 = vmul.f32 %v1172, 0.2
      %v1527 = vmul.f32 %v1177, 0.2
      %v1528 = vmul.f32 %v1180, 0.2
      %v1529 = vmul.f32 %v1185, 0.2
      %v1530 = vmul.f32 %v1188, 0.2
      %v1531 = vmul.f32 %v1193, 0.2
      %v1532 = vmul.f32 %v1196, 0.2
      %v1533 = vmul.f32 %v1201, 0.2
      %v1534 = vmul.f32 %v1204, 0.2
      %v1535 = vmul.f32 %v1209, 0.2
      %v1536 = vmul.f32 %v1212, 0.2
      %v1537 = vmul.f32 %v1217, 0.2
      %v1538 = vmul.f32 %v1220, 0.2
      %v1539 = vmul.f32 %v1225, 0.2
      %v1540 = vmul.f32 %v1228, 0.2
      %v1541 = vmul.f32 %v1233, 0.2
      %v1542 = vmul.f32 %v1236, 0.2
      %v1543 = vmul.f32 %v1241, 0.2
      %v1544 = vmul.f32 %v1244, 0.2
      %v1545 = vmul.f32 %v1249, 0.2
      %v1546 = vmul.f32 %v1252, 0.2
      %v1547 = vmul.f32 %v1257, 0.2
      %v1548 = vmul.f32 %v1260, 0.2
      %v1549 = vmul.f32 %v1265, 0.2
      %v1550 = vmul.f32 %v1268, 0.2
      %v1551 = vmul.f32 %v1273, 0.2
      %v1552 = vmul.f32 %v1276, 0.2
      %v1553 = vmul.f32 %v1281, 0.2
      %v1554 = vmul.f32 %v1284, 0.2
      %v1555 = vmul.f32 %v1289, 0.2
      %v1556 = vmul.f32 %v1292, 0.2
      %v1557 = vmul.f32 %v1297, 0.2
      %v1558 = vmul.f32 %v1300, 0.2
      %v1559 = vsel %vm1303, %v793, %v1431
      %v1560 = vsel %vm1304, %v796, %v1432
      %v1561 = vsel %vm1305, %v801, %v1433
      %v1562 = vsel %vm1306, %v804, %v1434
      %v1563 = vsel %vm1307, %v809, %v1435
      %v1564 = vsel %vm1308, %v812, %v1436
      %v1565 = vsel %vm1309, %v817, %v1437
      %v1566 = vsel %vm1310, %v820, %v1438
      %v1567 = vsel %vm1311, %v825, %v1439
      %v1568 = vsel %vm1312, %v828, %v1440
      %v1569 = vsel %vm1313, %v833, %v1441
      %v1570 = vsel %vm1314, %v836, %v1442
      %v1571 = vsel %vm1315, %v841, %v1443
      %v1572 = vsel %vm1316, %v844, %v1444
      %v1573 = vsel %vm1317, %v849, %v1445
      %v1574 = vsel %vm1318, %v852, %v1446
      %v1575 = vsel %vm1319, %v857, %v1447
      %v1576 = vsel %vm1320, %v860, %v1448
      %v1577 = vsel %vm1321, %v865, %v1449
      %v1578 = vsel %vm1322, %v868, %v1450
      %v1579 = vsel %vm1323, %v873, %v1451
      %v1580 = vsel %vm1324, %v876, %v1452
      %v1581 = vsel %vm1325, %v881, %v1453
      %v1582 = vsel %vm1326, %v884, %v1454
      %v1583 = vsel %vm1327, %v889, %v1455
      %v1584 = vsel %vm1328, %v892, %v1456
      %v1585 = vsel %vm1329, %v897, %v1457
      %v1586 = vsel %vm1330, %v900, %v1458
      %v1587 = vsel %vm1331, %v905, %v1459
      %v1588 = vsel %vm1332, %v908, %v1460
      %v1589 = vsel %vm1333, %v913, %v1461
      %v1590 = vsel %vm1334, %v916, %v1462
      %v1591 = vsel %vm1335, %v921, %v1463
      %v1592 = vsel %vm1336, %v924, %v1464
      %v1593 = vsel %vm1337, %v929, %v1465
      %v1594 = vsel %vm1338, %v932, %v1466
      %v1595 = vsel %vm1339, %v937, %v1467
      %v1596 = vsel %vm1340, %v940, %v1468
      %v1597 = vsel %vm1341, %v945, %v1469
      %v1598 = vsel %vm1342, %v948, %v1470
      %v1599 = vsel %vm1343, %v953, %v1471
      %v1600 = vsel %vm1344, %v956, %v1472
      %v1601 = vsel %vm1345, %v961, %v1473
      %v1602 = vsel %vm1346, %v964, %v1474
      %v1603 = vsel %vm1347, %v969, %v1475
      %v1604 = vsel %vm1348, %v972, %v1476
      %v1605 = vsel %vm1349, %v977, %v1477
      %v1606 = vsel %vm1350, %v980, %v1478
      %v1607 = vsel %vm1351, %v985, %v1479
      %v1608 = vsel %vm1352, %v988, %v1480
      %v1609 = vsel %vm1353, %v993, %v1481
      %v1610 = vsel %vm1354, %v996, %v1482
      %v1611 = vsel %vm1355, %v1001, %v1483
      %v1612 = vsel %vm1356, %v1004, %v1484
      %v1613 = vsel %vm1357, %v1009, %v1485
      %v1614 = vsel %vm1358, %v1012, %v1486
      %v1615 = vsel %vm1359, %v1017, %v1487
      %v1616 = vsel %vm1360, %v1020, %v1488
      %v1617 = vsel %vm1361, %v1025, %v1489
      %v1618 = vsel %vm1362, %v1028, %v1490
      %v1619 = vsel %vm1363, %v1033, %v1491
      %v1620 = vsel %vm1364, %v1036, %v1492
      %v1621 = vsel %vm1365, %v1041, %v1493
      %v1622 = vsel %vm1366, %v1044, %v1494
      %v1623 = vsel %vm1367, %v1049, %v1495
      %v1624 = vsel %vm1368, %v1052, %v1496
      %v1625 = vsel %vm1369, %v1057, %v1497
      %v1626 = vsel %vm1370, %v1060, %v1498
      %v1627 = vsel %vm1371, %v1065, %v1499
      %v1628 = vsel %vm1372, %v1068, %v1500
      %v1629 = vsel %vm1373, %v1073, %v1501
      %v1630 = vsel %vm1374, %v1076, %v1502
      %v1631 = vsel %vm1375, %v1081, %v1503
      %v1632 = vsel %vm1376, %v1084, %v1504
      %v1633 = vsel %vm1377, %v1089, %v1505
      %v1634 = vsel %vm1378, %v1092, %v1506
      %v1635 = vsel %vm1379, %v1097, %v1507
      %v1636 = vsel %vm1380, %v1100, %v1508
      %v1637 = vsel %vm1381, %v1105, %v1509
      %v1638 = vsel %vm1382, %v1108, %v1510
      %v1639 = vsel %vm1383, %v1113, %v1511
      %v1640 = vsel %vm1384, %v1116, %v1512
      %v1641 = vsel %vm1385, %v1121, %v1513
      %v1642 = vsel %vm1386, %v1124, %v1514
      %v1643 = vsel %vm1387, %v1129, %v1515
      %v1644 = vsel %vm1388, %v1132, %v1516
      %v1645 = vsel %vm1389, %v1137, %v1517
      %v1646 = vsel %vm1390, %v1140, %v1518
      %v1647 = vsel %vm1391, %v1145, %v1519
      %v1648 = vsel %vm1392, %v1148, %v1520
      %v1649 = vsel %vm1393, %v1153, %v1521
      %v1650 = vsel %vm1394, %v1156, %v1522
      %v1651 = vsel %vm1395, %v1161, %v1523
      %v1652 = vsel %vm1396, %v1164, %v1524
      %v1653 = vsel %vm1397, %v1169, %v1525
      %v1654 = vsel %vm1398, %v1172, %v1526
      %v1655 = vsel %vm1399, %v1177, %v1527
      %v1656 = vsel %vm1400, %v1180, %v1528
      %v1657 = vsel %vm1401, %v1185, %v1529
      %v1658 = vsel %vm1402, %v1188, %v1530
      %v1659 = vsel %vm1403, %v1193, %v1531
      %v1660 = vsel %vm1404, %v1196, %v1532
      %v1661 = vsel %vm1405, %v1201, %v1533
      %v1662 = vsel %vm1406, %v1204, %v1534
      %v1663 = vsel %vm1407, %v1209, %v1535
      %v1664 = vsel %vm1408, %v1212, %v1536
      %v1665 = vsel %vm1409, %v1217, %v1537
      %v1666 = vsel %vm1410, %v1220, %v1538
      %v1667 = vsel %vm1411, %v1225, %v1539
      %v1668 = vsel %vm1412, %v1228, %v1540
      %v1669 = vsel %vm1413, %v1233, %v1541
      %v1670 = vsel %vm1414, %v1236, %v1542
      %v1671 = vsel %vm1415, %v1241, %v1543
      %v1672 = vsel %vm1416, %v1244, %v1544
      %v1673 = vsel %vm1417, %v1249, %v1545
      %v1674 = vsel %vm1418, %v1252, %v1546
      %v1675 = vsel %vm1419, %v1257, %v1547
      %v1676 = vsel %vm1420, %v1260, %v1548
      %v1677 = vsel %vm1421, %v1265, %v1549
      %v1678 = vsel %vm1422, %v1268, %v1550
      %v1679 = vsel %vm1423, %v1273, %v1551
      %v1680 = vsel %vm1424, %v1276, %v1552
      %v1681 = vsel %vm1425, %v1281, %v1553
      %v1682 = vsel %vm1426, %v1284, %v1554
      %v1683 = vsel %vm1427, %v1289, %v1555
      %v1684 = vsel %vm1428, %v1292, %v1556
      %v1685 = vsel %vm1429, %v1297, %v1557
      %v1686 = vsel %vm1430, %v1300, %v1558
      %v1687 = vpack.c.bf16 %v1560, %v1559
      %v1688 = vpack.c.bf16 %v1562, %v1561
      %v1689 = vpack.c.bf16 %v1564, %v1563
      %v1690 = vpack.c.bf16 %v1566, %v1565
      %v1691 = vpack.c.bf16 %v1568, %v1567
      %v1692 = vpack.c.bf16 %v1570, %v1569
      %v1693 = vpack.c.bf16 %v1572, %v1571
      %v1694 = vpack.c.bf16 %v1574, %v1573
      %v1695 = vpack.c.bf16 %v1576, %v1575
      %v1696 = vpack.c.bf16 %v1578, %v1577
      %v1697 = vpack.c.bf16 %v1580, %v1579
      %v1698 = vpack.c.bf16 %v1582, %v1581
      %v1699 = vpack.c.bf16 %v1584, %v1583
      %v1700 = vpack.c.bf16 %v1586, %v1585
      %v1701 = vpack.c.bf16 %v1588, %v1587
      %v1702 = vpack.c.bf16 %v1590, %v1589
      %v1703 = vpack.c.bf16 %v1592, %v1591
      %v1704 = vpack.c.bf16 %v1594, %v1593
      %v1705 = vpack.c.bf16 %v1596, %v1595
      %v1706 = vpack.c.bf16 %v1598, %v1597
      %v1707 = vpack.c.bf16 %v1600, %v1599
      %v1708 = vpack.c.bf16 %v1602, %v1601
      %v1709 = vpack.c.bf16 %v1604, %v1603
      %v1710 = vpack.c.bf16 %v1606, %v1605
      %v1711 = vpack.c.bf16 %v1608, %v1607
      %v1712 = vpack.c.bf16 %v1610, %v1609
      %v1713 = vpack.c.bf16 %v1612, %v1611
      %v1714 = vpack.c.bf16 %v1614, %v1613
      %v1715 = vpack.c.bf16 %v1616, %v1615
      %v1716 = vpack.c.bf16 %v1618, %v1617
      %v1717 = vpack.c.bf16 %v1620, %v1619
      %v1718 = vpack.c.bf16 %v1622, %v1621
      %v1719 = vpack.c.bf16 %v1624, %v1623
      %v1720 = vpack.c.bf16 %v1626, %v1625
      %v1721 = vpack.c.bf16 %v1628, %v1627
      %v1722 = vpack.c.bf16 %v1630, %v1629
      %v1723 = vpack.c.bf16 %v1632, %v1631
      %v1724 = vpack.c.bf16 %v1634, %v1633
      %v1725 = vpack.c.bf16 %v1636, %v1635
      %v1726 = vpack.c.bf16 %v1638, %v1637
      %v1727 = vpack.c.bf16 %v1640, %v1639
      %v1728 = vpack.c.bf16 %v1642, %v1641
      %v1729 = vpack.c.bf16 %v1644, %v1643
      %v1730 = vpack.c.bf16 %v1646, %v1645
      %v1731 = vpack.c.bf16 %v1648, %v1647
      %v1732 = vpack.c.bf16 %v1650, %v1649
      %v1733 = vpack.c.bf16 %v1652, %v1651
      %v1734 = vpack.c.bf16 %v1654, %v1653
      %v1735 = vpack.c.bf16 %v1656, %v1655
      %v1736 = vpack.c.bf16 %v1658, %v1657
      %v1737 = vpack.c.bf16 %v1660, %v1659
      %v1738 = vpack.c.bf16 %v1662, %v1661
      %v1739 = vpack.c.bf16 %v1664, %v1663
      %v1740 = vpack.c.bf16 %v1666, %v1665
      %v1741 = vpack.c.bf16 %v1668, %v1667
      %v1742 = vpack.c.bf16 %v1670, %v1669
      %v1743 = vpack.c.bf16 %v1672, %v1671
      %v1744 = vpack.c.bf16 %v1674, %v1673
      %v1745 = vpack.c.bf16 %v1676, %v1675
      %v1746 = vpack.c.bf16 %v1678, %v1677
      %v1747 = vpack.c.bf16 %v1680, %v1679
      %v1748 = vpack.c.bf16 %v1682, %v1681
      %v1749 = vpack.c.bf16 %v1684, %v1683
      %v1750 = vpack.c.bf16 %v1686, %v1685
      %v1815 = vunpack.c.l.b16 %v1687
      %v1816 = vunpack.c.h.b16 %v1687
      %v1817 = vunpack.c.l.b16 %v1688
      %v1818 = vunpack.c.h.b16 %v1688
      %v1819 = vunpack.c.l.b16 %v1689
      %v1820 = vunpack.c.h.b16 %v1689
      %v1821 = vunpack.c.l.b16 %v1690
      %v1822 = vunpack.c.h.b16 %v1690
      %v1823 = vunpack.c.l.b16 %v1691
      %v1824 = vunpack.c.h.b16 %v1691
      %v1825 = vunpack.c.l.b16 %v1692
      %v1826 = vunpack.c.h.b16 %v1692
      %v1827 = vunpack.c.l.b16 %v1693
      %v1828 = vunpack.c.h.b16 %v1693
      %v1829 = vunpack.c.l.b16 %v1694
      %v1830 = vunpack.c.h.b16 %v1694
      %v1831 = vunpack.c.l.b16 %v1695
      %v1832 = vunpack.c.h.b16 %v1695
      %v1833 = vunpack.c.l.b16 %v1696
      %v1834 = vunpack.c.h.b16 %v1696
      %v1835 = vunpack.c.l.b16 %v1697
      %v1836 = vunpack.c.h.b16 %v1697
      %v1837 = vunpack.c.l.b16 %v1698
      %v1838 = vunpack.c.h.b16 %v1698
      %v1839 = vunpack.c.l.b16 %v1699
      %v1840 = vunpack.c.h.b16 %v1699
      %v1841 = vunpack.c.l.b16 %v1700
      %v1842 = vunpack.c.h.b16 %v1700
      %v1843 = vunpack.c.l.b16 %v1701
      %v1844 = vunpack.c.h.b16 %v1701
      %v1845 = vunpack.c.l.b16 %v1702
      %v1846 = vunpack.c.h.b16 %v1702
      %v1847 = vunpack.c.l.b16 %v1703
      %v1848 = vunpack.c.h.b16 %v1703
      %v1849 = vunpack.c.l.b16 %v1704
      %v1850 = vunpack.c.h.b16 %v1704
      %v1851 = vunpack.c.l.b16 %v1705
      %v1852 = vunpack.c.h.b16 %v1705
      %v1853 = vunpack.c.l.b16 %v1706
      %v1854 = vunpack.c.h.b16 %v1706
      %v1855 = vunpack.c.l.b16 %v1707
      %v1856 = vunpack.c.h.b16 %v1707
      %v1857 = vunpack.c.l.b16 %v1708
      %v1858 = vunpack.c.h.b16 %v1708
      %v1859 = vunpack.c.l.b16 %v1709
      %v1860 = vunpack.c.h.b16 %v1709
      %v1861 = vunpack.c.l.b16 %v1710
      %v1862 = vunpack.c.h.b16 %v1710
      %v1863 = vunpack.c.l.b16 %v1711
      %v1864 = vunpack.c.h.b16 %v1711
      %v1865 = vunpack.c.l.b16 %v1712
      %v1866 = vunpack.c.h.b16 %v1712
      %v1867 = vunpack.c.l.b16 %v1713
      %v1868 = vunpack.c.h.b16 %v1713
      %v1869 = vunpack.c.l.b16 %v1714
      %v1870 = vunpack.c.h.b16 %v1714
      %v1871 = vunpack.c.l.b16 %v1715
      %v1872 = vunpack.c.h.b16 %v1715
      %v1873 = vunpack.c.l.b16 %v1716
      %v1874 = vunpack.c.h.b16 %v1716
      %v1875 = vunpack.c.l.b16 %v1717
      %v1876 = vunpack.c.h.b16 %v1717
      %v1877 = vunpack.c.l.b16 %v1718
      %v1878 = vunpack.c.h.b16 %v1718
      %v1879 = vunpack.c.l.b16 %v1719
      %v1880 = vunpack.c.h.b16 %v1719
      %v1881 = vunpack.c.l.b16 %v1720
      %v1882 = vunpack.c.h.b16 %v1720
      %v1883 = vunpack.c.l.b16 %v1721
      %v1884 = vunpack.c.h.b16 %v1721
      %v1885 = vunpack.c.l.b16 %v1722
      %v1886 = vunpack.c.h.b16 %v1722
      %v1887 = vunpack.c.l.b16 %v1723
      %v1888 = vunpack.c.h.b16 %v1723
      %v1889 = vunpack.c.l.b16 %v1724
      %v1890 = vunpack.c.h.b16 %v1724
      %v1891 = vunpack.c.l.b16 %v1725
      %v1892 = vunpack.c.h.b16 %v1725
      %v1893 = vunpack.c.l.b16 %v1726
      %v1894 = vunpack.c.h.b16 %v1726
      %v1895 = vunpack.c.l.b16 %v1727
      %v1896 = vunpack.c.h.b16 %v1727
      %v1897 = vunpack.c.l.b16 %v1728
      %v1898 = vunpack.c.h.b16 %v1728
      %v1899 = vunpack.c.l.b16 %v1729
      %v1900 = vunpack.c.h.b16 %v1729
      %v1901 = vunpack.c.l.b16 %v1730
      %v1902 = vunpack.c.h.b16 %v1730
      %v1903 = vunpack.c.l.b16 %v1731
      %v1904 = vunpack.c.h.b16 %v1731
      %v1905 = vunpack.c.l.b16 %v1732
      %v1906 = vunpack.c.h.b16 %v1732
      %v1907 = vunpack.c.l.b16 %v1733
      %v1908 = vunpack.c.h.b16 %v1733
      %v1909 = vunpack.c.l.b16 %v1734
      %v1910 = vunpack.c.h.b16 %v1734
      %v1911 = vunpack.c.l.b16 %v1735
      %v1912 = vunpack.c.h.b16 %v1735
      %v1913 = vunpack.c.l.b16 %v1736
      %v1914 = vunpack.c.h.b16 %v1736
      %v1915 = vunpack.c.l.b16 %v1737
      %v1916 = vunpack.c.h.b16 %v1737
      %v1917 = vunpack.c.l.b16 %v1738
      %v1918 = vunpack.c.h.b16 %v1738
      %v1919 = vunpack.c.l.b16 %v1739
      %v1920 = vunpack.c.h.b16 %v1739
      %v1921 = vunpack.c.l.b16 %v1740
      %v1922 = vunpack.c.h.b16 %v1740
      %v1923 = vunpack.c.l.b16 %v1741
      %v1924 = vunpack.c.h.b16 %v1741
      %v1925 = vunpack.c.l.b16 %v1742
      %v1926 = vunpack.c.h.b16 %v1742
      %v1927 = vunpack.c.l.b16 %v1743
      %v1928 = vunpack.c.h.b16 %v1743
      %v1929 = vunpack.c.l.b16 %v1744
      %v1930 = vunpack.c.h.b16 %v1744
      %v1931 = vunpack.c.l.b16 %v1745
      %v1932 = vunpack.c.h.b16 %v1745
      %v1933 = vunpack.c.l.b16 %v1746
      %v1934 = vunpack.c.h.b16 %v1746
      %v1935 = vunpack.c.l.b16 %v1747
      %v1936 = vunpack.c.h.b16 %v1747
      %v1937 = vunpack.c.l.b16 %v1748
      %v1938 = vunpack.c.h.b16 %v1748
      %v1939 = vunpack.c.l.b16 %v1749
      %v1940 = vunpack.c.h.b16 %v1749
      %v1941 = vunpack.c.l.b16 %v1750
      %v1942 = vunpack.c.h.b16 %v1750
      %v1943 = vpack.c.b16 %v1815, %v1815
      %v1944 = vpack.c.b16 %v1816, %v1816
      %v1945 = vpack.c.b16 %v1817, %v1817
      %v1946 = vpack.c.b16 %v1818, %v1818
      %v1947 = vpack.c.b16 %v1819, %v1819
      %v1948 = vpack.c.b16 %v1820, %v1820
      %v1949 = vpack.c.b16 %v1821, %v1821
      %v1950 = vpack.c.b16 %v1822, %v1822
      %v1951 = vpack.c.b16 %v1823, %v1823
      %v1952 = vpack.c.b16 %v1824, %v1824
      %v1953 = vpack.c.b16 %v1825, %v1825
      %v1954 = vpack.c.b16 %v1826, %v1826
      %v1955 = vpack.c.b16 %v1827, %v1827
      %v1956 = vpack.c.b16 %v1828, %v1828
      %v1957 = vpack.c.b16 %v1829, %v1829
      %v1958 = vpack.c.b16 %v1830, %v1830
      %v1959 = vpack.c.b16 %v1831, %v1831
      %v1960 = vpack.c.b16 %v1832, %v1832
      %v1961 = vpack.c.b16 %v1833, %v1833
      %v1962 = vpack.c.b16 %v1834, %v1834
      %v1963 = vpack.c.b16 %v1835, %v1835
      %v1964 = vpack.c.b16 %v1836, %v1836
      %v1965 = vpack.c.b16 %v1837, %v1837
      %v1966 = vpack.c.b16 %v1838, %v1838
      %v1967 = vpack.c.b16 %v1839, %v1839
      %v1968 = vpack.c.b16 %v1840, %v1840
      %v1969 = vpack.c.b16 %v1841, %v1841
      %v1970 = vpack.c.b16 %v1842, %v1842
      %v1971 = vpack.c.b16 %v1843, %v1843
      %v1972 = vpack.c.b16 %v1844, %v1844
      %v1973 = vpack.c.b16 %v1845, %v1845
      %v1974 = vpack.c.b16 %v1846, %v1846
      %v1975 = vpack.c.b16 %v1847, %v1847
      %v1976 = vpack.c.b16 %v1848, %v1848
      %v1977 = vpack.c.b16 %v1849, %v1849
      %v1978 = vpack.c.b16 %v1850, %v1850
      %v1979 = vpack.c.b16 %v1851, %v1851
      %v1980 = vpack.c.b16 %v1852, %v1852
      %v1981 = vpack.c.b16 %v1853, %v1853
      %v1982 = vpack.c.b16 %v1854, %v1854
      %v1983 = vpack.c.b16 %v1855, %v1855
      %v1984 = vpack.c.b16 %v1856, %v1856
      %v1985 = vpack.c.b16 %v1857, %v1857
      %v1986 = vpack.c.b16 %v1858, %v1858
      %v1987 = vpack.c.b16 %v1859, %v1859
      %v1988 = vpack.c.b16 %v1860, %v1860
      %v1989 = vpack.c.b16 %v1861, %v1861
      %v1990 = vpack.c.b16 %v1862, %v1862
      %v1991 = vpack.c.b16 %v1863, %v1863
      %v1992 = vpack.c.b16 %v1864, %v1864
      %v1993 = vpack.c.b16 %v1865, %v1865
      %v1994 = vpack.c.b16 %v1866, %v1866
      %v1995 = vpack.c.b16 %v1867, %v1867
      %v1996 = vpack.c.b16 %v1868, %v1868
      %v1997 = vpack.c.b16 %v1869, %v1869
      %v1998 = vpack.c.b16 %v1870, %v1870
      %v1999 = vpack.c.b16 %v1871, %v1871
      %v2000 = vpack.c.b16 %v1872, %v1872
      %v2001 = vpack.c.b16 %v1873, %v1873
      %v2002 = vpack.c.b16 %v1874, %v1874
      %v2003 = vpack.c.b16 %v1875, %v1875
      %v2004 = vpack.c.b16 %v1876, %v1876
      %v2005 = vpack.c.b16 %v1877, %v1877
      %v2006 = vpack.c.b16 %v1878, %v1878
      %v2007 = vpack.c.b16 %v1879, %v1879
      %v2008 = vpack.c.b16 %v1880, %v1880
      %v2009 = vpack.c.b16 %v1881, %v1881
      %v2010 = vpack.c.b16 %v1882, %v1882
      %v2011 = vpack.c.b16 %v1883, %v1883
      %v2012 = vpack.c.b16 %v1884, %v1884
      %v2013 = vpack.c.b16 %v1885, %v1885
      %v2014 = vpack.c.b16 %v1886, %v1886
      %v2015 = vpack.c.b16 %v1887, %v1887
      %v2016 = vpack.c.b16 %v1888, %v1888
      %v2017 = vpack.c.b16 %v1889, %v1889
      %v2018 = vpack.c.b16 %v1890, %v1890
      %v2019 = vpack.c.b16 %v1891, %v1891
      %v2020 = vpack.c.b16 %v1892, %v1892
      %v2021 = vpack.c.b16 %v1893, %v1893
      %v2022 = vpack.c.b16 %v1894, %v1894
      %v2023 = vpack.c.b16 %v1895, %v1895
      %v2024 = vpack.c.b16 %v1896, %v1896
      %v2025 = vpack.c.b16 %v1897, %v1897
      %v2026 = vpack.c.b16 %v1898, %v1898
      %v2027 = vpack.c.b16 %v1899, %v1899
      %v2028 = vpack.c.b16 %v1900, %v1900
      %v2029 = vpack.c.b16 %v1901, %v1901
      %v2030 = vpack.c.b16 %v1902, %v1902
      %v2031 = vpack.c.b16 %v1903, %v1903
      %v2032 = vpack.c.b16 %v1904, %v1904
      %v2033 = vpack.c.b16 %v1905, %v1905
      %v2034 = vpack.c.b16 %v1906, %v1906
      %v2035 = vpack.c.b16 %v1907, %v1907
      %v2036 = vpack.c.b16 %v1908, %v1908
      %v2037 = vpack.c.b16 %v1909, %v1909
      %v2038 = vpack.c.b16 %v1910, %v1910
      %v2039 = vpack.c.b16 %v1911, %v1911
      %v2040 = vpack.c.b16 %v1912, %v1912
      %v2041 = vpack.c.b16 %v1913, %v1913
      %v2042 = vpack.c.b16 %v1914, %v1914
      %v2043 = vpack.c.b16 %v1915, %v1915
      %v2044 = vpack.c.b16 %v1916, %v1916
      %v2045 = vpack.c.b16 %v1917, %v1917
      %v2046 = vpack.c.b16 %v1918, %v1918
      %v2047 = vpack.c.b16 %v1919, %v1919
      %v2048 = vpack.c.b16 %v1920, %v1920
      %v2049 = vpack.c.b16 %v1921, %v1921
      %v2050 = vpack.c.b16 %v1922, %v1922
      %v2051 = vpack.c.b16 %v1923, %v1923
      %v2052 = vpack.c.b16 %v1924, %v1924
      %v2053 = vpack.c.b16 %v1925, %v1925
      %v2054 = vpack.c.b16 %v1926, %v1926
      %v2055 = vpack.c.b16 %v1927, %v1927
      %v2056 = vpack.c.b16 %v1928, %v1928
      %v2057 = vpack.c.b16 %v1929, %v1929
      %v2058 = vpack.c.b16 %v1930, %v1930
      %v2059 = vpack.c.b16 %v1931, %v1931
      %v2060 = vpack.c.b16 %v1932, %v1932
      %v2061 = vpack.c.b16 %v1933, %v1933
      %v2062 = vpack.c.b16 %v1934, %v1934
      %v2063 = vpack.c.b16 %v1935, %v1935
      %v2064 = vpack.c.b16 %v1936, %v1936
      %v2065 = vpack.c.b16 %v1937, %v1937
      %v2066 = vpack.c.b16 %v1938, %v1938
      %v2067 = vpack.c.b16 %v1939, %v1939
      %v2068 = vpack.c.b16 %v1940, %v1940
      %v2069 = vpack.c.b16 %v1941, %v1941
      %v2070 = vpack.c.b16 %v1942, %v1942
      %2199 = vst [vmem:[%s172] sm:$0xf] %v1943
      %2200 = vst [vmem:[%s172 + $0x4] sm:$0xf] %v1944
      %2201 = vst [vmem:[%s172 + $0x8] sm:$0xf] %v1945
      %2202 = vst [vmem:[%s172 + $0xc] sm:$0xf] %v1946
      %2203 = vst [vmem:[%s172 + $0x10] sm:$0xf] %v1947
      %2204 = vst [vmem:[%s172 + $0x14] sm:$0xf] %v1948
      %2205 = vst [vmem:[%s172 + $0x18] sm:$0xf] %v1949
      %2206 = vst [vmem:[%s172 + $0x1c] sm:$0xf] %v1950
      %2207 = vst [vmem:[%s172 + $0x20] sm:$0xf] %v1951
      %2208 = vst [vmem:[%s172 + $0x24] sm:$0xf] %v1952
      %2209 = vst [vmem:[%s172 + $0x28] sm:$0xf] %v1953
      %2210 = vst [vmem:[%s172 + $0x2c] sm:$0xf] %v1954
      %2211 = vst [vmem:[%s172 + $0x30] sm:$0xf] %v1955
      %2212 = vst [vmem:[%s172 + $0x34] sm:$0xf] %v1956
      %2213 = vst [vmem:[%s172 + $0x38] sm:$0xf] %v1957
      %2214 = vst [vmem:[%s172 + $0x3c] sm:$0xf] %v1958
      %2215 = vst [vmem:[%s172 + $0x40] sm:$0xf] %v1959
      %2216 = vst [vmem:[%s172 + $0x44] sm:$0xf] %v1960
      %2217 = vst [vmem:[%s172 + $0x48] sm:$0xf] %v1961
      %2218 = vst [vmem:[%s172 + $0x4c] sm:$0xf] %v1962
      %2219 = vst [vmem:[%s172 + $0x50] sm:$0xf] %v1963
      %2220 = vst [vmem:[%s172 + $0x54] sm:$0xf] %v1964
      %2221 = vst [vmem:[%s172 + $0x58] sm:$0xf] %v1965
      %2222 = vst [vmem:[%s172 + $0x5c] sm:$0xf] %v1966
      %2223 = vst [vmem:[%s172 + $0x60] sm:$0xf] %v1967
      %2224 = vst [vmem:[%s172 + $0x64] sm:$0xf] %v1968
      %2225 = vst [vmem:[%s172 + $0x68] sm:$0xf] %v1969
      %2226 = vst [vmem:[%s172 + $0x6c] sm:$0xf] %v1970
      %2227 = vst [vmem:[%s172 + $0x70] sm:$0xf] %v1971
      %2228 = vst [vmem:[%s172 + $0x74] sm:$0xf] %v1972
      %2229 = vst [vmem:[%s172 + $0x78] sm:$0xf] %v1973
      %2230 = vst [vmem:[%s172 + $0x7c] sm:$0xf] %v1974
      %2231 = vst [vmem:[%s172 + $0x80] sm:$0xf] %v1975
      %2232 = vst [vmem:[%s172 + $0x84] sm:$0xf] %v1976
      %2233 = vst [vmem:[%s172 + $0x88] sm:$0xf] %v1977
      %2234 = vst [vmem:[%s172 + $0x8c] sm:$0xf] %v1978
      %2235 = vst [vmem:[%s172 + $0x90] sm:$0xf] %v1979
      %2236 = vst [vmem:[%s172 + $0x94] sm:$0xf] %v1980
      %2237 = vst [vmem:[%s172 + $0x98] sm:$0xf] %v1981
      %2238 = vst [vmem:[%s172 + $0x9c] sm:$0xf] %v1982
      %2239 = vst [vmem:[%s172 + $0xa0] sm:$0xf] %v1983
      %2240 = vst [vmem:[%s172 + $0xa4] sm:$0xf] %v1984
      %2241 = vst [vmem:[%s172 + $0xa8] sm:$0xf] %v1985
      %2242 = vst [vmem:[%s172 + $0xac] sm:$0xf] %v1986
      %2243 = vst [vmem:[%s172 + $0xb0] sm:$0xf] %v1987
      %2244 = vst [vmem:[%s172 + $0xb4] sm:$0xf] %v1988
      %2245 = vst [vmem:[%s172 + $0xb8] sm:$0xf] %v1989
      %2246 = vst [vmem:[%s172 + $0xbc] sm:$0xf] %v1990
      %2247 = vst [vmem:[%s172 + $0xc0] sm:$0xf] %v1991
      %2248 = vst [vmem:[%s172 + $0xc4] sm:$0xf] %v1992
      %2249 = vst [vmem:[%s172 + $0xc8] sm:$0xf] %v1993
      %2250 = vst [vmem:[%s172 + $0xcc] sm:$0xf] %v1994
      %2251 = vst [vmem:[%s172 + $0xd0] sm:$0xf] %v1995
      %2252 = vst [vmem:[%s172 + $0xd4] sm:$0xf] %v1996
      %2253 = vst [vmem:[%s172 + $0xd8] sm:$0xf] %v1997
      %2254 = vst [vmem:[%s172 + $0xdc] sm:$0xf] %v1998
      %2255 = vst [vmem:[%s172 + $0xe0] sm:$0xf] %v1999
      %2256 = vst [vmem:[%s172 + $0xe4] sm:$0xf] %v2000
      %2257 = vst [vmem:[%s172 + $0xe8] sm:$0xf] %v2001
      %2258 = vst [vmem:[%s172 + $0xec] sm:$0xf] %v2002
      %2259 = vst [vmem:[%s172 + $0xf0] sm:$0xf] %v2003
      %2260 = vst [vmem:[%s172 + $0xf4] sm:$0xf] %v2004
      %2261 = vst [vmem:[%s172 + $0xf8] sm:$0xf] %v2005
      %2262 = vst [vmem:[%s172 + $0xfc] sm:$0xf] %v2006
      %2263 = vst [vmem:[%s172 + $0x100] sm:$0xf] %v2007
      %2264 = vst [vmem:[%s172 + $0x104] sm:$0xf] %v2008
      %2265 = vst [vmem:[%s172 + $0x108] sm:$0xf] %v2009
      %2266 = vst [vmem:[%s172 + $0x10c] sm:$0xf] %v2010
      %2267 = vst [vmem:[%s172 + $0x110] sm:$0xf] %v2011
      %2268 = vst [vmem:[%s172 + $0x114] sm:$0xf] %v2012
      %2269 = vst [vmem:[%s172 + $0x118] sm:$0xf] %v2013
      %2270 = vst [vmem:[%s172 + $0x11c] sm:$0xf] %v2014
      %2271 = vst [vmem:[%s172 + $0x120] sm:$0xf] %v2015
      %2272 = vst [vmem:[%s172 + $0x124] sm:$0xf] %v2016
      %2273 = vst [vmem:[%s172 + $0x128] sm:$0xf] %v2017
      %2274 = vst [vmem:[%s172 + $0x12c] sm:$0xf] %v2018
      %2275 = vst [vmem:[%s172 + $0x130] sm:$0xf] %v2019
      %2276 = vst [vmem:[%s172 + $0x134] sm:$0xf] %v2020
      %2277 = vst [vmem:[%s172 + $0x138] sm:$0xf] %v2021
      %2278 = vst [vmem:[%s172 + $0x13c] sm:$0xf] %v2022
      %2279 = vst [vmem:[%s172 + $0x140] sm:$0xf] %v2023
      %2280 = vst [vmem:[%s172 + $0x144] sm:$0xf] %v2024
      %2281 = vst [vmem:[%s172 + $0x148] sm:$0xf] %v2025
      %2282 = vst [vmem:[%s172 + $0x14c] sm:$0xf] %v2026
      %2283 = vst [vmem:[%s172 + $0x150] sm:$0xf] %v2027
      %2284 = vst [vmem:[%s172 + $0x154] sm:$0xf] %v2028
      %2285 = vst [vmem:[%s172 + $0x158] sm:$0xf] %v2029
      %2286 = vst [vmem:[%s172 + $0x15c] sm:$0xf] %v2030
      %2287 = vst [vmem:[%s172 + $0x160] sm:$0xf] %v2031
      %2288 = vst [vmem:[%s172 + $0x164] sm:$0xf] %v2032
      %2289 = vst [vmem:[%s172 + $0x168] sm:$0xf] %v2033
      %2290 = vst [vmem:[%s172 + $0x16c] sm:$0xf] %v2034
      %2291 = vst [vmem:[%s172 + $0x170] sm:$0xf] %v2035
      %2292 = vst [vmem:[%s172 + $0x174] sm:$0xf] %v2036
      %2293 = vst [vmem:[%s172 + $0x178] sm:$0xf] %v2037
      %2294 = vst [vmem:[%s172 + $0x17c] sm:$0xf] %v2038
      %2295 = vst [vmem:[%s172 + $0x180] sm:$0xf] %v2039
      %2296 = vst [vmem:[%s172 + $0x184] sm:$0xf] %v2040
      %2297 = vst [vmem:[%s172 + $0x188] sm:$0xf] %v2041
      %2298 = vst [vmem:[%s172 + $0x18c] sm:$0xf] %v2042
      %2299 = vst [vmem:[%s172 + $0x190] sm:$0xf] %v2043
      %2300 = vst [vmem:[%s172 + $0x194] sm:$0xf] %v2044
      %2301 = vst [vmem:[%s172 + $0x198] sm:$0xf] %v2045
      %2302 = vst [vmem:[%s172 + $0x19c] sm:$0xf] %v2046
      %2303 = vst [vmem:[%s172 + $0x1a0] sm:$0xf] %v2047
      %2304 = vst [vmem:[%s172 + $0x1a4] sm:$0xf] %v2048
      %2305 = vst [vmem:[%s172 + $0x1a8] sm:$0xf] %v2049
      %2306 = vst [vmem:[%s172 + $0x1ac] sm:$0xf] %v2050
      %2307 = vst [vmem:[%s172 + $0x1b0] sm:$0xf] %v2051
      %2308 = vst [vmem:[%s172 + $0x1b4] sm:$0xf] %v2052
      %2309 = vst [vmem:[%s172 + $0x1b8] sm:$0xf] %v2053
      %2310 = vst [vmem:[%s172 + $0x1bc] sm:$0xf] %v2054
      %2311 = vst [vmem:[%s172 + $0x1c0] sm:$0xf] %v2055
      %2312 = vst [vmem:[%s172 + $0x1c4] sm:$0xf] %v2056
      %2313 = vst [vmem:[%s172 + $0x1c8] sm:$0xf] %v2057
      %2314 = vst [vmem:[%s172 + $0x1cc] sm:$0xf] %v2058
      %2315 = vst [vmem:[%s172 + $0x1d0] sm:$0xf] %v2059
      %2316 = vst [vmem:[%s172 + $0x1d4] sm:$0xf] %v2060
      %2317 = vst [vmem:[%s172 + $0x1d8] sm:$0xf] %v2061
      %2318 = vst [vmem:[%s172 + $0x1dc] sm:$0xf] %v2062
      %2319 = vst [vmem:[%s172 + $0x1e0] sm:$0xf] %v2063
      %2320 = vst [vmem:[%s172 + $0x1e4] sm:$0xf] %v2064
      %2321 = vst [vmem:[%s172 + $0x1e8] sm:$0xf] %v2065
      %2322 = vst [vmem:[%s172 + $0x1ec] sm:$0xf] %v2066
      %2323 = vst [vmem:[%s172 + $0x1f0] sm:$0xf] %v2067
      %2324 = vst [vmem:[%s172 + $0x1f4] sm:$0xf] %v2068
      %2325 = vst [vmem:[%s172 + $0x1f8] sm:$0xf] %v2069
      %2326 = vst [vmem:[%s172 + $0x1fc] sm:$0xf] %v2070
      %s2327 = smul.u32 128, %s14
      %p2328 = scmp.lt.s32.totalorder %s2327, 255
      %s2329 = scalar_select %p2328, %s2327, 255
      %s2330 = smul.addr %s2329, 4
      %s2331 = scalar_lea.vmem %s3, %s2330
      // Predicated region
      $region33: #{discriminator_forward.5} parent=31 // pred_check
        %p2332 = pneg %p100
      $region34: #{discriminator_forward.5} parent=31 // pred_check_branch
        %2334 = sbr.rel (%p2332) target = $region36
      $region35: #{discriminator_forward.5} parent=31 // pred_region
        %s2335 = smul.u32 128, %s14
      $region36: #{discriminator_forward.5} parent=31 // pred_fallthru
        _
    $region32: #{discriminator_forward.5} parent=5 // pred_fallthru
      _
    %p2336 = scmp.le.s32.totalorder 2, %s9
    // Predicated region
    $region37: #{discriminator_forward.5} parent=5 // pred_check
      %p2337 = pneg %p2336
    $region38: #{discriminator_forward.5} parent=5 // pred_check_branch
      %2339 = sbr.rel (%p2337) target = $region40
    $region39: #{discriminator_forward.5} parent=5 // pred_region
      %s2340 = ssub.s32 %s9, 2
      // Predicated region
      $region41: #{discriminator_forward.5} parent=39 // pred_check
        %p2341 = pneg %p106
      $region42: #{discriminator_forward.5} parent=39 // pred_check_branch
        %2343 = sbr.rel (%p2341) target = $region44
      $region43: #{discriminator_forward.5} parent=39 // pred_region
        %s2344 = smul.u32 128, %s15
        %p2345 = scmp.lt.s32.totalorder %s2344, 255
        %s2346 = scalar_select %p2345, %s2344, 255
        %s2347 = smul.addr %s2346, 4
        %s2348 = scalar_lea.vmem %s3, %s2347
      $region44: #{discriminator_forward.5} parent=39 // pred_fallthru
        _
    $region40: #{discriminator_forward.5} parent=5 // pred_fallthru
      _
  $region6: #{discriminator_forward.5} parent=0 // loop_footer
    %s13 = sadd.s32 1, %s9
  $region7: #{discriminator_forward.5} parent=0 // loop_footer_branch
    %8 = sbr.rel target = $region3
  $region8: #{discriminator_forward.5} parent=0 // loop_exit
    _

// kernel: discriminator_forward.6
$region0: #{discriminator_forward.6}
  #allocation0 [shape = 'u32[]', space=smem, size = 0x4, offset = 0x4, fixed_abs, tag = 'smem constant byte address 0x4 - core index']
  #allocation1 [shape = 'u32[144,128]{1,0:T(1,128)}', space=vmem, size = 0x12000, scoped, tag = 'internal scratch']
  %s0 = inlined_call_operand.vmem [shape: bf16[512,128], index: 0, kind: input, shape index: {}]
  %s1 = inlined_call_operand.vmem [shape: bf16[128,128], index: 1, kind: input, shape index: {}]
  %s2 = inlined_call_operand.vmem [shape: bf16[512,128], index: 2, kind: output, shape index: {0}]
  %s3 = inlined_call_operand.vmem [shape: f32[2,8,128], index: 3, kind: output, shape index: {1}]
  %4 = xla_tuple %s2, %s3
  %s5 = sld [smem:[#allocation0]]
  $region49: #{discriminator_forward.6} parent=0
    _
  %s7 = ssub.s32 1, %s5
  %s8 = scalar_select 0, %s7, %s5
  loop: start=0, step=1, limit=4
  $region2: #{discriminator_forward.6} parent=0 // loop_pre_header
    _
  $region3: #{discriminator_forward.6} parent=0 // loop_header
    %s10 = sphi 0, %s14
    %p11 = scmp.ge.s32.totalorder %s10, 4
    %s20 = sphi 0, %s22
    %s23 = sphi 0, %s20
    %s24 = sphi 0, %s23
    %s40 = sphi 0, %s24
    %s44 = sphi 0, %s44
    %s46 = sphi 0, %s44
    %s47 = sphi 0, %s46
    %s61 = sphi 0, %s47
    %s67 = sphi 0, %s69
    %s70 = sphi 0, %s67
    %s71 = sphi 0, %s70
    %s87 = sphi 0, %s71
    %s93 = sphi 0, %s95
    %s96 = sphi 0, %s93
    %s97 = sphi 0, %s96
    %s113 = sphi 0, %s97
  $region4: #{discriminator_forward.6} parent=0 // loop_header_branch
    %13 = sbr.rel (%p11) target = $region8
  $region5: #{discriminator_forward.6} parent=0 // loop_body
    %s15 = ssub.s32 %s10, 1
    %s16 = ssub.s32 %s10, 2
    %s17 = sadd.s32 %s10, 1
    %s18 = ssub.s32 %s10, %s17
    %p19 = scmp.eq.s32.totalorder %s18, 0
    %s21 = sadd.s32 %s20, 1
    %s22 = scalar_select %p19, %s20, %s21
    %p25 = pneg %p19
    %p26 = scmp.eq.s32.totalorder %s10, 1
    %p27 = por %p25, %p26
    %p28 = scmp.ne.s32.totalorder %s20, %s23
    %p29 = scmp.eq.s32.totalorder %s10, 0
    %p30 = por %p28, %p29
    %p31 = scmp.ne.s32.totalorder %s20, %s23
    %p32 = scmp.eq.s32.totalorder %s15, 1
    %p33 = por %p31, %p32
    %p34 = scmp.ne.s32.totalorder %s23, %s24
    %p35 = scmp.eq.s32.totalorder %s15, 0
    %p36 = por %p34, %p35
    %p37 = scmp.ne.s32.totalorder %s23, %s24
    %p38 = scmp.eq.s32.totalorder %s16, 1
    %p39 = por %p37, %p38
    %p41 = scmp.ne.s32.totalorder %s24, %s40
    %p42 = scmp.eq.s32.totalorder %s16, 0
    %p43 = por %p41, %p42
    %s45 = sadd.s32 %s44, 1
    %p48 = scmp.eq.s32.totalorder %s10, 1
    %p49 = scmp.ne.s32.totalorder %s44, %s46
    %p50 = scmp.eq.s32.totalorder %s10, 0
    %p51 = por %p49, %p50
    %p52 = scmp.ne.s32.totalorder %s44, %s46
    %p53 = scmp.eq.s32.totalorder %s15, 1
    %p54 = por %p52, %p53
    %p55 = scmp.ne.s32.totalorder %s46, %s47
    %p56 = scmp.eq.s32.totalorder %s15, 0
    %p57 = por %p55, %p56
    %p58 = scmp.ne.s32.totalorder %s46, %s47
    %p59 = scmp.eq.s32.totalorder %s16, 1
    %p60 = por %p58, %p59
    %p62 = scmp.ne.s32.totalorder %s47, %s61
    %p63 = scmp.eq.s32.totalorder %s16, 0
    %p64 = por %p62, %p63
    %s65 = ssub.s32 %s10, %s17
    %p66 = scmp.eq.s32.totalorder %s65, 0
    %s68 = sadd.s32 %s67, 1
    %s69 = scalar_select %p66, %s67, %s68
    %p72 = pneg %p66
    %p73 = scmp.eq.s32.totalorder %s10, 1
    %p74 = por %p72, %p73
    %p75 = scmp.ne.s32.totalorder %s67, %s70
    %p76 = scmp.eq.s32.totalorder %s10, 0
    %p77 = por %p75, %p76
    %p78 = scmp.ne.s32.totalorder %s67, %s70
    %p79 = scmp.eq.s32.totalorder %s15, 1
    %p80 = por %p78, %p79
    %p81 = scmp.ne.s32.totalorder %s70, %s71
    %p82 = scmp.eq.s32.totalorder %s15, 0
    %p83 = por %p81, %p82
    %p84 = scmp.ne.s32.totalorder %s70, %s71
    %p85 = scmp.eq.s32.totalorder %s16, 1
    %p86 = por %p84, %p85
    %p88 = scmp.ne.s32.totalorder %s71, %s87
    %p89 = scmp.eq.s32.totalorder %s16, 0
    %p90 = por %p88, %p89
    %s91 = ssub.s32 %s10, %s17
    %p92 = scmp.eq.s32.totalorder %s91, 0
    %s94 = sadd.s32 %s93, 1
    %s95 = scalar_select %p92, %s93, %s94
    %p98 = pneg %p92
    %p99 = scmp.eq.s32.totalorder %s10, 1
    %p100 = por %p98, %p99
    %p101 = scmp.ne.s32.totalorder %s93, %s96
    %p102 = scmp.eq.s32.totalorder %s10, 0
    %p103 = por %p101, %p102
    %p104 = scmp.ne.s32.totalorder %s93, %s96
    %p105 = scmp.eq.s32.totalorder %s15, 1
    %p106 = por %p104, %p105
    %p107 = scmp.ne.s32.totalorder %s96, %s97
    %p108 = scmp.eq.s32.totalorder %s15, 0
    %p109 = por %p107, %p108
    %p110 = scmp.ne.s32.totalorder %s96, %s97
    %p111 = scmp.eq.s32.totalorder %s16, 1
    %p112 = por %p110, %p111
    %p114 = scmp.ne.s32.totalorder %s97, %s113
    %p115 = scmp.eq.s32.totalorder %s16, 0
    %p116 = por %p114, %p115
    %p117 = scmp.le.s32.totalorder 1, %s10
    %p118 = scmp.lt.s32.totalorder %s10, 3
    %p119 = pnand %p117, %p118
    %p120 = pneg %p119
    // Predicated region
    $region9: #{discriminator_forward.6} parent=5 // pred_check
      _
    $region10: #{discriminator_forward.6} parent=5 // pred_check_branch
      %122 = sbr.rel (%p119) target = $region12
    $region11: #{discriminator_forward.6} parent=5 // pred_region
      %s123 = ssub.s32 %s10, 1
      // Predicated region
      $region13: #{discriminator_forward.6} parent=11 // pred_check
        %p124 = pneg %p57
      $region14: #{discriminator_forward.6} parent=11 // pred_check_branch
        %126 = sbr.rel (%p124) target = $region16
      $region15: #{discriminator_forward.6} parent=11 // pred_region
        _
      $region16: #{discriminator_forward.6} parent=11 // pred_fallthru
        _
    $region12: #{discriminator_forward.6} parent=5 // pred_fallthru
      _
    %p127 = scmp.lt.s32.totalorder %s10, 2
    // Predicated region
    $region17: #{discriminator_forward.6} parent=5 // pred_check
      %p128 = pneg %p127
    $region18: #{discriminator_forward.6} parent=5 // pred_check_branch
      %130 = sbr.rel (%p128) target = $region20
    $region19: #{discriminator_forward.6} parent=5 // pred_region
      // Predicated region
      $region21: #{discriminator_forward.6} parent=19 // pred_check
        %p131 = pneg %p30
      $region22: #{discriminator_forward.6} parent=19 // pred_check_branch
        %133 = sbr.rel (%p131) target = $region24
      $region23: #{discriminator_forward.6} parent=19 // pred_region
        %s134 = smul.u32 32, %s10
        %p135 = scmp.lt.s32.totalorder %s134, 63
        %s136 = scalar_select %p135, %s134, 63
        %s137 = smul.addr %s136, 4
        %s138 = scalar_lea.vmem %s0, %s137
        %s139 = smul.u32 32, %s10
      $region24: #{discriminator_forward.6} parent=19 // pred_fallthru
        _
    $region20: #{discriminator_forward.6} parent=5 // pred_fallthru
      _
    %p140 = scmp.le.s32.totalorder 1, %s10
    %p141 = scmp.lt.s32.totalorder %s10, 3
    %p142 = pnand %p140, %p141
    %p143 = pneg %p142
    // Predicated region
    $region25: #{discriminator_forward.6} parent=5 // pred_check
      _
    $region26: #{discriminator_forward.6} parent=5 // pred_check_branch
      %145 = sbr.rel (%p142) target = $region28
    $region27: #{discriminator_forward.6} parent=5 // pred_region
      %s146 = ssub.s32 %s10, 1
      %s147 = smul.u32 32, %s15
      %p148 = scmp.lt.s32.totalorder %s147, 63
      %s149 = scalar_select %p148, %s147, 63
      %s150 = smul.addr %s149, 4
      %s151 = scalar_lea.vmem %s0, %s150
      %p152 = pneg %p36
      %p153 = pneg %p33
      %p154 = pneg %p57
      %p155 = pneg %p54
      %p156 = pneg %p83
      %p157 = pneg %p80
      %s158 = smul.u32 32, %s15
      %p159 = scmp.lt.s32.totalorder %s158, 63
      %s160 = scalar_select %p159, %s158, 63
      %s161 = smul.addr %s160, 4
      %s162 = scalar_lea.vmem %s2, %s161
      %p163 = pneg %p109
      %p164 = pneg %p106
      %p165 = scmp.lt.s32.totalorder %s15, 1
      %s166 = scalar_select %p165, %s15, 1
      %s167 = smul.addr %s166, 8
      %s168 = scalar_lea.vmem %s3, %s167
      %s169 = smul.u32 32, %s15
      %p170 = scmp.lt.s32.totalorder %s169, 63
      %s171 = scalar_select %p170, %s169, 63
      %s172 = smul.addr %s171, 4
      %s173 = scalar_lea.vmem %s0, %s172
      %s174 = smul.u32 32, %s15
      %s175 = smul.u32 32, %s15
      %p176 = scmp.lt.s32.totalorder %s175, 63
      %s177 = scalar_select %p176, %s175, 63
      %s178 = smul.addr %s177, 4
      %s179 = scalar_lea.vmem %s2, %s178
      %s180 = smul.u32 32, %s15
      %p181 = scmp.lt.s32.totalorder %s15, 1
      %s182 = scalar_select %p181, %s15, 1
      %s183 = smul.addr %s182, 8
      %s184 = scalar_lea.vmem %s3, %s183
      %v186 = vld [vmem:[%s173] sm:$0xf]
      %v187 = vld [vmem:[%s173 + $0x4] sm:$0xf]
      %v188 = vld [vmem:[%s173 + $0x8] sm:$0xf]
      %v189 = vld [vmem:[%s173 + $0xc] sm:$0xf]
      %v190 = vld [vmem:[%s173 + $0x10] sm:$0xf]
      %v191 = vld [vmem:[%s173 + $0x14] sm:$0xf]
      %v192 = vld [vmem:[%s173 + $0x18] sm:$0xf]
      %v193 = vld [vmem:[%s173 + $0x1c] sm:$0xf]
      %v194 = vld [vmem:[%s173 + $0x20] sm:$0xf]
      %v195 = vld [vmem:[%s173 + $0x24] sm:$0xf]
      %v196 = vld [vmem:[%s173 + $0x28] sm:$0xf]
      %v197 = vld [vmem:[%s173 + $0x2c] sm:$0xf]
      %v198 = vld [vmem:[%s173 + $0x30] sm:$0xf]
      %v199 = vld [vmem:[%s173 + $0x34] sm:$0xf]
      %v200 = vld [vmem:[%s173 + $0x38] sm:$0xf]
      %v201 = vld [vmem:[%s173 + $0x3c] sm:$0xf]
      %v202 = vld [vmem:[%s173 + $0x40] sm:$0xf]
      %v203 = vld [vmem:[%s173 + $0x44] sm:$0xf]
      %v204 = vld [vmem:[%s173 + $0x48] sm:$0xf]
      %v205 = vld [vmem:[%s173 + $0x4c] sm:$0xf]
      %v206 = vld [vmem:[%s173 + $0x50] sm:$0xf]
      %v207 = vld [vmem:[%s173 + $0x54] sm:$0xf]
      %v208 = vld [vmem:[%s173 + $0x58] sm:$0xf]
      %v209 = vld [vmem:[%s173 + $0x5c] sm:$0xf]
      %v210 = vld [vmem:[%s173 + $0x60] sm:$0xf]
      %v211 = vld [vmem:[%s173 + $0x64] sm:$0xf]
      %v212 = vld [vmem:[%s173 + $0x68] sm:$0xf]
      %v213 = vld [vmem:[%s173 + $0x6c] sm:$0xf]
      %v214 = vld [vmem:[%s173 + $0x70] sm:$0xf]
      %v215 = vld [vmem:[%s173 + $0x74] sm:$0xf]
      %v216 = vld [vmem:[%s173 + $0x78] sm:$0xf]
      %v217 = vld [vmem:[%s173 + $0x7c] sm:$0xf]
      %v218 = vld [vmem:[%s1] sm:$0xf]
      %v219 = vld [vmem:[%s1 + $0x4] sm:$0xf]
      %v220 = vld [vmem:[%s1 + $0x8] sm:$0xf]
      %v221 = vld [vmem:[%s1 + $0xc] sm:$0xf]
      %v222 = vld [vmem:[%s1 + $0x10] sm:$0xf]
      %v223 = vld [vmem:[%s1 + $0x14] sm:$0xf]
      %v224 = vld [vmem:[%s1 + $0x18] sm:$0xf]
      %v225 = vld [vmem:[%s1 + $0x1c] sm:$0xf]
      %v226 = vld [vmem:[%s1 + $0x20] sm:$0xf]
      %v227 = vld [vmem:[%s1 + $0x24] sm:$0xf]
      %v228 = vld [vmem:[%s1 + $0x28] sm:$0xf]
      %v229 = vld [vmem:[%s1 + $0x2c] sm:$0xf]
      %v230 = vld [vmem:[%s1 + $0x30] sm:$0xf]
      %v231 = vld [vmem:[%s1 + $0x34] sm:$0xf]
      %v232 = vld [vmem:[%s1 + $0x38] sm:$0xf]
      %v233 = vld [vmem:[%s1 + $0x3c] sm:$0xf]
      %v266 = vunpack.c.l.b16 %v186
      %v267 = vunpack.c.l.b16 %v187
      %v268 = vunpack.c.l.b16 %v188
      %v269 = vunpack.c.l.b16 %v189
      %v270 = vunpack.c.l.b16 %v190
      %v271 = vunpack.c.l.b16 %v191
      %v272 = vunpack.c.l.b16 %v192
      %v273 = vunpack.c.l.b16 %v193
      %v274 = vunpack.c.l.b16 %v194
      %v275 = vunpack.c.l.b16 %v195
      %v276 = vunpack.c.l.b16 %v196
      %v277 = vunpack.c.l.b16 %v197
      %v278 = vunpack.c.l.b16 %v198
      %v279 = vunpack.c.l.b16 %v199
      %v280 = vunpack.c.l.b16 %v200
      %v281 = vunpack.c.l.b16 %v201
      %v282 = vunpack.c.l.b16 %v202
      %v283 = vunpack.c.l.b16 %v203
      %v284 = vunpack.c.l.b16 %v204
      %v285 = vunpack.c.l.b16 %v205
      %v286 = vunpack.c.l.b16 %v206
      %v287 = vunpack.c.l.b16 %v207
      %v288 = vunpack.c.l.b16 %v208
      %v289 = vunpack.c.l.b16 %v209
      %v290 = vunpack.c.l.b16 %v210
      %v291 = vunpack.c.l.b16 %v211
      %v292 = vunpack.c.l.b16 %v212
      %v293 = vunpack.c.l.b16 %v213
      %v294 = vunpack.c.l.b16 %v214
      %v295 = vunpack.c.l.b16 %v215
      %v296 = vunpack.c.l.b16 %v216
      %v297 = vunpack.c.l.b16 %v217
      %v298 = vpack.c.b16 %v267, %v266
      %v299 = vpack.c.b16 %v269, %v268
      %v300 = vpack.c.b16 %v271, %v270
      %v301 = vpack.c.b16 %v273, %v272
      %v302 = vpack.c.b16 %v275, %v274
      %v303 = vpack.c.b16 %v277, %v276
      %v304 = vpack.c.b16 %v279, %v278
      %v305 = vpack.c.b16 %v281, %v280
      %v306 = vpack.c.b16 %v283, %v282
      %v307 = vpack.c.b16 %v285, %v284
      %v308 = vpack.c.b16 %v287, %v286
      %v309 = vpack.c.b16 %v289, %v288
      %v310 = vpack.c.b16 %v291, %v290
      %v311 = vpack.c.b16 %v293, %v292
      %v312 = vpack.c.b16 %v295, %v294
      %v313 = vpack.c.b16 %v297, %v296
      %v346 = vunpack.c.l.b16 %v218
      %v347 = vunpack.c.l.b16 %v219
      %v348 = vunpack.c.l.b16 %v220
      %v349 = vunpack.c.l.b16 %v221
      %v350 = vunpack.c.l.b16 %v222
      %v351 = vunpack.c.l.b16 %v223
      %v352 = vunpack.c.l.b16 %v224
      %v353 = vunpack.c.l.b16 %v225
      %v354 = vunpack.c.l.b16 %v226
      %v355 = vunpack.c.l.b16 %v227
      %v356 = vunpack.c.l.b16 %v228
      %v357 = vunpack.c.l.b16 %v229
      %v358 = vunpack.c.l.b16 %v230
      %v359 = vunpack.c.l.b16 %v231
      %v360 = vunpack.c.l.b16 %v232
      %v361 = vunpack.c.l.b16 %v233
      %v362 = vpack.c.b16 %v347, %v346
      %v363 = vpack.c.b16 %v349, %v348
      %v364 = vpack.c.b16 %v351, %v350
      %v365 = vpack.c.b16 %v353, %v352
      %v366 = vpack.c.b16 %v355, %v354
      %v367 = vpack.c.b16 %v357, %v356
      %v368 = vpack.c.b16 %v359, %v358
      %v369 = vpack.c.b16 %v361, %v360
      %378 = vmatprep.subr.bf16.mxu0 0
      %379 = vmatpush1.bf16.msra.mxu0 %v362
      %380 = vmatprep.subr.bf16.mxu0 0
      %381 = vmatpush1.bf16.msra.mxu0 %v363
      %382 = vmatprep.subr.bf16.mxu0 0
      %383 = vmatpush1.bf16.msra.mxu0 %v364
      %384 = vmatprep.subr.bf16.mxu0 0
      %385 = vmatpush1.bf16.msra.mxu0 %v365
      %386 = vmatprep.subr.bf16.mxu0 0
      %387 = vmatpush1.bf16.msra.mxu0 %v366
      %388 = vmatprep.subr.bf16.mxu0 0
      %389 = vmatpush1.bf16.msra.mxu0 %v367
      %390 = vmatprep.subr.bf16.mxu0 0
      %391 = vmatpush1.bf16.msra.mxu0 %v368
      %392 = vmatprep.subr.bf16.mxu0 0
      %393 = vmatpush1.bf16.msra.mxu0 %v369
      %394 = vmatprep.subr.bf16.mxu0 0
      %395 = vmatpush1.bf16.msra.mxu0 0
      %396 = vmatprep.subr.bf16.mxu0 0
      %397 = vmatpush1.bf16.msra.mxu0 0
      %398 = vmatprep.subr.bf16.mxu0 0
      %399 = vmatpush1.bf16.msra.mxu0 0
      %400 = vmatprep.subr.bf16.mxu0 0
      %401 = vmatpush1.bf16.msra.mxu0 0
      %402 = vmatprep.subr.bf16.mxu0 0
      %403 = vmatpush1.bf16.msra.mxu0 0
      %404 = vmatprep.subr.bf16.mxu0 0
      %405 = vmatpush1.bf16.msra.mxu0 0
      %406 = vmatprep.subr.bf16.mxu0 0
      %407 = vmatpush1.bf16.msra.mxu0 0
      %408 = vmatprep.subr.bf16.mxu0 0
      %409 = vmatpush1.bf16.msra.mxu0 0
      %410 = vmatprep.mubr.bf16.mxu0 0
      %411 = vmatmul.mubr.bf16.gmra.mrb[0].mxu0 %v298
      %v412 = vpop.f32.mrb[0].mxu0
      %v413 = vadd.f32 0.0, %v412
      %v414 = vpop.f32.mrb[0].mxu0
      %v415 = vpop.f32.mrb[0].mxu0
      %v416 = vadd.f32 0.0, %v415
      %v417 = vpop.f32.mrb[0].mxu0
      %418 = vmatprep.mubr.bf16.mxu0 0
      %419 = vmatmul.mubr.bf16.gmra.mrb[0].mxu0 %v299
      %v420 = vpop.f32.mrb[0].mxu0
      %v421 = vadd.f32 0.0, %v420
      %v422 = vpop.f32.mrb[0].mxu0
      %v423 = vpop.f32.mrb[0].mxu0
      %v424 = vadd.f32 0.0, %v423
      %v425 = vpop.f32.mrb[0].mxu0
      %426 = vmatprep.mubr.bf16.mxu0 0
      %427 = vmatmul.mubr.bf16.gmra.mrb[0].mxu0 %v300
      %v428 = vpop.f32.mrb[0].mxu0
      %v429 = vadd.f32 0.0, %v428
      %v430 = vpop.f32.mrb[0].mxu0
      %v431 = vpop.f32.mrb[0].mxu0
      %v432 = vadd.f32 0.0, %v431
      %v433 = vpop.f32.mrb[0].mxu0
      %434 = vmatprep.mubr.bf16.mxu0 0
      %435 = vmatmul.mubr.bf16.gmra.mrb[0].mxu0 %v301
      %v436 = vpop.f32.mrb[0].mxu0
      %v437 = vadd.f32 0.0, %v436
      %v438 = vpop.f32.mrb[0].mxu0
      %v439 = vpop.f32.mrb[0].mxu0
      %v440 = vadd.f32 0.0, %v439
      %v441 = vpop.f32.mrb[0].mxu0
      %442 = vmatprep.mubr.bf16.mxu0 0
      %443 = vmatmul.mubr.bf16.gmra.mrb[0].mxu0 %v302
      %v444 = vpop.f32.mrb[0].mxu0
      %v445 = vadd.f32 0.0, %v444
      %v446 = vpop.f32.mrb[0].mxu0
      %v447 = vpop.f32.mrb[0].mxu0
      %v448 = vadd.f32 0.0, %v447
      %v449 = vpop.f32.mrb[0].mxu0
      %450 = vmatprep.mubr.bf16.mxu0 0
      %451 = vmatmul.mubr.bf16.gmra.mrb[0].mxu0 %v303
      %v452 = vpop.f32.mrb[0].mxu0
      %v453 = vadd.f32 0.0, %v452
      %v454 = vpop.f32.mrb[0].mxu0
      %v455 = vpop.f32.mrb[0].mxu0
      %v456 = vadd.f32 0.0, %v455
      %v457 = vpop.f32.mrb[0].mxu0
      %458 = vmatprep.mubr.bf16.mxu0 0
      %459 = vmatmul.mubr.bf16.gmra.mrb[0].mxu0 %v304
      %v460 = vpop.f32.mrb[0].mxu0
      %v461 = vadd.f32 0.0, %v460
      %v462 = vpop.f32.mrb[0].mxu0
      %v463 = vpop.f32.mrb[0].mxu0
      %v464 = vadd.f32 0.0, %v463
      %v465 = vpop.f32.mrb[0].mxu0
      %466 = vmatprep.mubr.bf16.mxu0 0
      %467 = vmatmul.mubr.bf16.gmra.mrb[0].mxu0 %v305
      %v468 = vpop.f32.mrb[0].mxu0
      %v469 = vadd.f32 0.0, %v468
      %v470 = vpop.f32.mrb[0].mxu0
      %v471 = vpop.f32.mrb[0].mxu0
      %v472 = vadd.f32 0.0, %v471
      %v473 = vpop.f32.mrb[0].mxu0
      %474 = vmatprep.mubr.bf16.mxu0 0
      %475 = vmatmul.mubr.bf16.gmra.mrb[0].mxu0 %v306
      %v476 = vpop.f32.mrb[0].mxu0
      %v477 = vadd.f32 0.0, %v476
      %v478 = vpop.f32.mrb[0].mxu0
      %v479 = vpop.f32.mrb[0].mxu0
      %v480 = vadd.f32 0.0, %v479
      %v481 = vpop.f32.mrb[0].mxu0
      %482 = vmatprep.mubr.bf16.mxu0 0
      %483 = vmatmul.mubr.bf16.gmra.mrb[0].mxu0 %v307
      %v484 = vpop.f32.mrb[0].mxu0
      %v485 = vadd.f32 0.0, %v484
      %v486 = vpop.f32.mrb[0].mxu0
      %v487 = vpop.f32.mrb[0].mxu0
      %v488 = vadd.f32 0.0, %v487
      %v489 = vpop.f32.mrb[0].mxu0
      %490 = vmatprep.mubr.bf16.mxu0 0
      %491 = vmatmul.mubr.bf16.gmra.mrb[0].mxu0 %v308
      %v492 = vpop.f32.mrb[0].mxu0
      %v493 = vadd.f32 0.0, %v492
      %v494 = vpop.f32.mrb[0].mxu0
      %v495 = vpop.f32.mrb[0].mxu0
      %v496 = vadd.f32 0.0, %v495
      %v497 = vpop.f32.mrb[0].mxu0
      %498 = vmatprep.mubr.bf16.mxu0 0
      %499 = vmatmul.mubr.bf16.gmra.mrb[0].mxu0 %v309
      %v500 = vpop.f32.mrb[0].mxu0
      %v501 = vadd.f32 0.0, %v500
      %v502 = vpop.f32.mrb[0].mxu0
      %v503 = vpop.f32.mrb[0].mxu0
      %v504 = vadd.f32 0.0, %v503
      %v505 = vpop.f32.mrb[0].mxu0
      %506 = vmatprep.mubr.bf16.mxu0 0
      %507 = vmatmul.mubr.bf16.gmra.mrb[0].mxu0 %v310
      %v508 = vpop.f32.mrb[0].mxu0
      %v509 = vadd.f32 0.0, %v508
      %v510 = vpop.f32.mrb[0].mxu0
      %v511 = vpop.f32.mrb[0].mxu0
      %v512 = vadd.f32 0.0, %v511
      %v513 = vpop.f32.mrb[0].mxu0
      %514 = vmatprep.mubr.bf16.mxu0 0
      %515 = vmatmul.mubr.bf16.gmra.mrb[0].mxu0 %v311
      %v516 = vpop.f32.mrb[0].mxu0
      %v517 = vadd.f32 0.0, %v516
      %v518 = vpop.f32.mrb[0].mxu0
      %v519 = vpop.f32.mrb[0].mxu0
      %v520 = vadd.f32 0.0, %v519
      %v521 = vpop.f32.mrb[0].mxu0
      %522 = vmatprep.mubr.bf16.mxu0 0
      %523 = vmatmul.mubr.bf16.gmra.mrb[0].mxu0 %v312
      %v524 = vpop.f32.mrb[0].mxu0
      %v525 = vadd.f32 0.0, %v524
      %v526 = vpop.f32.mrb[0].mxu0
      %v527 = vpop.f32.mrb[0].mxu0
      %v528 = vadd.f32 0.0, %v527
      %v529 = vpop.f32.mrb[0].mxu0
      %530 = vmatprep.mubr.bf16.mxu0 0
      %531 = vmatmul.mubr.bf16.gmra.mrb[0].mxu0 %v313
      %v532 = vpop.f32.mrb[0].mxu0
      %v533 = vadd.f32 0.0, %v532
      %v534 = vpop.f32.mrb[0].mxu0
      %v535 = vpop.f32.mrb[0].mxu0
      %v536 = vadd.f32 0.0, %v535
      %v537 = vpop.f32.mrb[0].mxu0
      %538 = vdwg.mxu0
      %v539 = vpack.c.bf16 %v416, %v413
      %v540 = vpack.c.bf16 %v424, %v421
      %v541 = vpack.c.bf16 %v432, %v429
      %v542 = vpack.c.bf16 %v440, %v437
      %v543 = vpack.c.bf16 %v448, %v445
      %v544 = vpack.c.bf16 %v456, %v453
      %v545 = vpack.c.bf16 %v464, %v461
      %v546 = vpack.c.bf16 %v472, %v469
      %v547 = vpack.c.bf16 %v480, %v477
      %v548 = vpack.c.bf16 %v488, %v485
      %v549 = vpack.c.bf16 %v496, %v493
      %v550 = vpack.c.bf16 %v504, %v501
      %v551 = vpack.c.bf16 %v512, %v509
      %v552 = vpack.c.bf16 %v520, %v517
      %v553 = vpack.c.bf16 %v528, %v525
      %v554 = vpack.c.bf16 %v536, %v533
      %v571 = vunpack.c.l.b16 %v539
      %v572 = vunpack.c.h.b16 %v539
      %v573 = vunpack.c.l.b16 %v540
      %v574 = vunpack.c.h.b16 %v540
      %v575 = vunpack.c.l.b16 %v541
      %v576 = vunpack.c.h.b16 %v541
      %v577 = vunpack.c.l.b16 %v542
      %v578 = vunpack.c.h.b16 %v542
      %v579 = vunpack.c.l.b16 %v543
      %v580 = vunpack.c.h.b16 %v543
      %v581 = vunpack.c.l.b16 %v544
      %v582 = vunpack.c.h.b16 %v544
      %v583 = vunpack.c.l.b16 %v545
      %v584 = vunpack.c.h.b16 %v545
      %v585 = vunpack.c.l.b16 %v546
      %v586 = vunpack.c.h.b16 %v546
      %v587 = vunpack.c.l.b16 %v547
      %v588 = vunpack.c.h.b16 %v547
      %v589 = vunpack.c.l.b16 %v548
      %v590 = vunpack.c.h.b16 %v548
      %v591 = vunpack.c.l.b16 %v549
      %v592 = vunpack.c.h.b16 %v549
      %v593 = vunpack.c.l.b16 %v550
      %v594 = vunpack.c.h.b16 %v550
      %v595 = vunpack.c.l.b16 %v551
      %v596 = vunpack.c.h.b16 %v551
      %v597 = vunpack.c.l.b16 %v552
      %v598 = vunpack.c.h.b16 %v552
      %v599 = vunpack.c.l.b16 %v553
      %v600 = vunpack.c.h.b16 %v553
      %v601 = vunpack.c.l.b16 %v554
      %v602 = vunpack.c.h.b16 %v554
      %v603 = vpack.c.b16 %v571, %v571
      %v604 = vpack.c.b16 %v572, %v572
      %v605 = vpack.c.b16 %v573, %v573
      %v606 = vpack.c.b16 %v574, %v574
      %v607 = vpack.c.b16 %v575, %v575
      %v608 = vpack.c.b16 %v576, %v576
      %v609 = vpack.c.b16 %v577, %v577
      %v610 = vpack.c.b16 %v578, %v578
      %v611 = vpack.c.b16 %v579, %v579
      %v612 = vpack.c.b16 %v580, %v580
      %v613 = vpack.c.b16 %v581, %v581
      %v614 = vpack.c.b16 %v582, %v582
      %v615 = vpack.c.b16 %v583, %v583
      %v616 = vpack.c.b16 %v584, %v584
      %v617 = vpack.c.b16 %v585, %v585
      %v618 = vpack.c.b16 %v586, %v586
      %v619 = vpack.c.b16 %v587, %v587
      %v620 = vpack.c.b16 %v588, %v588
      %v621 = vpack.c.b16 %v589, %v589
      %v622 = vpack.c.b16 %v590, %v590
      %v623 = vpack.c.b16 %v591, %v591
      %v624 = vpack.c.b16 %v592, %v592
      %v625 = vpack.c.b16 %v593, %v593
      %v626 = vpack.c.b16 %v594, %v594
      %v627 = vpack.c.b16 %v595, %v595
      %v628 = vpack.c.b16 %v596, %v596
      %v629 = vpack.c.b16 %v597, %v597
      %v630 = vpack.c.b16 %v598, %v598
      %v631 = vpack.c.b16 %v599, %v599
      %v632 = vpack.c.b16 %v600, %v600
      %v633 = vpack.c.b16 %v601, %v601
      %v634 = vpack.c.b16 %v602, %v602
      %667 = vst [vmem:[%s179] sm:$0xf] %v603
      %668 = vst [vmem:[%s179 + $0x4] sm:$0xf] %v604
      %669 = vst [vmem:[%s179 + $0x8] sm:$0xf] %v605
      %670 = vst [vmem:[%s179 + $0xc] sm:$0xf] %v606
      %671 = vst [vmem:[%s179 + $0x10] sm:$0xf] %v607
      %672 = vst [vmem:[%s179 + $0x14] sm:$0xf] %v608
      %673 = vst [vmem:[%s179 + $0x18] sm:$0xf] %v609
      %674 = vst [vmem:[%s179 + $0x1c] sm:$0xf] %v610
      %675 = vst [vmem:[%s179 + $0x20] sm:$0xf] %v611
      %676 = vst [vmem:[%s179 + $0x24] sm:$0xf] %v612
      %677 = vst [vmem:[%s179 + $0x28] sm:$0xf] %v613
      %678 = vst [vmem:[%s179 + $0x2c] sm:$0xf] %v614
      %679 = vst [vmem:[%s179 + $0x30] sm:$0xf] %v615
      %680 = vst [vmem:[%s179 + $0x34] sm:$0xf] %v616
      %681 = vst [vmem:[%s179 + $0x38] sm:$0xf] %v617
      %682 = vst [vmem:[%s179 + $0x3c] sm:$0xf] %v618
      %683 = vst [vmem:[%s179 + $0x40] sm:$0xf] %v619
      %684 = vst [vmem:[%s179 + $0x44] sm:$0xf] %v620
      %685 = vst [vmem:[%s179 + $0x48] sm:$0xf] %v621
      %686 = vst [vmem:[%s179 + $0x4c] sm:$0xf] %v622
      %687 = vst [vmem:[%s179 + $0x50] sm:$0xf] %v623
      %688 = vst [vmem:[%s179 + $0x54] sm:$0xf] %v624
      %689 = vst [vmem:[%s179 + $0x58] sm:$0xf] %v625
      %690 = vst [vmem:[%s179 + $0x5c] sm:$0xf] %v626
      %691 = vst [vmem:[%s179 + $0x60] sm:$0xf] %v627
      %692 = vst [vmem:[%s179 + $0x64] sm:$0xf] %v628
      %693 = vst [vmem:[%s179 + $0x68] sm:$0xf] %v629
      %694 = vst [vmem:[%s179 + $0x6c] sm:$0xf] %v630
      %695 = vst [vmem:[%s179 + $0x70] sm:$0xf] %v631
      %696 = vst [vmem:[%s179 + $0x74] sm:$0xf] %v632
      %697 = vst [vmem:[%s179 + $0x78] sm:$0xf] %v633
      %698 = vst [vmem:[%s179 + $0x7c] sm:$0xf] %v634
      %699 = vst [vmem:[%s184] sm:$0xff] 0.0
      %v700 = vadd.f32 %v413, %v416
      %v701 = vadd.f32 %v700, %v421
      %v702 = vadd.f32 %v701, %v424
      %v703 = vadd.f32 %v702, %v429
      %v704 = vadd.f32 %v703, %v432
      %v705 = vadd.f32 %v704, %v437
      %v706 = vadd.f32 %v705, %v440
      %v707 = vadd.f32 %v706, %v445
      %v708 = vadd.f32 %v707, %v448
      %v709 = vadd.f32 %v708, %v453
      %v710 = vadd.f32 %v709, %v456
      %v711 = vadd.f32 %v710, %v461
      %v712 = vadd.f32 %v711, %v464
      %v713 = vadd.f32 %v712, %v469
      %v714 = vadd.f32 %v713, %v472
      %v715 = vadd.f32 %v714, %v477
      %v716 = vadd.f32 %v715, %v480
      %v717 = vadd.f32 %v716, %v485
      %v718 = vadd.f32 %v717, %v488
      %v719 = vadd.f32 %v718, %v493
      %v720 = vadd.f32 %v719, %v496
      %v721 = vadd.f32 %v720, %v501
      %v722 = vadd.f32 %v721, %v504
      %v723 = vadd.f32 %v722, %v509
      %v724 = vadd.f32 %v723, %v512
      %v725 = vadd.f32 %v724, %v517
      %v726 = vadd.f32 %v725, %v520
      %v727 = vadd.f32 %v726, %v525
      %v728 = vadd.f32 %v727, %v528
      %v729 = vadd.f32 %v728, %v533
      %v730 = vadd.f32 %v729, %v536
      %v731 = vrot.slane %v730, 4
      %v732 = vadd.f32 %v730, %v731
      %v733 = vrot.slane %v732, 2
      %v734 = vadd.f32 %v732, %v733
      %v735 = vrot.slane %v734, 1
      %v736 = vadd.f32 %v734, %v735
      %737 = vst [vmem:[%s184] sm:$0x1] %v736
      %v738 = vmul.f32 %v413, %v413
      %v739 = vmul.f32 %v416, %v416
      %v740 = vmul.f32 %v421, %v421
      %v741 = vmul.f32 %v424, %v424
      %v742 = vmul.f32 %v429, %v429
      %v743 = vmul.f32 %v432, %v432
      %v744 = vmul.f32 %v437, %v437
      %v745 = vmul.f32 %v440, %v440
      %v746 = vmul.f32 %v445, %v445
      %v747 = vmul.f32 %v448, %v448
      %v748 = vmul.f32 %v453, %v453
      %v749 = vmul.f32 %v456, %v456
      %v750 = vmul.f32 %v461, %v461
      %v751 = vmul.f32 %v464, %v464
      %v752 = vmul.f32 %v469, %v469
      %v753 = vmul.f32 %v472, %v472
      %v754 = vmul.f32 %v477, %v477
      %v755 = vmul.f32 %v480, %v480
      %v756 = vmul.f32 %v485, %v485
      %v757 = vmul.f32 %v488, %v488
      %v758 = vmul.f32 %v493, %v493
      %v759 = vmul.f32 %v496, %v496
      %v760 = vmul.f32 %v501, %v501
      %v761 = vmul.f32 %v504, %v504
      %v762 = vmul.f32 %v509, %v509
      %v763 = vmul.f32 %v512, %v512
      %v764 = vmul.f32 %v517, %v517
      %v765 = vmul.f32 %v520, %v520
      %v766 = vmul.f32 %v525, %v525
      %v767 = vmul.f32 %v528, %v528
      %v768 = vmul.f32 %v533, %v533
      %v769 = vmul.f32 %v536, %v536
      %v770 = vadd.f32 %v738, %v739
      %v771 = vadd.f32 %v770, %v740
      %v772 = vadd.f32 %v771, %v741
      %v773 = vadd.f32 %v772, %v742
      %v774 = vadd.f32 %v773, %v743
      %v775 = vadd.f32 %v774, %v744
      %v776 = vadd.f32 %v775, %v745
      %v777 = vadd.f32 %v776, %v746
      %v778 = vadd.f32 %v777, %v747
      %v779 = vadd.f32 %v778, %v748
      %v780 = vadd.f32 %v779, %v749
      %v781 = vadd.f32 %v780, %v750
      %v782 = vadd.f32 %v781, %v751
      %v783 = vadd.f32 %v782, %v752
      %v784 = vadd.f32 %v783, %v753
      %v785 = vadd.f32 %v784, %v754
      %v786 = vadd.f32 %v785, %v755
      %v787 = vadd.f32 %v786, %v756
      %v788 = vadd.f32 %v787, %v757
      %v789 = vadd.f32 %v788, %v758
      %v790 = vadd.f32 %v789, %v759
      %v791 = vadd.f32 %v790, %v760
      %v792 = vadd.f32 %v791, %v761
      %v793 = vadd.f32 %v792, %v762
      %v794 = vadd.f32 %v793, %v763
      %v795 = vadd.f32 %v794, %v764
      %v796 = vadd.f32 %v795, %v765
      %v797 = vadd.f32 %v796, %v766
      %v798 = vadd.f32 %v797, %v767
      %v799 = vadd.f32 %v798, %v768
      %v800 = vadd.f32 %v799, %v769
      %v801 = vrot.slane %v800, 4
      %v802 = vadd.f32 %v800, %v801
      %v803 = vrot.slane %v802, 2
      %v804 = vadd.f32 %v802, %v803
      %v805 = vrot.slane %v804, 1
      %v806 = vadd.f32 %v804, %v805
      %807 = vst [vmem:[%s184 + $0x1] sm:$0x1] %v806
      %s808 = smul.u32 32, %s15
      %p809 = scmp.lt.s32.totalorder %s808, 63
      %s810 = scalar_select %p809, %s808, 63
      %s811 = smul.addr %s810, 4
      %s812 = scalar_lea.vmem %s2, %s811
      %p813 = scmp.lt.s32.totalorder %s15, 1
      %s814 = scalar_select %p813, %s15, 1
      %s815 = smul.addr %s814, 8
      %s816 = scalar_lea.vmem %s3, %s815
      // Predicated region
      $region29: #{discriminator_forward.6} parent=27 // pred_check
        %p817 = pneg %p80
      $region30: #{discriminator_forward.6} parent=27 // pred_check_branch
        %819 = sbr.rel (%p817) target = $region32
      $region31: #{discriminator_forward.6} parent=27 // pred_region
        %s820 = smul.u32 32, %s15
      $region32: #{discriminator_forward.6} parent=27 // pred_fallthru
        _
      // Predicated region
      $region33: #{discriminator_forward.6} parent=27 // pred_check
        %p821 = pneg %p106
      $region34: #{discriminator_forward.6} parent=27 // pred_check_branch
        %823 = sbr.rel (%p821) target = $region36
      $region35: #{discriminator_forward.6} parent=27 // pred_region
        _
      $region36: #{discriminator_forward.6} parent=27 // pred_fallthru
        _
    $region28: #{discriminator_forward.6} parent=5 // pred_fallthru
      _
    %p824 = scmp.le.s32.totalorder 2, %s10
    // Predicated region
    $region37: #{discriminator_forward.6} parent=5 // pred_check
      %p825 = pneg %p824
    $region38: #{discriminator_forward.6} parent=5 // pred_check_branch
      %827 = sbr.rel (%p825) target = $region40
    $region39: #{discriminator_forward.6} parent=5 // pred_region
      %s828 = ssub.s32 %s10, 2
      // Predicated region
      $region41: #{discriminator_forward.6} parent=39 // pred_check
        %p829 = pneg %p86
      $region42: #{discriminator_forward.6} parent=39 // pred_check_branch
        %831 = sbr.rel (%p829) target = $region44
      $region43: #{discriminator_forward.6} parent=39 // pred_region
        %s832 = smul.u32 32, %s16
        %p833 = scmp.lt.s32.totalorder %s832, 63
        %s834 = scalar_select %p833, %s832, 63
        %s835 = smul.addr %s834, 4
        %s836 = scalar_lea.vmem %s2, %s835
      $region44: #{discriminator_forward.6} parent=39 // pred_fallthru
        _
      // Predicated region
      $region45: #{discriminator_forward.6} parent=39 // pred_check
        %p837 = pneg %p112
      $region46: #{discriminator_forward.6} parent=39 // pred_check_branch
        %839 = sbr.rel (%p837) target = $region48
      $region47: #{discriminator_forward.6} parent=39 // pred_region
        %p840 = scmp.lt.s32.totalorder %s16, 1
        %s841 = scalar_select %p840, %s16, 1
        %s842 = smul.addr %s841, 8
        %s843 = scalar_lea.vmem %s3, %s842
      $region48: #{discriminator_forward.6} parent=39 // pred_fallthru
        _
    $region40: #{discriminator_forward.6} parent=5 // pred_fallthru
      _
  $region6: #{discriminator_forward.6} parent=0 // loop_footer
    %s14 = sadd.s32 1, %s10
  $region7: #{discriminator_forward.6} parent=0 // loop_footer_branch
    %9 = sbr.rel target = $region3
  $region8: #{discriminator_forward.6} parent=0 // loop_exit
    _

// kernel: discriminator_forward.7
$region0: #{discriminator_forward.7}
  #allocation0 [shape = 'u32[]', space=smem, size = 0x4, offset = 0x4, fixed_abs, tag = 'smem constant byte address 0x4 - core index']
  #allocation1 [shape = 'u32[144,128]{1,0:T(1,128)}', space=vmem, size = 0x12000, scoped, tag = 'internal scratch']
  %s0 = inlined_call_operand.vmem [shape: bf16[128,256], index: 0, kind: input, shape index: {}]
  %s1 = inlined_call_operand.vmem [shape: bf16[256,128], index: 1, kind: input, shape index: {}]
  %s2 = inlined_call_operand.vmem [shape: bf16[128,128], index: 2, kind: output, shape index: {0}]
  %s3 = inlined_call_operand.vmem [shape: f32[2,8,128], index: 3, kind: output, shape index: {1}]
  %4 = xla_tuple %s2, %s3
  %s5 = sld [smem:[#allocation0]]
  $region49: #{discriminator_forward.7} parent=0
    _
  %s7 = ssub.s32 1, %s5
  %s8 = scalar_select 0, %s7, %s5
  loop: start=0, step=1, limit=4
  $region2: #{discriminator_forward.7} parent=0 // loop_pre_header
    _
  $region3: #{discriminator_forward.7} parent=0 // loop_header
    %s10 = sphi 0, %s14
    %p11 = scmp.ge.s32.totalorder %s10, 4
    %s20 = sphi 0, %s22
    %s23 = sphi 0, %s20
    %s24 = sphi 0, %s23
    %s40 = sphi 0, %s24
    %s44 = sphi 0, %s44
    %s46 = sphi 0, %s44
    %s47 = sphi 0, %s46
    %s61 = sphi 0, %s47
    %s67 = sphi 0, %s69
    %s70 = sphi 0, %s67
    %s71 = sphi 0, %s70
    %s87 = sphi 0, %s71
    %s93 = sphi 0, %s95
    %s96 = sphi 0, %s93
    %s97 = sphi 0, %s96
    %s113 = sphi 0, %s97
  $region4: #{discriminator_forward.7} parent=0 // loop_header_branch
    %13 = sbr.rel (%p11) target = $region8
  $region5: #{discriminator_forward.7} parent=0 // loop_body
    %s15 = ssub.s32 %s10, 1
    %s16 = ssub.s32 %s10, 2
    %s17 = sadd.s32 %s10, 1
    %s18 = ssub.s32 %s10, %s17
    %p19 = scmp.eq.s32.totalorder %s18, 0
    %s21 = sadd.s32 %s20, 1
    %s22 = scalar_select %p19, %s20, %s21
    %p25 = pneg %p19
    %p26 = scmp.eq.s32.totalorder %s10, 1
    %p27 = por %p25, %p26
    %p28 = scmp.ne.s32.totalorder %s20, %s23
    %p29 = scmp.eq.s32.totalorder %s10, 0
    %p30 = por %p28, %p29
    %p31 = scmp.ne.s32.totalorder %s20, %s23
    %p32 = scmp.eq.s32.totalorder %s15, 1
    %p33 = por %p31, %p32
    %p34 = scmp.ne.s32.totalorder %s23, %s24
    %p35 = scmp.eq.s32.totalorder %s15, 0
    %p36 = por %p34, %p35
    %p37 = scmp.ne.s32.totalorder %s23, %s24
    %p38 = scmp.eq.s32.totalorder %s16, 1
    %p39 = por %p37, %p38
    %p41 = scmp.ne.s32.totalorder %s24, %s40
    %p42 = scmp.eq.s32.totalorder %s16, 0
    %p43 = por %p41, %p42
    %s45 = sadd.s32 %s44, 1
    %p48 = scmp.eq.s32.totalorder %s10, 1
    %p49 = scmp.ne.s32.totalorder %s44, %s46
    %p50 = scmp.eq.s32.totalorder %s10, 0
    %p51 = por %p49, %p50
    %p52 = scmp.ne.s32.totalorder %s44, %s46
    %p53 = scmp.eq.s32.totalorder %s15, 1
    %p54 = por %p52, %p53
    %p55 = scmp.ne.s32.totalorder %s46, %s47
    %p56 = scmp.eq.s32.totalorder %s15, 0
    %p57 = por %p55, %p56
    %p58 = scmp.ne.s32.totalorder %s46, %s47
    %p59 = scmp.eq.s32.totalorder %s16, 1
    %p60 = por %p58, %p59
    %p62 = scmp.ne.s32.totalorder %s47, %s61
    %p63 = scmp.eq.s32.totalorder %s16, 0
    %p64 = por %p62, %p63
    %s65 = ssub.s32 %s10, %s17
    %p66 = scmp.eq.s32.totalorder %s65, 0
    %s68 = sadd.s32 %s67, 1
    %s69 = scalar_select %p66, %s67, %s68
    %p72 = pneg %p66
    %p73 = scmp.eq.s32.totalorder %s10, 1
    %p74 = por %p72, %p73
    %p75 = scmp.ne.s32.totalorder %s67, %s70
    %p76 = scmp.eq.s32.totalorder %s10, 0
    %p77 = por %p75, %p76
    %p78 = scmp.ne.s32.totalorder %s67, %s70
    %p79 = scmp.eq.s32.totalorder %s15, 1
    %p80 = por %p78, %p79
    %p81 = scmp.ne.s32.totalorder %s70, %s71
    %p82 = scmp.eq.s32.totalorder %s15, 0
    %p83 = por %p81, %p82
    %p84 = scmp.ne.s32.totalorder %s70, %s71
    %p85 = scmp.eq.s32.totalorder %s16, 1
    %p86 = por %p84, %p85
    %p88 = scmp.ne.s32.totalorder %s71, %s87
    %p89 = scmp.eq.s32.totalorder %s16, 0
    %p90 = por %p88, %p89
    %s91 = ssub.s32 %s10, %s17
    %p92 = scmp.eq.s32.totalorder %s91, 0
    %s94 = sadd.s32 %s93, 1
    %s95 = scalar_select %p92, %s93, %s94
    %p98 = pneg %p92
    %p99 = scmp.eq.s32.totalorder %s10, 1
    %p100 = por %p98, %p99
    %p101 = scmp.ne.s32.totalorder %s93, %s96
    %p102 = scmp.eq.s32.totalorder %s10, 0
    %p103 = por %p101, %p102
    %p104 = scmp.ne.s32.totalorder %s93, %s96
    %p105 = scmp.eq.s32.totalorder %s15, 1
    %p106 = por %p104, %p105
    %p107 = scmp.ne.s32.totalorder %s96, %s97
    %p108 = scmp.eq.s32.totalorder %s15, 0
    %p109 = por %p107, %p108
    %p110 = scmp.ne.s32.totalorder %s96, %s97
    %p111 = scmp.eq.s32.totalorder %s16, 1
    %p112 = por %p110, %p111
    %p114 = scmp.ne.s32.totalorder %s97, %s113
    %p115 = scmp.eq.s32.totalorder %s16, 0
    %p116 = por %p114, %p115
    %p117 = scmp.le.s32.totalorder 1, %s10
    %p118 = scmp.lt.s32.totalorder %s10, 3
    %p119 = pnand %p117, %p118
    %p120 = pneg %p119
    // Predicated region
    $region9: #{discriminator_forward.7} parent=5 // pred_check
      _
    $region10: #{discriminator_forward.7} parent=5 // pred_check_branch
      %122 = sbr.rel (%p119) target = $region12
    $region11: #{discriminator_forward.7} parent=5 // pred_region
      %s123 = ssub.s32 %s10, 1
      // Predicated region
      $region13: #{discriminator_forward.7} parent=11 // pred_check
        %p124 = pneg %p57
      $region14: #{discriminator_forward.7} parent=11 // pred_check_branch
        %126 = sbr.rel (%p124) target = $region16
      $region15: #{discriminator_forward.7} parent=11 // pred_region
        _
      $region16: #{discriminator_forward.7} parent=11 // pred_fallthru
        _
    $region12: #{discriminator_forward.7} parent=5 // pred_fallthru
      _
    %p127 = scmp.lt.s32.totalorder %s10, 2
    // Predicated region
    $region17: #{discriminator_forward.7} parent=5 // pred_check
      %p128 = pneg %p127
    $region18: #{discriminator_forward.7} parent=5 // pred_check_branch
      %130 = sbr.rel (%p128) target = $region20
    $region19: #{discriminator_forward.7} parent=5 // pred_region
      // Predicated region
      $region21: #{discriminator_forward.7} parent=19 // pred_check
        %p131 = pneg %p30
      $region22: #{discriminator_forward.7} parent=19 // pred_check_branch
        %133 = sbr.rel (%p131) target = $region24
      $region23: #{discriminator_forward.7} parent=19 // pred_region
        %s134 = smul.u32 8, %s10
        %p135 = scmp.lt.s32.totalorder %s134, 15
        %s136 = scalar_select %p135, %s134, 15
        %s137 = smul.addr %s136, 2
        %s138 = smul.addr %s137, 4
        %s139 = scalar_lea.vmem %s0, %s138
        %s140 = smul.u32 8, %s10
      $region24: #{discriminator_forward.7} parent=19 // pred_fallthru
        _
    $region20: #{discriminator_forward.7} parent=5 // pred_fallthru
      _
    %p141 = scmp.le.s32.totalorder 1, %s10
    %p142 = scmp.lt.s32.totalorder %s10, 3
    %p143 = pnand %p141, %p142
    %p144 = pneg %p143
    // Predicated region
    $region25: #{discriminator_forward.7} parent=5 // pred_check
      _
    $region26: #{discriminator_forward.7} parent=5 // pred_check_branch
      %146 = sbr.rel (%p143) target = $region28
    $region27: #{discriminator_forward.7} parent=5 // pred_region
      %s147 = ssub.s32 %s10, 1
      %s148 = smul.u32 8, %s15
      %p149 = scmp.lt.s32.totalorder %s148, 15
      %s150 = scalar_select %p149, %s148, 15
      %s151 = smul.addr %s150, 2
      %s152 = smul.addr %s151, 4
      %s153 = scalar_lea.vmem %s0, %s152
      %p154 = pneg %p36
      %p155 = pneg %p33
      %p156 = pneg %p57
      %p157 = pneg %p54
      %p158 = pneg %p83
      %p159 = pneg %p80
      %s160 = smul.u32 8, %s15
      %p161 = scmp.lt.s32.totalorder %s160, 15
      %s162 = scalar_select %p161, %s160, 15
      %s163 = smul.addr %s162, 4
      %s164 = scalar_lea.vmem %s2, %s163
      %p165 = pneg %p109
      %p166 = pneg %p106
      %p167 = scmp.lt.s32.totalorder %s15, 1
      %s168 = scalar_select %p167, %s15, 1
      %s169 = smul.addr %s168, 8
      %s170 = scalar_lea.vmem %s3, %s169
      %s171 = smul.u32 8, %s15
      %p172 = scmp.lt.s32.totalorder %s171, 15
      %s173 = scalar_select %p172, %s171, 15
      %s174 = smul.addr %s173, 2
      %s175 = smul.addr %s174, 4
      %s176 = scalar_lea.vmem %s0, %s175
      %s177 = smul.u32 8, %s15
      %s178 = smul.u32 8, %s15
      %p179 = scmp.lt.s32.totalorder %s178, 15
      %s180 = scalar_select %p179, %s178, 15
      %s181 = smul.addr %s180, 4
      %s182 = scalar_lea.vmem %s2, %s181
      %s183 = smul.u32 8, %s15
      %p184 = scmp.lt.s32.totalorder %s15, 1
      %s185 = scalar_select %p184, %s15, 1
      %s186 = smul.addr %s185, 8
      %s187 = scalar_lea.vmem %s3, %s186
      %v189 = vld [vmem:[%s176] sm:$0xff]
      %v190 = vld [vmem:[%s176 + $0x8] sm:$0xff]
      %v191 = vld [vmem:[%s176 + $0x10] sm:$0xff]
      %v192 = vld [vmem:[%s176 + $0x18] sm:$0xff]
      %v193 = vld [vmem:[%s176 + $0x20] sm:$0xff]
      %v194 = vld [vmem:[%s176 + $0x28] sm:$0xff]
      %v195 = vld [vmem:[%s176 + $0x30] sm:$0xff]
      %v196 = vld [vmem:[%s176 + $0x38] sm:$0xff]
      %v197 = vld [vmem:[%s1] sm:$0xf]
      %v198 = vld [vmem:[%s1 + $0x4] sm:$0xf]
      %v199 = vld [vmem:[%s1 + $0x8] sm:$0xf]
      %v200 = vld [vmem:[%s1 + $0xc] sm:$0xf]
      %v201 = vld [vmem:[%s1 + $0x10] sm:$0xf]
      %v202 = vld [vmem:[%s1 + $0x14] sm:$0xf]
      %v203 = vld [vmem:[%s1 + $0x18] sm:$0xf]
      %v204 = vld [vmem:[%s1 + $0x1c] sm:$0xf]
      %v205 = vld [vmem:[%s1 + $0x20] sm:$0xf]
      %v206 = vld [vmem:[%s1 + $0x24] sm:$0xf]
      %v207 = vld [vmem:[%s1 + $0x28] sm:$0xf]
      %v208 = vld [vmem:[%s1 + $0x2c] sm:$0xf]
      %v209 = vld [vmem:[%s1 + $0x30] sm:$0xf]
      %v210 = vld [vmem:[%s1 + $0x34] sm:$0xf]
      %v211 = vld [vmem:[%s1 + $0x38] sm:$0xf]
      %v212 = vld [vmem:[%s1 + $0x3c] sm:$0xf]
      %v213 = vld [vmem:[%s1 + $0x40] sm:$0xf]
      %v214 = vld [vmem:[%s1 + $0x44] sm:$0xf]
      %v215 = vld [vmem:[%s1 + $0x48] sm:$0xf]
      %v216 = vld [vmem:[%s1 + $0x4c] sm:$0xf]
      %v217 = vld [vmem:[%s1 + $0x50] sm:$0xf]
      %v218 = vld [vmem:[%s1 + $0x54] sm:$0xf]
      %v219 = vld [vmem:[%s1 + $0x58] sm:$0xf]
      %v220 = vld [vmem:[%s1 + $0x5c] sm:$0xf]
      %v221 = vld [vmem:[%s1 + $0x60] sm:$0xf]
      %v222 = vld [vmem:[%s1 + $0x64] sm:$0xf]
      %v223 = vld [vmem:[%s1 + $0x68] sm:$0xf]
      %v224 = vld [vmem:[%s1 + $0x6c] sm:$0xf]
      %v225 = vld [vmem:[%s1 + $0x70] sm:$0xf]
      %v226 = vld [vmem:[%s1 + $0x74] sm:$0xf]
      %v227 = vld [vmem:[%s1 + $0x78] sm:$0xf]
      %v228 = vld [vmem:[%s1 + $0x7c] sm:$0xf]
      %v237 = vunpack.c.l.b16 %v189
      %v238 = vunpack.c.h.b16 %v189
      %v239 = vunpack.c.l.b16 %v190
      %v240 = vunpack.c.h.b16 %v190
      %v241 = vunpack.c.l.b16 %v191
      %v242 = vunpack.c.h.b16 %v191
      %v243 = vunpack.c.l.b16 %v192
      %v244 = vunpack.c.h.b16 %v192
      %v245 = vunpack.c.l.b16 %v193
      %v246 = vunpack.c.h.b16 %v193
      %v247 = vunpack.c.l.b16 %v194
      %v248 = vunpack.c.h.b16 %v194
      %v249 = vunpack.c.l.b16 %v195
      %v250 = vunpack.c.h.b16 %v195
      %v251 = vunpack.c.l.b16 %v196
      %v252 = vunpack.c.h.b16 %v196
      %v253 = vpack.c.b16 %v239, %v237
      %v254 = vpack.c.b16 %v240, %v238
      %v255 = vpack.c.b16 %v243, %v241
      %v256 = vpack.c.b16 %v244, %v242
      %v257 = vpack.c.b16 %v247, %v245
      %v258 = vpack.c.b16 %v248, %v246
      %v259 = vpack.c.b16 %v251, %v249
      %v260 = vpack.c.b16 %v252, %v250
      %v301 = vunpack.c.l.b16 %v197
      %v302 = vunpack.c.l.b16 %v198
      %v303 = vunpack.c.l.b16 %v199
      %v304 = vunpack.c.l.b16 %v200
      %v305 = vunpack.c.l.b16 %v201
      %v306 = vunpack.c.l.b16 %v202
      %v307 = vunpack.c.l.b16 %v203
      %v308 = vunpack.c.l.b16 %v204
      %v309 = vunpack.c.l.b16 %v205
      %v310 = vunpack.c.l.b16 %v206
      %v311 = vunpack.c.l.b16 %v207
      %v312 = vunpack.c.l.b16 %v208
      %v313 = vunpack.c.l.b16 %v209
      %v314 = vunpack.c.l.b16 %v210
      %v315 = vunpack.c.l.b16 %v211
      %v316 = vunpack.c.l.b16 %v212
      %v317 = vunpack.c.l.b16 %v213
      %v318 = vunpack.c.l.b16 %v214
      %v319 = vunpack.c.l.b16 %v215
      %v320 = vunpack.c.l.b16 %v216
      %v321 = vunpack.c.l.b16 %v217
      %v322 = vunpack.c.l.b16 %v218
      %v323 = vunpack.c.l.b16 %v219
      %v324 = vunpack.c.l.b16 %v220
      %v325 = vunpack.c.l.b16 %v221
      %v326 = vunpack.c.l.b16 %v222
      %v327 = vunpack.c.l.b16 %v223
      %v328 = vunpack.c.l.b16 %v224
      %v329 = vunpack.c.l.b16 %v225
      %v330 = vunpack.c.l.b16 %v226
      %v331 = vunpack.c.l.b16 %v227
      %v332 = vunpack.c.l.b16 %v228
      %v333 = vpack.c.b16 %v302, %v301
      %v334 = vpack.c.b16 %v304, %v303
      %v335 = vpack.c.b16 %v306, %v305
      %v336 = vpack.c.b16 %v308, %v307
      %v337 = vpack.c.b16 %v310, %v309
      %v338 = vpack.c.b16 %v312, %v311
      %v339 = vpack.c.b16 %v314, %v313
      %v340 = vpack.c.b16 %v316, %v315
      %v341 = vpack.c.b16 %v318, %v317
      %v342 = vpack.c.b16 %v320, %v319
      %v343 = vpack.c.b16 %v322, %v321
      %v344 = vpack.c.b16 %v324, %v323
      %v345 = vpack.c.b16 %v326, %v325
      %v346 = vpack.c.b16 %v328, %v327
      %v347 = vpack.c.b16 %v330, %v329
      %v348 = vpack.c.b16 %v332, %v331
      %365 = vmatprep.subr.bf16.mxu0 0
      %366 = vmatpush1.bf16.msra.mxu0 %v333
      %367 = vmatprep.subr.bf16.mxu0 0
      %368 = vmatpush1.bf16.msra.mxu0 %v334
      %369 = vmatprep.subr.bf16.mxu0 0
      %370 = vmatpush1.bf16.msra.mxu0 %v335
      %371 = vmatprep.subr.bf16.mxu0 0
      %372 = vmatpush1.bf16.msra.mxu0 %v336
      %373 = vmatprep.subr.bf16.mxu0 0
      %374 = vmatpush1.bf16.msra.mxu0 %v337
      %375 = vmatprep.subr.bf16.mxu0 0
      %376 = vmatpush1.bf16.msra.mxu0 %v338
      %377 = vmatprep.subr.bf16.mxu0 0
      %378 = vmatpush1.bf16.msra.mxu0 %v339
      %379 = vmatprep.subr.bf16.mxu0 0
      %380 = vmatpush1.bf16.msra.mxu0 %v340
      %381 = vmatprep.subr.bf16.mxu0 0
      %382 = vmatpush1.bf16.msra.mxu0 %v341
      %383 = vmatprep.subr.bf16.mxu0 0
      %384 = vmatpush1.bf16.msra.mxu0 %v342
      %385 = vmatprep.subr.bf16.mxu0 0
      %386 = vmatpush1.bf16.msra.mxu0 %v343
      %387 = vmatprep.subr.bf16.mxu0 0
      %388 = vmatpush1.bf16.msra.mxu0 %v344
      %389 = vmatprep.subr.bf16.mxu0 0
      %390 = vmatpush1.bf16.msra.mxu0 %v345
      %391 = vmatprep.subr.bf16.mxu0 0
      %392 = vmatpush1.bf16.msra.mxu0 %v346
      %393 = vmatprep.subr.bf16.mxu0 0
      %394 = vmatpush1.bf16.msra.mxu0 %v347
      %395 = vmatprep.subr.bf16.mxu0 0
      %396 = vmatpush1.bf16.msra.mxu0 %v348
      %397 = vmatprep.mubr.bf16.mxu0 %v254
      %398 = vmatmul.mubr.bf16.gmra.mrb[0].mxu0 %v253
      %v399 = vpop.f32.mrb[0].mxu0
      %v400 = vadd.f32 0.0, %v399
      %v401 = vpop.f32.mrb[0].mxu0
      %v402 = vpop.f32.mrb[0].mxu0
      %v403 = vadd.f32 0.0, %v402
      %v404 = vpop.f32.mrb[0].mxu0
      %405 = vmatprep.mubr.bf16.mxu0 %v256
      %406 = vmatmul.mubr.bf16.gmra.mrb[0].mxu0 %v255
      %v407 = vpop.f32.mrb[0].mxu0
      %v408 = vadd.f32 0.0, %v407
      %v409 = vpop.f32.mrb[0].mxu0
      %v410 = vpop.f32.mrb[0].mxu0
      %v411 = vadd.f32 0.0, %v410
      %v412 = vpop.f32.mrb[0].mxu0
      %413 = vmatprep.mubr.bf16.mxu0 %v258
      %414 = vmatmul.mubr.bf16.gmra.mrb[0].mxu0 %v257
      %v415 = vpop.f32.mrb[0].mxu0
      %v416 = vadd.f32 0.0, %v415
      %v417 = vpop.f32.mrb[0].mxu0
      %v418 = vpop.f32.mrb[0].mxu0
      %v419 = vadd.f32 0.0, %v418
      %v420 = vpop.f32.mrb[0].mxu0
      %421 = vmatprep.mubr.bf16.mxu0 %v260
      %422 = vmatmul.mubr.bf16.gmra.mrb[0].mxu0 %v259
      %v423 = vpop.f32.mrb[0].mxu0
      %v424 = vadd.f32 0.0, %v423
      %v425 = vpop.f32.mrb[0].mxu0
      %v426 = vpop.f32.mrb[0].mxu0
      %v427 = vadd.f32 0.0, %v426
      %v428 = vpop.f32.mrb[0].mxu0
      %429 = vdwg.mxu0
      %v430 = vpack.c.bf16 %v403, %v400
      %v431 = vpack.c.bf16 %v411, %v408
      %v432 = vpack.c.bf16 %v419, %v416
      %v433 = vpack.c.bf16 %v427, %v424
      %v438 = vunpack.c.l.b16 %v430
      %v439 = vunpack.c.h.b16 %v430
      %v440 = vunpack.c.l.b16 %v431
      %v441 = vunpack.c.h.b16 %v431
      %v442 = vunpack.c.l.b16 %v432
      %v443 = vunpack.c.h.b16 %v432
      %v444 = vunpack.c.l.b16 %v433
      %v445 = vunpack.c.h.b16 %v433
      %v446 = vpack.c.b16 %v438, %v438
      %v447 = vpack.c.b16 %v439, %v439
      %v448 = vpack.c.b16 %v440, %v440
      %v449 = vpack.c.b16 %v441, %v441
      %v450 = vpack.c.b16 %v442, %v442
      %v451 = vpack.c.b16 %v443, %v443
      %v452 = vpack.c.b16 %v444, %v444
      %v453 = vpack.c.b16 %v445, %v445
      %462 = vst [vmem:[%s182] sm:$0xf] %v446
      %463 = vst [vmem:[%s182 + $0x4] sm:$0xf] %v447
      %464 = vst [vmem:[%s182 + $0x8] sm:$0xf] %v448
      %465 = vst [vmem:[%s182 + $0xc] sm:$0xf] %v449
      %466 = vst [vmem:[%s182 + $0x10] sm:$0xf] %v450
      %467 = vst [vmem:[%s182 + $0x14] sm:$0xf] %v451
      %468 = vst [vmem:[%s182 + $0x18] sm:$0xf] %v452
      %469 = vst [vmem:[%s182 + $0x1c] sm:$0xf] %v453
      %470 = vst [vmem:[%s187] sm:$0xff] 0.0
      %v471 = vadd.f32 %v400, %v403
      %v472 = vadd.f32 %v471, %v408
      %v473 = vadd.f32 %v472, %v411
      %v474 = vadd.f32 %v473, %v416
      %v475 = vadd.f32 %v474, %v419
      %v476 = vadd.f32 %v475, %v424
      %v477 = vadd.f32 %v476, %v427
      %v478 = vrot.slane %v477, 4
      %v479 = vadd.f32 %v477, %v478
      %v480 = vrot.slane %v479, 2
      %v481 = vadd.f32 %v479, %v480
      %v482 = vrot.slane %v481, 1
      %v483 = vadd.f32 %v481, %v482
      %484 = vst [vmem:[%s187] sm:$0x1] %v483
      %v485 = vmul.f32 %v400, %v400
      %v486 = vmul.f32 %v403, %v403
      %v487 = vmul.f32 %v408, %v408
      %v488 = vmul.f32 %v411, %v411
      %v489 = vmul.f32 %v416, %v416
      %v490 = vmul.f32 %v419, %v419
      %v491 = vmul.f32 %v424, %v424
      %v492 = vmul.f32 %v427, %v427
      %v493 = vadd.f32 %v485, %v486
      %v494 = vadd.f32 %v493, %v487
      %v495 = vadd.f32 %v494, %v488
      %v496 = vadd.f32 %v495, %v489
      %v497 = vadd.f32 %v496, %v490
      %v498 = vadd.f32 %v497, %v491
      %v499 = vadd.f32 %v498, %v492
      %v500 = vrot.slane %v499, 4
      %v501 = vadd.f32 %v499, %v500
      %v502 = vrot.slane %v501, 2
      %v503 = vadd.f32 %v501, %v502
      %v504 = vrot.slane %v503, 1
      %v505 = vadd.f32 %v503, %v504
      %506 = vst [vmem:[%s187 + $0x1] sm:$0x1] %v505
      %s507 = smul.u32 8, %s15
      %p508 = scmp.lt.s32.totalorder %s507, 15
      %s509 = scalar_select %p508, %s507, 15
      %s510 = smul.addr %s509, 4
      %s511 = scalar_lea.vmem %s2, %s510
      %p512 = scmp.lt.s32.totalorder %s15, 1
      %s513 = scalar_select %p512, %s15, 1
      %s514 = smul.addr %s513, 8
      %s515 = scalar_lea.vmem %s3, %s514
      // Predicated region
      $region29: #{discriminator_forward.7} parent=27 // pred_check
        %p516 = pneg %p80
      $region30: #{discriminator_forward.7} parent=27 // pred_check_branch
        %518 = sbr.rel (%p516) target = $region32
      $region31: #{discriminator_forward.7} parent=27 // pred_region
        %s519 = smul.u32 8, %s15
      $region32: #{discriminator_forward.7} parent=27 // pred_fallthru
        _
      // Predicated region
      $region33: #{discriminator_forward.7} parent=27 // pred_check
        %p520 = pneg %p106
      $region34: #{discriminator_forward.7} parent=27 // pred_check_branch
        %522 = sbr.rel (%p520) target = $region36
      $region35: #{discriminator_forward.7} parent=27 // pred_region
        _
      $region36: #{discriminator_forward.7} parent=27 // pred_fallthru
        _
    $region28: #{discriminator_forward.7} parent=5 // pred_fallthru
      _
    %p523 = scmp.le.s32.totalorder 2, %s10
    // Predicated region
    $region37: #{discriminator_forward.7} parent=5 // pred_check
      %p524 = pneg %p523
    $region38: #{discriminator_forward.7} parent=5 // pred_check_branch
      %526 = sbr.rel (%p524) target = $region40
    $region39: #{discriminator_forward.7} parent=5 // pred_region
      %s527 = ssub.s32 %s10, 2
      // Predicated region
      $region41: #{discriminator_forward.7} parent=39 // pred_check
        %p528 = pneg %p86
      $region42: #{discriminator_forward.7} parent=39 // pred_check_branch
        %530 = sbr.rel (%p528) target = $region44
      $region43: #{discriminator_forward.7} parent=39 // pred_region
        %s531 = smul.u32 8, %s16
        %p532 = scmp.lt.s32.totalorder %s531, 15
        %s533 = scalar_select %p532, %s531, 15
        %s534 = smul.addr %s533, 4
        %s535 = scalar_lea.vmem %s2, %s534
      $region44: #{discriminator_forward.7} parent=39 // pred_fallthru
        _
      // Predicated region
      $region45: #{discriminator_forward.7} parent=39 // pred_check
        %p536 = pneg %p112
      $region46: #{discriminator_forward.7} parent=39 // pred_check_branch
        %538 = sbr.rel (%p536) target = $region48
      $region47: #{discriminator_forward.7} parent=39 // pred_region
        %p539 = scmp.lt.s32.totalorder %s16, 1
        %s540 = scalar_select %p539, %s16, 1
        %s541 = smul.addr %s540, 8
        %s542 = scalar_lea.vmem %s3, %s541
      $region48: #{discriminator_forward.7} parent=39 // pred_fallthru
        _
    $region40: #{discriminator_forward.7} parent=5 // pred_fallthru
      _
  $region6: #{discriminator_forward.7} parent=0 // loop_footer
    %s14 = sadd.s32 1, %s10
  $region7: #{discriminator_forward.7} parent=0 // loop_footer_branch
    %9 = sbr.rel target = $region3
  $region8: #{discriminator_forward.7} parent=0 // loop_exit
    _

// kernel: discriminator_forward.8
$region0: #{discriminator_forward.8}
  #allocation0 [shape = 'u32[]', space=smem, size = 0x4, offset = 0x4, fixed_abs, tag = 'smem constant byte address 0x4 - core index']
  #allocation1 [shape = 'u32[144,128]{1,0:T(1,128)}', space=vmem, size = 0x12000, scoped, tag = 'internal scratch']
  %s0 = inlined_call_operand.vmem [shape: bf16[32,512], index: 0, kind: input, shape index: {}]
  %s1 = inlined_call_operand.vmem [shape: bf16[512,128], index: 1, kind: input, shape index: {}]
  %s2 = inlined_call_operand.vmem [shape: bf16[32,128], index: 2, kind: output, shape index: {0}]
  %s3 = inlined_call_operand.vmem [shape: f32[2,8,128], index: 3, kind: output, shape index: {1}]
  %4 = xla_tuple %s2, %s3
  %s5 = sld [smem:[#allocation0]]
  $region49: #{discriminator_forward.8} parent=0
    _
  %s7 = ssub.s32 1, %s5
  %s8 = scalar_select 0, %s7, %s5
  loop: start=0, step=1, limit=4
  $region2: #{discriminator_forward.8} parent=0 // loop_pre_header
    _
  $region3: #{discriminator_forward.8} parent=0 // loop_header
    %s10 = sphi 0, %s14
    %p11 = scmp.ge.s32.totalorder %s10, 4
    %s20 = sphi 0, %s22
    %s23 = sphi 0, %s20
    %s24 = sphi 0, %s23
    %s40 = sphi 0, %s24
    %s44 = sphi 0, %s44
    %s46 = sphi 0, %s44
    %s47 = sphi 0, %s46
    %s61 = sphi 0, %s47
    %s67 = sphi 0, %s69
    %s70 = sphi 0, %s67
    %s71 = sphi 0, %s70
    %s87 = sphi 0, %s71
    %s93 = sphi 0, %s95
    %s96 = sphi 0, %s93
    %s97 = sphi 0, %s96
    %s113 = sphi 0, %s97
  $region4: #{discriminator_forward.8} parent=0 // loop_header_branch
    %13 = sbr.rel (%p11) target = $region8
  $region5: #{discriminator_forward.8} parent=0 // loop_body
    %s15 = ssub.s32 %s10, 1
    %s16 = ssub.s32 %s10, 2
    %s17 = sadd.s32 %s10, 1
    %s18 = ssub.s32 %s10, %s17
    %p19 = scmp.eq.s32.totalorder %s18, 0
    %s21 = sadd.s32 %s20, 1
    %s22 = scalar_select %p19, %s20, %s21
    %p25 = pneg %p19
    %p26 = scmp.eq.s32.totalorder %s10, 1
    %p27 = por %p25, %p26
    %p28 = scmp.ne.s32.totalorder %s20, %s23
    %p29 = scmp.eq.s32.totalorder %s10, 0
    %p30 = por %p28, %p29
    %p31 = scmp.ne.s32.totalorder %s20, %s23
    %p32 = scmp.eq.s32.totalorder %s15, 1
    %p33 = por %p31, %p32
    %p34 = scmp.ne.s32.totalorder %s23, %s24
    %p35 = scmp.eq.s32.totalorder %s15, 0
    %p36 = por %p34, %p35
    %p37 = scmp.ne.s32.totalorder %s23, %s24
    %p38 = scmp.eq.s32.totalorder %s16, 1
    %p39 = por %p37, %p38
    %p41 = scmp.ne.s32.totalorder %s24, %s40
    %p42 = scmp.eq.s32.totalorder %s16, 0
    %p43 = por %p41, %p42
    %s45 = sadd.s32 %s44, 1
    %p48 = scmp.eq.s32.totalorder %s10, 1
    %p49 = scmp.ne.s32.totalorder %s44, %s46
    %p50 = scmp.eq.s32.totalorder %s10, 0
    %p51 = por %p49, %p50
    %p52 = scmp.ne.s32.totalorder %s44, %s46
    %p53 = scmp.eq.s32.totalorder %s15, 1
    %p54 = por %p52, %p53
    %p55 = scmp.ne.s32.totalorder %s46, %s47
    %p56 = scmp.eq.s32.totalorder %s15, 0
    %p57 = por %p55, %p56
    %p58 = scmp.ne.s32.totalorder %s46, %s47
    %p59 = scmp.eq.s32.totalorder %s16, 1
    %p60 = por %p58, %p59
    %p62 = scmp.ne.s32.totalorder %s47, %s61
    %p63 = scmp.eq.s32.totalorder %s16, 0
    %p64 = por %p62, %p63
    %s65 = ssub.s32 %s10, %s17
    %p66 = scmp.eq.s32.totalorder %s65, 0
    %s68 = sadd.s32 %s67, 1
    %s69 = scalar_select %p66, %s67, %s68
    %p72 = pneg %p66
    %p73 = scmp.eq.s32.totalorder %s10, 1
    %p74 = por %p72, %p73
    %p75 = scmp.ne.s32.totalorder %s67, %s70
    %p76 = scmp.eq.s32.totalorder %s10, 0
    %p77 = por %p75, %p76
    %p78 = scmp.ne.s32.totalorder %s67, %s70
    %p79 = scmp.eq.s32.totalorder %s15, 1
    %p80 = por %p78, %p79
    %p81 = scmp.ne.s32.totalorder %s70, %s71
    %p82 = scmp.eq.s32.totalorder %s15, 0
    %p83 = por %p81, %p82
    %p84 = scmp.ne.s32.totalorder %s70, %s71
    %p85 = scmp.eq.s32.totalorder %s16, 1
    %p86 = por %p84, %p85
    %p88 = scmp.ne.s32.totalorder %s71, %s87
    %p89 = scmp.eq.s32.totalorder %s16, 0
    %p90 = por %p88, %p89
    %s91 = ssub.s32 %s10, %s17
    %p92 = scmp.eq.s32.totalorder %s91, 0
    %s94 = sadd.s32 %s93, 1
    %s95 = scalar_select %p92, %s93, %s94
    %p98 = pneg %p92
    %p99 = scmp.eq.s32.totalorder %s10, 1
    %p100 = por %p98, %p99
    %p101 = scmp.ne.s32.totalorder %s93, %s96
    %p102 = scmp.eq.s32.totalorder %s10, 0
    %p103 = por %p101, %p102
    %p104 = scmp.ne.s32.totalorder %s93, %s96
    %p105 = scmp.eq.s32.totalorder %s15, 1
    %p106 = por %p104, %p105
    %p107 = scmp.ne.s32.totalorder %s96, %s97
    %p108 = scmp.eq.s32.totalorder %s15, 0
    %p109 = por %p107, %p108
    %p110 = scmp.ne.s32.totalorder %s96, %s97
    %p111 = scmp.eq.s32.totalorder %s16, 1
    %p112 = por %p110, %p111
    %p114 = scmp.ne.s32.totalorder %s97, %s113
    %p115 = scmp.eq.s32.totalorder %s16, 0
    %p116 = por %p114, %p115
    %p117 = scmp.le.s32.totalorder 1, %s10
    %p118 = scmp.lt.s32.totalorder %s10, 3
    %p119 = pnand %p117, %p118
    %p120 = pneg %p119
    // Predicated region
    $region9: #{discriminator_forward.8} parent=5 // pred_check
      _
    $region10: #{discriminator_forward.8} parent=5 // pred_check_branch
      %122 = sbr.rel (%p119) target = $region12
    $region11: #{discriminator_forward.8} parent=5 // pred_region
      %s123 = ssub.s32 %s10, 1
      // Predicated region
      $region13: #{discriminator_forward.8} parent=11 // pred_check
        %p124 = pneg %p57
      $region14: #{discriminator_forward.8} parent=11 // pred_check_branch
        %126 = sbr.rel (%p124) target = $region16
      $region15: #{discriminator_forward.8} parent=11 // pred_region
        _
      $region16: #{discriminator_forward.8} parent=11 // pred_fallthru
        _
    $region12: #{discriminator_forward.8} parent=5 // pred_fallthru
      _
    %p127 = scmp.lt.s32.totalorder %s10, 2
    // Predicated region
    $region17: #{discriminator_forward.8} parent=5 // pred_check
      %p128 = pneg %p127
    $region18: #{discriminator_forward.8} parent=5 // pred_check_branch
      %130 = sbr.rel (%p128) target = $region20
    $region19: #{discriminator_forward.8} parent=5 // pred_region
      // Predicated region
      $region21: #{discriminator_forward.8} parent=19 // pred_check
        %p131 = pneg %p30
      $region22: #{discriminator_forward.8} parent=19 // pred_check_branch
        %133 = sbr.rel (%p131) target = $region24
      $region23: #{discriminator_forward.8} parent=19 // pred_region
        %s134 = smul.u32 2, %s10
        %p135 = scmp.lt.s32.totalorder %s134, 3
        %s136 = scalar_select %p135, %s134, 3
        %s137 = smul.addr %s136, 4
        %s138 = smul.addr %s137, 4
        %s139 = scalar_lea.vmem %s0, %s138
        %s140 = smul.u32 2, %s10
      $region24: #{discriminator_forward.8} parent=19 // pred_fallthru
        _
    $region20: #{discriminator_forward.8} parent=5 // pred_fallthru
      _
    %p141 = scmp.le.s32.totalorder 1, %s10
    %p142 = scmp.lt.s32.totalorder %s10, 3
    %p143 = pnand %p141, %p142
    %p144 = pneg %p143
    // Predicated region
    $region25: #{discriminator_forward.8} parent=5 // pred_check
      _
    $region26: #{discriminator_forward.8} parent=5 // pred_check_branch
      %146 = sbr.rel (%p143) target = $region28
    $region27: #{discriminator_forward.8} parent=5 // pred_region
      %s147 = ssub.s32 %s10, 1
      %s148 = smul.u32 2, %s15
      %p149 = scmp.lt.s32.totalorder %s148, 3
      %s150 = scalar_select %p149, %s148, 3
      %s151 = smul.addr %s150, 4
      %s152 = smul.addr %s151, 4
      %s153 = scalar_lea.vmem %s0, %s152
      %p154 = pneg %p36
      %p155 = pneg %p33
      %p156 = pneg %p57
      %p157 = pneg %p54
      %p158 = pneg %p83
      %p159 = pneg %p80
      %s160 = smul.u32 2, %s15
      %p161 = scmp.lt.s32.totalorder %s160, 3
      %s162 = scalar_select %p161, %s160, 3
      %s163 = smul.addr %s162, 4
      %s164 = scalar_lea.vmem %s2, %s163
      %p165 = pneg %p109
      %p166 = pneg %p106
      %p167 = scmp.lt.s32.totalorder %s15, 1
      %s168 = scalar_select %p167, %s15, 1
      %s169 = smul.addr %s168, 8
      %s170 = scalar_lea.vmem %s3, %s169
      %s171 = smul.u32 2, %s15
      %p172 = scmp.lt.s32.totalorder %s171, 3
      %s173 = scalar_select %p172, %s171, 3
      %s174 = smul.addr %s173, 4
      %s175 = smul.addr %s174, 4
      %s176 = scalar_lea.vmem %s0, %s175
      %s177 = smul.u32 2, %s15
      %s178 = smul.u32 2, %s15
      %p179 = scmp.lt.s32.totalorder %s178, 3
      %s180 = scalar_select %p179, %s178, 3
      %s181 = smul.addr %s180, 4
      %s182 = scalar_lea.vmem %s2, %s181
      %s183 = smul.u32 2, %s15
      %p184 = scmp.lt.s32.totalorder %s15, 1
      %s185 = scalar_select %p184, %s15, 1
      %s186 = smul.addr %s185, 8
      %s187 = scalar_lea.vmem %s3, %s186
      %v189 = vld [vmem:[%s176] sm:$0xff]
      %v190 = vld [vmem:[%s176 + $0x8] sm:$0xff]
      %v191 = vld [vmem:[%s176 + $0x10] sm:$0xff]
      %v192 = vld [vmem:[%s176 + $0x18] sm:$0xff]
      %v193 = vld [vmem:[%s1] sm:$0xf]
      %v194 = vld [vmem:[%s1 + $0x4] sm:$0xf]
      %v195 = vld [vmem:[%s1 + $0x8] sm:$0xf]
      %v196 = vld [vmem:[%s1 + $0xc] sm:$0xf]
      %v197 = vld [vmem:[%s1 + $0x10] sm:$0xf]
      %v198 = vld [vmem:[%s1 + $0x14] sm:$0xf]
      %v199 = vld [vmem:[%s1 + $0x18] sm:$0xf]
      %v200 = vld [vmem:[%s1 + $0x1c] sm:$0xf]
      %v201 = vld [vmem:[%s1 + $0x20] sm:$0xf]
      %v202 = vld [vmem:[%s1 + $0x24] sm:$0xf]
      %v203 = vld [vmem:[%s1 + $0x28] sm:$0xf]
      %v204 = vld [vmem:[%s1 + $0x2c] sm:$0xf]
      %v205 = vld [vmem:[%s1 + $0x30] sm:$0xf]
      %v206 = vld [vmem:[%s1 + $0x34] sm:$0xf]
      %v207 = vld [vmem:[%s1 + $0x38] sm:$0xf]
      %v208 = vld [vmem:[%s1 + $0x3c] sm:$0xf]
      %v209 = vld [vmem:[%s1 + $0x40] sm:$0xf]
      %v210 = vld [vmem:[%s1 + $0x44] sm:$0xf]
      %v211 = vld [vmem:[%s1 + $0x48] sm:$0xf]
      %v212 = vld [vmem:[%s1 + $0x4c] sm:$0xf]
      %v213 = vld [vmem:[%s1 + $0x50] sm:$0xf]
      %v214 = vld [vmem:[%s1 + $0x54] sm:$0xf]
      %v215 = vld [vmem:[%s1 + $0x58] sm:$0xf]
      %v216 = vld [vmem:[%s1 + $0x5c] sm:$0xf]
      %v217 = vld [vmem:[%s1 + $0x60] sm:$0xf]
      %v218 = vld [vmem:[%s1 + $0x64] sm:$0xf]
      %v219 = vld [vmem:[%s1 + $0x68] sm:$0xf]
      %v220 = vld [vmem:[%s1 + $0x6c] sm:$0xf]
      %v221 = vld [vmem:[%s1 + $0x70] sm:$0xf]
      %v222 = vld [vmem:[%s1 + $0x74] sm:$0xf]
      %v223 = vld [vmem:[%s1 + $0x78] sm:$0xf]
      %v224 = vld [vmem:[%s1 + $0x7c] sm:$0xf]
      %v225 = vld [vmem:[%s1 + $0x80] sm:$0xf]
      %v226 = vld [vmem:[%s1 + $0x84] sm:$0xf]
      %v227 = vld [vmem:[%s1 + $0x88] sm:$0xf]
      %v228 = vld [vmem:[%s1 + $0x8c] sm:$0xf]
      %v229 = vld [vmem:[%s1 + $0x90] sm:$0xf]
      %v230 = vld [vmem:[%s1 + $0x94] sm:$0xf]
      %v231 = vld [vmem:[%s1 + $0x98] sm:$0xf]
      %v232 = vld [vmem:[%s1 + $0x9c] sm:$0xf]
      %v233 = vld [vmem:[%s1 + $0xa0] sm:$0xf]
      %v234 = vld [vmem:[%s1 + $0xa4] sm:$0xf]
      %v235 = vld [vmem:[%s1 + $0xa8] sm:$0xf]
      %v236 = vld [vmem:[%s1 + $0xac] sm:$0xf]
      %v237 = vld [vmem:[%s1 + $0xb0] sm:$0xf]
      %v238 = vld [vmem:[%s1 + $0xb4] sm:$0xf]
      %v239 = vld [vmem:[%s1 + $0xb8] sm:$0xf]
      %v240 = vld [vmem:[%s1 + $0xbc] sm:$0xf]
      %v241 = vld [vmem:[%s1 + $0xc0] sm:$0xf]
      %v242 = vld [vmem:[%s1 + $0xc4] sm:$0xf]
      %v243 = vld [vmem:[%s1 + $0xc8] sm:$0xf]
      %v244 = vld [vmem:[%s1 + $0xcc] sm:$0xf]
      %v245 = vld [vmem:[%s1 + $0xd0] sm:$0xf]
      %v246 = vld [vmem:[%s1 + $0xd4] sm:$0xf]
      %v247 = vld [vmem:[%s1 + $0xd8] sm:$0xf]
      %v248 = vld [vmem:[%s1 + $0xdc] sm:$0xf]
      %v249 = vld [vmem:[%s1 + $0xe0] sm:$0xf]
      %v250 = vld [vmem:[%s1 + $0xe4] sm:$0xf]
      %v251 = vld [vmem:[%s1 + $0xe8] sm:$0xf]
      %v252 = vld [vmem:[%s1 + $0xec] sm:$0xf]
      %v253 = vld [vmem:[%s1 + $0xf0] sm:$0xf]
      %v254 = vld [vmem:[%s1 + $0xf4] sm:$0xf]
      %v255 = vld [vmem:[%s1 + $0xf8] sm:$0xf]
      %v256 = vld [vmem:[%s1 + $0xfc] sm:$0xf]
      %v261 = vunpack.c.l.b16 %v189
      %v262 = vunpack.c.h.b16 %v189
      %v263 = vunpack.c.l.b16 %v190
      %v264 = vunpack.c.h.b16 %v190
      %v265 = vunpack.c.l.b16 %v191
      %v266 = vunpack.c.h.b16 %v191
      %v267 = vunpack.c.l.b16 %v192
      %v268 = vunpack.c.h.b16 %v192
      %v269 = vpack.c.b16 %v265, %v261
      %v270 = vpack.c.b16 %v266, %v262
      %v271 = vpack.c.b16 %v267, %v263
      %v272 = vpack.c.b16 %v268, %v264
      %v341 = vunpack.c.l.b16 %v193
      %v342 = vunpack.c.l.b16 %v194
      %v343 = vunpack.c.l.b16 %v195
      %v344 = vunpack.c.l.b16 %v196
      %v345 = vunpack.c.l.b16 %v197
      %v346 = vunpack.c.l.b16 %v198
      %v347 = vunpack.c.l.b16 %v199
      %v348 = vunpack.c.l.b16 %v200
      %v349 = vunpack.c.l.b16 %v201
      %v350 = vunpack.c.l.b16 %v202
      %v351 = vunpack.c.l.b16 %v203
      %v352 = vunpack.c.l.b16 %v204
      %v353 = vunpack.c.l.b16 %v205
      %v354 = vunpack.c.l.b16 %v206
      %v355 = vunpack.c.l.b16 %v207
      %v356 = vunpack.c.l.b16 %v208
      %v357 = vunpack.c.l.b16 %v209
      %v358 = vunpack.c.l.b16 %v210
      %v359 = vunpack.c.l.b16 %v211
      %v360 = vunpack.c.l.b16 %v212
      %v361 = vunpack.c.l.b16 %v213
      %v362 = vunpack.c.l.b16 %v214
      %v363 = vunpack.c.l.b16 %v215
      %v364 = vunpack.c.l.b16 %v216
      %v365 = vunpack.c.l.b16 %v217
      %v366 = vunpack.c.l.b16 %v218
      %v367 = vunpack.c.l.b16 %v219
      %v368 = vunpack.c.l.b16 %v220
      %v369 = vunpack.c.l.b16 %v221
      %v370 = vunpack.c.l.b16 %v222
      %v371 = vunpack.c.l.b16 %v223
      %v372 = vunpack.c.l.b16 %v224
      %v373 = vunpack.c.l.b16 %v225
      %v374 = vunpack.c.l.b16 %v226
      %v375 = vunpack.c.l.b16 %v227
      %v376 = vunpack.c.l.b16 %v228
      %v377 = vunpack.c.l.b16 %v229
      %v378 = vunpack.c.l.b16 %v230
      %v379 = vunpack.c.l.b16 %v231
      %v380 = vunpack.c.l.b16 %v232
      %v381 = vunpack.c.l.b16 %v233
      %v382 = vunpack.c.l.b16 %v234
      %v383 = vunpack.c.l.b16 %v235
      %v384 = vunpack.c.l.b16 %v236
      %v385 = vunpack.c.l.b16 %v237
      %v386 = vunpack.c.l.b16 %v238
      %v387 = vunpack.c.l.b16 %v239
      %v388 = vunpack.c.l.b16 %v240
      %v389 = vunpack.c.l.b16 %v241
      %v390 = vunpack.c.l.b16 %v242
      %v391 = vunpack.c.l.b16 %v243
      %v392 = vunpack.c.l.b16 %v244
      %v393 = vunpack.c.l.b16 %v245
      %v394 = vunpack.c.l.b16 %v246
      %v395 = vunpack.c.l.b16 %v247
      %v396 = vunpack.c.l.b16 %v248
      %v397 = vunpack.c.l.b16 %v249
      %v398 = vunpack.c.l.b16 %v250
      %v399 = vunpack.c.l.b16 %v251
      %v400 = vunpack.c.l.b16 %v252
      %v401 = vunpack.c.l.b16 %v253
      %v402 = vunpack.c.l.b16 %v254
      %v403 = vunpack.c.l.b16 %v255
      %v404 = vunpack.c.l.b16 %v256
      %v405 = vpack.c.b16 %v342, %v341
      %v406 = vpack.c.b16 %v344, %v343
      %v407 = vpack.c.b16 %v346, %v345
      %v408 = vpack.c.b16 %v348, %v347
      %v409 = vpack.c.b16 %v350, %v349
      %v410 = vpack.c.b16 %v352, %v351
      %v411 = vpack.c.b16 %v354, %v353
      %v412 = vpack.c.b16 %v356, %v355
      %v413 = vpack.c.b16 %v358, %v357
      %v414 = vpack.c.b16 %v360, %v359
      %v415 = vpack.c.b16 %v362, %v361
      %v416 = vpack.c.b16 %v364, %v363
      %v417 = vpack.c.b16 %v366, %v365
      %v418 = vpack.c.b16 %v368, %v367
      %v419 = vpack.c.b16 %v370, %v369
      %v420 = vpack.c.b16 %v372, %v371
      %v421 = vpack.c.b16 %v374, %v373
      %v422 = vpack.c.b16 %v376, %v375
      %v423 = vpack.c.b16 %v378, %v377
      %v424 = vpack.c.b16 %v380, %v379
      %v425 = vpack.c.b16 %v382, %v381
      %v426 = vpack.c.b16 %v384, %v383
      %v427 = vpack.c.b16 %v386, %v385
      %v428 = vpack.c.b16 %v388, %v387
      %v429 = vpack.c.b16 %v390, %v389
      %v430 = vpack.c.b16 %v392, %v391
      %v431 = vpack.c.b16 %v394, %v393
      %v432 = vpack.c.b16 %v396, %v395
      %v433 = vpack.c.b16 %v398, %v397
      %v434 = vpack.c.b16 %v400, %v399
      %v435 = vpack.c.b16 %v402, %v401
      %v436 = vpack.c.b16 %v404, %v403
      %469 = vmatprep.subr.bf16.mxu0 0
      %470 = vmatpush1.bf16.msra.mxu0 %v405
      %471 = vmatprep.subr.bf16.mxu0 0
      %472 = vmatpush1.bf16.msra.mxu0 %v406
      %473 = vmatprep.subr.bf16.mxu0 0
      %474 = vmatpush1.bf16.msra.mxu0 %v407
      %475 = vmatprep.subr.bf16.mxu0 0
      %476 = vmatpush1.bf16.msra.mxu0 %v408
      %477 = vmatprep.subr.bf16.mxu0 0
      %478 = vmatpush1.bf16.msra.mxu0 %v409
      %479 = vmatprep.subr.bf16.mxu0 0
      %480 = vmatpush1.bf16.msra.mxu0 %v410
      %481 = vmatprep.subr.bf16.mxu0 0
      %482 = vmatpush1.bf16.msra.mxu0 %v411
      %483 = vmatprep.subr.bf16.mxu0 0
      %484 = vmatpush1.bf16.msra.mxu0 %v412
      %485 = vmatprep.subr.bf16.mxu0 0
      %486 = vmatpush1.bf16.msra.mxu0 %v413
      %487 = vmatprep.subr.bf16.mxu0 0
      %488 = vmatpush1.bf16.msra.mxu0 %v414
      %489 = vmatprep.subr.bf16.mxu0 0
      %490 = vmatpush1.bf16.msra.mxu0 %v415
      %491 = vmatprep.subr.bf16.mxu0 0
      %492 = vmatpush1.bf16.msra.mxu0 %v416
      %493 = vmatprep.subr.bf16.mxu0 0
      %494 = vmatpush1.bf16.msra.mxu0 %v417
      %495 = vmatprep.subr.bf16.mxu0 0
      %496 = vmatpush1.bf16.msra.mxu0 %v418
      %497 = vmatprep.subr.bf16.mxu0 0
      %498 = vmatpush1.bf16.msra.mxu0 %v419
      %499 = vmatprep.subr.bf16.mxu0 0
      %500 = vmatpush1.bf16.msra.mxu0 %v420
      %501 = vmatprep.mubr.bf16.mxu0 %v270
      %502 = vmatmul.mubr.bf16.gmra.mrb[0].mxu0 %v269
      %v503 = vpop.f32.mrb[0].mxu0
      %v504 = vadd.f32 0.0, %v503
      %v505 = vpop.f32.mrb[0].mxu0
      %v506 = vpop.f32.mrb[0].mxu0
      %v507 = vadd.f32 0.0, %v506
      %v508 = vpop.f32.mrb[0].mxu0
      %509 = vdwg.mxu0
      %510 = vmatprep.subr.bf16.mxu0 0
      %511 = vmatpush1.bf16.msra.mxu0 %v421
      %512 = vmatprep.subr.bf16.mxu0 0
      %513 = vmatpush1.bf16.msra.mxu0 %v422
      %514 = vmatprep.subr.bf16.mxu0 0
      %515 = vmatpush1.bf16.msra.mxu0 %v423
      %516 = vmatprep.subr.bf16.mxu0 0
      %517 = vmatpush1.bf16.msra.mxu0 %v424
      %518 = vmatprep.subr.bf16.mxu0 0
      %519 = vmatpush1.bf16.msra.mxu0 %v425
      %520 = vmatprep.subr.bf16.mxu0 0
      %521 = vmatpush1.bf16.msra.mxu0 %v426
      %522 = vmatprep.subr.bf16.mxu0 0
      %523 = vmatpush1.bf16.msra.mxu0 %v427
      %524 = vmatprep.subr.bf16.mxu0 0
      %525 = vmatpush1.bf16.msra.mxu0 %v428
      %526 = vmatprep.subr.bf16.mxu0 0
      %527 = vmatpush1.bf16.msra.mxu0 %v429
      %528 = vmatprep.subr.bf16.mxu0 0
      %529 = vmatpush1.bf16.msra.mxu0 %v430
      %530 = vmatprep.subr.bf16.mxu0 0
      %531 = vmatpush1.bf16.msra.mxu0 %v431
      %532 = vmatprep.subr.bf16.mxu0 0
      %533 = vmatpush1.bf16.msra.mxu0 %v432
      %534 = vmatprep.subr.bf16.mxu0 0
      %535 = vmatpush1.bf16.msra.mxu0 %v433
      %536 = vmatprep.subr.bf16.mxu0 0
      %537 = vmatpush1.bf16.msra.mxu0 %v434
      %538 = vmatprep.subr.bf16.mxu0 0
      %539 = vmatpush1.bf16.msra.mxu0 %v435
      %540 = vmatprep.subr.bf16.mxu0 0
      %541 = vmatpush1.bf16.msra.mxu0 %v436
      %542 = vmatprep.mubr.bf16.mxu0 %v272
      %543 = vmatmul.mubr.bf16.gmra.mrb[0].mxu0 %v271
      %v544 = vpop.f32.mrb[0].mxu0
      %v545 = vadd.f32 %v504, %v544
      %v546 = vpop.f32.mrb[0].mxu0
      %v547 = vpop.f32.mrb[0].mxu0
      %v548 = vadd.f32 %v507, %v547
      %v549 = vpop.f32.mrb[0].mxu0
      %550 = vdwg.mxu0
      %v551 = vpack.c.bf16 %v548, %v545
      %v553 = vunpack.c.l.b16 %v551
      %v554 = vunpack.c.h.b16 %v551
      %v555 = vpack.c.b16 %v553, %v553
      %v556 = vpack.c.b16 %v554, %v554
      %559 = vst [vmem:[%s182] sm:$0xf] %v555
      %560 = vst [vmem:[%s182 + $0x4] sm:$0xf] %v556
      %561 = vst [vmem:[%s187] sm:$0xff] 0.0
      %v562 = vadd.f32 %v545, %v548
      %v563 = vrot.slane %v562, 4
      %v564 = vadd.f32 %v562, %v563
      %v565 = vrot.slane %v564, 2
      %v566 = vadd.f32 %v564, %v565
      %v567 = vrot.slane %v566, 1
      %v568 = vadd.f32 %v566, %v567
      %569 = vst [vmem:[%s187] sm:$0x1] %v568
      %v570 = vmul.f32 %v545, %v545
      %v571 = vmul.f32 %v548, %v548
      %v572 = vadd.f32 %v570, %v571
      %v573 = vrot.slane %v572, 4
      %v574 = vadd.f32 %v572, %v573
      %v575 = vrot.slane %v574, 2
      %v576 = vadd.f32 %v574, %v575
      %v577 = vrot.slane %v576, 1
      %v578 = vadd.f32 %v576, %v577
      %579 = vst [vmem:[%s187 + $0x1] sm:$0x1] %v578
      %s580 = smul.u32 2, %s15
      %p581 = scmp.lt.s32.totalorder %s580, 3
      %s582 = scalar_select %p581, %s580, 3
      %s583 = smul.addr %s582, 4
      %s584 = scalar_lea.vmem %s2, %s583
      %p585 = scmp.lt.s32.totalorder %s15, 1
      %s586 = scalar_select %p585, %s15, 1
      %s587 = smul.addr %s586, 8
      %s588 = scalar_lea.vmem %s3, %s587
      // Predicated region
      $region29: #{discriminator_forward.8} parent=27 // pred_check
        %p589 = pneg %p80
      $region30: #{discriminator_forward.8} parent=27 // pred_check_branch
        %591 = sbr.rel (%p589) target = $region32
      $region31: #{discriminator_forward.8} parent=27 // pred_region
        %s592 = smul.u32 2, %s15
      $region32: #{discriminator_forward.8} parent=27 // pred_fallthru
        _
      // Predicated region
      $region33: #{discriminator_forward.8} parent=27 // pred_check
        %p593 = pneg %p106
      $region34: #{discriminator_forward.8} parent=27 // pred_check_branch
        %595 = sbr.rel (%p593) target = $region36
      $region35: #{discriminator_forward.8} parent=27 // pred_region
        _
      $region36: #{discriminator_forward.8} parent=27 // pred_fallthru
        _
    $region28: #{discriminator_forward.8} parent=5 // pred_fallthru
      _
    %p596 = scmp.le.s32.totalorder 2, %s10
    // Predicated region
    $region37: #{discriminator_forward.8} parent=5 // pred_check
      %p597 = pneg %p596
    $region38: #{discriminator_forward.8} parent=5 // pred_check_branch
      %599 = sbr.rel (%p597) target = $region40
    $region39: #{discriminator_forward.8} parent=5 // pred_region
      %s600 = ssub.s32 %s10, 2
      // Predicated region
      $region41: #{discriminator_forward.8} parent=39 // pred_check
        %p601 = pneg %p86
      $region42: #{discriminator_forward.8} parent=39 // pred_check_branch
        %603 = sbr.rel (%p601) target = $region44
      $region43: #{discriminator_forward.8} parent=39 // pred_region
        %s604 = smul.u32 2, %s16
        %p605 = scmp.lt.s32.totalorder %s604, 3
        %s606 = scalar_select %p605, %s604, 3
        %s607 = smul.addr %s606, 4
        %s608 = scalar_lea.vmem %s2, %s607
      $region44: #{discriminator_forward.8} parent=39 // pred_fallthru
        _
      // Predicated region
      $region45: #{discriminator_forward.8} parent=39 // pred_check
        %p609 = pneg %p112
      $region46: #{discriminator_forward.8} parent=39 // pred_check_branch
        %611 = sbr.rel (%p609) target = $region48
      $region47: #{discriminator_forward.8} parent=39 // pred_region
        %p612 = scmp.lt.s32.totalorder %s16, 1
        %s613 = scalar_select %p612, %s16, 1
        %s614 = smul.addr %s613, 8
        %s615 = scalar_lea.vmem %s3, %s614
      $region48: #{discriminator_forward.8} parent=39 // pred_fallthru
        _
    $region40: #{discriminator_forward.8} parent=5 // pred_fallthru
      _
  $region6: #{discriminator_forward.8} parent=0 // loop_footer
    %s14 = sadd.s32 1, %s10
  $region7: #{discriminator_forward.8} parent=0 // loop_footer_branch
    %9 = sbr.rel target = $region3
  $region8: #{discriminator_forward.8} parent=0 // loop_exit
    _

// kernel: discriminator_forward.9
$region0: #{discriminator_forward.9}
  #allocation0 [shape = 'u32[]', space=smem, size = 0x4, offset = 0x4, fixed_abs, tag = 'smem constant byte address 0x4 - core index']
  #allocation1 [shape = 'u32[144,128]{1,0:T(1,128)}', space=vmem, size = 0x12000, scoped, tag = 'internal scratch']
  %s0 = inlined_call_operand.vmem [shape: bf16[8,1024], index: 0, kind: input, shape index: {}]
  %s1 = inlined_call_operand.vmem [shape: bf16[1024,128], index: 1, kind: input, shape index: {}]
  %s2 = inlined_call_operand.vmem [shape: f32[1,128], index: 2, kind: input, shape index: {}]
  %s3 = inlined_call_operand.vmem [shape: f32[8,128], index: 3, kind: output, shape index: {}]
  %s4 = sld [smem:[#allocation0]]
  $region22: #{discriminator_forward.9} parent=0
    _
  %s6 = ssub.s32 1, %s4
  %s7 = scalar_select 0, %s6, %s4
  // Predicated region
  $region2: #{discriminator_forward.9} parent=0 // pred_check
    _
  $region3: #{discriminator_forward.9} parent=0 // pred_check_branch
    %9 = sbr.rel (0) target = $region5
  $region4: #{discriminator_forward.9} parent=0 // pred_region
    _
  $region5: #{discriminator_forward.9} parent=0 // pred_fallthru
    _
  // Predicated region
  $region6: #{discriminator_forward.9} parent=0 // pred_check
    _
  $region7: #{discriminator_forward.9} parent=0 // pred_check_branch
    %11 = sbr.rel (0) target = $region9
  $region8: #{discriminator_forward.9} parent=0 // pred_region
    _
  $region9: #{discriminator_forward.9} parent=0 // pred_fallthru
    _
  // Predicated region
  $region10: #{discriminator_forward.9} parent=0 // pred_check
    _
  $region11: #{discriminator_forward.9} parent=0 // pred_check_branch
    %13 = sbr.rel (0) target = $region13
  $region12: #{discriminator_forward.9} parent=0 // pred_region
    _
  $region13: #{discriminator_forward.9} parent=0 // pred_fallthru
    _
  %v15 = vld [vmem:[%s0] sm:$0xff]
  %v16 = vld [vmem:[%s0 + $0x8] sm:$0xff]
  %v17 = vld [vmem:[%s0 + $0x10] sm:$0xff]
  %v18 = vld [vmem:[%s0 + $0x18] sm:$0xff]
  %v19 = vld [vmem:[%s1] sm:$0xf]
  %v20 = vld [vmem:[%s1 + $0x4] sm:$0xf]
  %v21 = vld [vmem:[%s1 + $0x8] sm:$0xf]
  %v22 = vld [vmem:[%s1 + $0xc] sm:$0xf]
  %v23 = vld [vmem:[%s1 + $0x10] sm:$0xf]
  %v24 = vld [vmem:[%s1 + $0x14] sm:$0xf]
  %v25 = vld [vmem:[%s1 + $0x18] sm:$0xf]
  %v26 = vld [vmem:[%s1 + $0x1c] sm:$0xf]
  %v27 = vld [vmem:[%s1 + $0x20] sm:$0xf]
  %v28 = vld [vmem:[%s1 + $0x24] sm:$0xf]
  %v29 = vld [vmem:[%s1 + $0x28] sm:$0xf]
  %v30 = vld [vmem:[%s1 + $0x2c] sm:$0xf]
  %v31 = vld [vmem:[%s1 + $0x30] sm:$0xf]
  %v32 = vld [vmem:[%s1 + $0x34] sm:$0xf]
  %v33 = vld [vmem:[%s1 + $0x38] sm:$0xf]
  %v34 = vld [vmem:[%s1 + $0x3c] sm:$0xf]
  %v35 = vld [vmem:[%s1 + $0x40] sm:$0xf]
  %v36 = vld [vmem:[%s1 + $0x44] sm:$0xf]
  %v37 = vld [vmem:[%s1 + $0x48] sm:$0xf]
  %v38 = vld [vmem:[%s1 + $0x4c] sm:$0xf]
  %v39 = vld [vmem:[%s1 + $0x50] sm:$0xf]
  %v40 = vld [vmem:[%s1 + $0x54] sm:$0xf]
  %v41 = vld [vmem:[%s1 + $0x58] sm:$0xf]
  %v42 = vld [vmem:[%s1 + $0x5c] sm:$0xf]
  %v43 = vld [vmem:[%s1 + $0x60] sm:$0xf]
  %v44 = vld [vmem:[%s1 + $0x64] sm:$0xf]
  %v45 = vld [vmem:[%s1 + $0x68] sm:$0xf]
  %v46 = vld [vmem:[%s1 + $0x6c] sm:$0xf]
  %v47 = vld [vmem:[%s1 + $0x70] sm:$0xf]
  %v48 = vld [vmem:[%s1 + $0x74] sm:$0xf]
  %v49 = vld [vmem:[%s1 + $0x78] sm:$0xf]
  %v50 = vld [vmem:[%s1 + $0x7c] sm:$0xf]
  %v51 = vld [vmem:[%s1 + $0x80] sm:$0xf]
  %v52 = vld [vmem:[%s1 + $0x84] sm:$0xf]
  %v53 = vld [vmem:[%s1 + $0x88] sm:$0xf]
  %v54 = vld [vmem:[%s1 + $0x8c] sm:$0xf]
  %v55 = vld [vmem:[%s1 + $0x90] sm:$0xf]
  %v56 = vld [vmem:[%s1 + $0x94] sm:$0xf]
  %v57 = vld [vmem:[%s1 + $0x98] sm:$0xf]
  %v58 = vld [vmem:[%s1 + $0x9c] sm:$0xf]
  %v59 = vld [vmem:[%s1 + $0xa0] sm:$0xf]
  %v60 = vld [vmem:[%s1 + $0xa4] sm:$0xf]
  %v61 = vld [vmem:[%s1 + $0xa8] sm:$0xf]
  %v62 = vld [vmem:[%s1 + $0xac] sm:$0xf]
  %v63 = vld [vmem:[%s1 + $0xb0] sm:$0xf]
  %v64 = vld [vmem:[%s1 + $0xb4] sm:$0xf]
  %v65 = vld [vmem:[%s1 + $0xb8] sm:$0xf]
  %v66 = vld [vmem:[%s1 + $0xbc] sm:$0xf]
  %v67 = vld [vmem:[%s1 + $0xc0] sm:$0xf]
  %v68 = vld [vmem:[%s1 + $0xc4] sm:$0xf]
  %v69 = vld [vmem:[%s1 + $0xc8] sm:$0xf]
  %v70 = vld [vmem:[%s1 + $0xcc] sm:$0xf]
  %v71 = vld [vmem:[%s1 + $0xd0] sm:$0xf]
  %v72 = vld [vmem:[%s1 + $0xd4] sm:$0xf]
  %v73 = vld [vmem:[%s1 + $0xd8] sm:$0xf]
  %v74 = vld [vmem:[%s1 + $0xdc] sm:$0xf]
  %v75 = vld [vmem:[%s1 + $0xe0] sm:$0xf]
  %v76 = vld [vmem:[%s1 + $0xe4] sm:$0xf]
  %v77 = vld [vmem:[%s1 + $0xe8] sm:$0xf]
  %v78 = vld [vmem:[%s1 + $0xec] sm:$0xf]
  %v79 = vld [vmem:[%s1 + $0xf0] sm:$0xf]
  %v80 = vld [vmem:[%s1 + $0xf4] sm:$0xf]
  %v81 = vld [vmem:[%s1 + $0xf8] sm:$0xf]
  %v82 = vld [vmem:[%s1 + $0xfc] sm:$0xf]
  %v83 = vld [vmem:[%s1 + $0x100] sm:$0xf]
  %v84 = vld [vmem:[%s1 + $0x104] sm:$0xf]
  %v85 = vld [vmem:[%s1 + $0x108] sm:$0xf]
  %v86 = vld [vmem:[%s1 + $0x10c] sm:$0xf]
  %v87 = vld [vmem:[%s1 + $0x110] sm:$0xf]
  %v88 = vld [vmem:[%s1 + $0x114] sm:$0xf]
  %v89 = vld [vmem:[%s1 + $0x118] sm:$0xf]
  %v90 = vld [vmem:[%s1 + $0x11c] sm:$0xf]
  %v91 = vld [vmem:[%s1 + $0x120] sm:$0xf]
  %v92 = vld [vmem:[%s1 + $0x124] sm:$0xf]
  %v93 = vld [vmem:[%s1 + $0x128] sm:$0xf]
  %v94 = vld [vmem:[%s1 + $0x12c] sm:$0xf]
  %v95 = vld [vmem:[%s1 + $0x130] sm:$0xf]
  %v96 = vld [vmem:[%s1 + $0x134] sm:$0xf]
  %v97 = vld [vmem:[%s1 + $0x138] sm:$0xf]
  %v98 = vld [vmem:[%s1 + $0x13c] sm:$0xf]
  %v99 = vld [vmem:[%s1 + $0x140] sm:$0xf]
  %v100 = vld [vmem:[%s1 + $0x144] sm:$0xf]
  %v101 = vld [vmem:[%s1 + $0x148] sm:$0xf]
  %v102 = vld [vmem:[%s1 + $0x14c] sm:$0xf]
  %v103 = vld [vmem:[%s1 + $0x150] sm:$0xf]
  %v104 = vld [vmem:[%s1 + $0x154] sm:$0xf]
  %v105 = vld [vmem:[%s1 + $0x158] sm:$0xf]
  %v106 = vld [vmem:[%s1 + $0x15c] sm:$0xf]
  %v107 = vld [vmem:[%s1 + $0x160] sm:$0xf]
  %v108 = vld [vmem:[%s1 + $0x164] sm:$0xf]
  %v109 = vld [vmem:[%s1 + $0x168] sm:$0xf]
  %v110 = vld [vmem:[%s1 + $0x16c] sm:$0xf]
  %v111 = vld [vmem:[%s1 + $0x170] sm:$0xf]
  %v112 = vld [vmem:[%s1 + $0x174] sm:$0xf]
  %v113 = vld [vmem:[%s1 + $0x178] sm:$0xf]
  %v114 = vld [vmem:[%s1 + $0x17c] sm:$0xf]
  %v115 = vld [vmem:[%s1 + $0x180] sm:$0xf]
  %v116 = vld [vmem:[%s1 + $0x184] sm:$0xf]
  %v117 = vld [vmem:[%s1 + $0x188] sm:$0xf]
  %v118 = vld [vmem:[%s1 + $0x18c] sm:$0xf]
  %v119 = vld [vmem:[%s1 + $0x190] sm:$0xf]
  %v120 = vld [vmem:[%s1 + $0x194] sm:$0xf]
  %v121 = vld [vmem:[%s1 + $0x198] sm:$0xf]
  %v122 = vld [vmem:[%s1 + $0x19c] sm:$0xf]
  %v123 = vld [vmem:[%s1 + $0x1a0] sm:$0xf]
  %v124 = vld [vmem:[%s1 + $0x1a4] sm:$0xf]
  %v125 = vld [vmem:[%s1 + $0x1a8] sm:$0xf]
  %v126 = vld [vmem:[%s1 + $0x1ac] sm:$0xf]
  %v127 = vld [vmem:[%s1 + $0x1b0] sm:$0xf]
  %v128 = vld [vmem:[%s1 + $0x1b4] sm:$0xf]
  %v129 = vld [vmem:[%s1 + $0x1b8] sm:$0xf]
  %v130 = vld [vmem:[%s1 + $0x1bc] sm:$0xf]
  %v131 = vld [vmem:[%s1 + $0x1c0] sm:$0xf]
  %v132 = vld [vmem:[%s1 + $0x1c4] sm:$0xf]
  %v133 = vld [vmem:[%s1 + $0x1c8] sm:$0xf]
  %v134 = vld [vmem:[%s1 + $0x1cc] sm:$0xf]
  %v135 = vld [vmem:[%s1 + $0x1d0] sm:$0xf]
  %v136 = vld [vmem:[%s1 + $0x1d4] sm:$0xf]
  %v137 = vld [vmem:[%s1 + $0x1d8] sm:$0xf]
  %v138 = vld [vmem:[%s1 + $0x1dc] sm:$0xf]
  %v139 = vld [vmem:[%s1 + $0x1e0] sm:$0xf]
  %v140 = vld [vmem:[%s1 + $0x1e4] sm:$0xf]
  %v141 = vld [vmem:[%s1 + $0x1e8] sm:$0xf]
  %v142 = vld [vmem:[%s1 + $0x1ec] sm:$0xf]
  %v143 = vld [vmem:[%s1 + $0x1f0] sm:$0xf]
  %v144 = vld [vmem:[%s1 + $0x1f4] sm:$0xf]
  %v145 = vld [vmem:[%s1 + $0x1f8] sm:$0xf]
  %v146 = vld [vmem:[%s1 + $0x1fc] sm:$0xf]
  %v147 = vld [vmem:[%s2] sm:$0x1]
  %v149 = vlaneseq
  %v150 = vshrl.u32 %v149, 7
  %v151 = vsub.s32 0, %v150
  %v152 = vrot.slane %v147, %v151
  %v158 = vunpack.c.l.b16 %v15
  %v159 = vunpack.c.h.b16 %v15
  %v160 = vunpack.c.l.b16 %v16
  %v161 = vunpack.c.h.b16 %v16
  %v162 = vunpack.c.l.b16 %v17
  %v163 = vunpack.c.h.b16 %v17
  %v164 = vunpack.c.l.b16 %v18
  %v165 = vunpack.c.h.b16 %v18
  %v166 = vpack.c.b16 %v158, %v158
  %v167 = vpack.c.b16 %v159, %v159
  %v168 = vpack.c.b16 %v160, %v160
  %v169 = vpack.c.b16 %v161, %v161
  %v170 = vpack.c.b16 %v162, %v162
  %v171 = vpack.c.b16 %v163, %v163
  %v172 = vpack.c.b16 %v164, %v164
  %v173 = vpack.c.b16 %v165, %v165
  %v310 = vunpack.c.l.b16 %v19
  %v311 = vunpack.c.l.b16 %v20
  %v312 = vunpack.c.l.b16 %v21
  %v313 = vunpack.c.l.b16 %v22
  %v314 = vunpack.c.l.b16 %v23
  %v315 = vunpack.c.l.b16 %v24
  %v316 = vunpack.c.l.b16 %v25
  %v317 = vunpack.c.l.b16 %v26
  %v318 = vunpack.c.l.b16 %v27
  %v319 = vunpack.c.l.b16 %v28
  %v320 = vunpack.c.l.b16 %v29
  %v321 = vunpack.c.l.b16 %v30
  %v322 = vunpack.c.l.b16 %v31
  %v323 = vunpack.c.l.b16 %v32
  %v324 = vunpack.c.l.b16 %v33
  %v325 = vunpack.c.l.b16 %v34
  %v326 = vunpack.c.l.b16 %v35
  %v327 = vunpack.c.l.b16 %v36
  %v328 = vunpack.c.l.b16 %v37
  %v329 = vunpack.c.l.b16 %v38
  %v330 = vunpack.c.l.b16 %v39
  %v331 = vunpack.c.l.b16 %v40
  %v332 = vunpack.c.l.b16 %v41
  %v333 = vunpack.c.l.b16 %v42
  %v334 = vunpack.c.l.b16 %v43
  %v335 = vunpack.c.l.b16 %v44
  %v336 = vunpack.c.l.b16 %v45
  %v337 = vunpack.c.l.b16 %v46
  %v338 = vunpack.c.l.b16 %v47
  %v339 = vunpack.c.l.b16 %v48
  %v340 = vunpack.c.l.b16 %v49
  %v341 = vunpack.c.l.b16 %v50
  %v342 = vunpack.c.l.b16 %v51
  %v343 = vunpack.c.l.b16 %v52
  %v344 = vunpack.c.l.b16 %v53
  %v345 = vunpack.c.l.b16 %v54
  %v346 = vunpack.c.l.b16 %v55
  %v347 = vunpack.c.l.b16 %v56
  %v348 = vunpack.c.l.b16 %v57
  %v349 = vunpack.c.l.b16 %v58
  %v350 = vunpack.c.l.b16 %v59
  %v351 = vunpack.c.l.b16 %v60
  %v352 = vunpack.c.l.b16 %v61
  %v353 = vunpack.c.l.b16 %v62
  %v354 = vunpack.c.l.b16 %v63
  %v355 = vunpack.c.l.b16 %v64
  %v356 = vunpack.c.l.b16 %v65
  %v357 = vunpack.c.l.b16 %v66
  %v358 = vunpack.c.l.b16 %v67
  %v359 = vunpack.c.l.b16 %v68
  %v360 = vunpack.c.l.b16 %v69
  %v361 = vunpack.c.l.b16 %v70
  %v362 = vunpack.c.l.b16 %v71
  %v363 = vunpack.c.l.b16 %v72
  %v364 = vunpack.c.l.b16 %v73
  %v365 = vunpack.c.l.b16 %v74
  %v366 = vunpack.c.l.b16 %v75
  %v367 = vunpack.c.l.b16 %v76
  %v368 = vunpack.c.l.b16 %v77
  %v369 = vunpack.c.l.b16 %v78
  %v370 = vunpack.c.l.b16 %v79
  %v371 = vunpack.c.l.b16 %v80
  %v372 = vunpack.c.l.b16 %v81
  %v373 = vunpack.c.l.b16 %v82
  %v374 = vunpack.c.l.b16 %v83
  %v375 = vunpack.c.l.b16 %v84
  %v376 = vunpack.c.l.b16 %v85
  %v377 = vunpack.c.l.b16 %v86
  %v378 = vunpack.c.l.b16 %v87
  %v379 = vunpack.c.l.b16 %v88
  %v380 = vunpack.c.l.b16 %v89
  %v381 = vunpack.c.l.b16 %v90
  %v382 = vunpack.c.l.b16 %v91
  %v383 = vunpack.c.l.b16 %v92
  %v384 = vunpack.c.l.b16 %v93
  %v385 = vunpack.c.l.b16 %v94
  %v386 = vunpack.c.l.b16 %v95
  %v387 = vunpack.c.l.b16 %v96
  %v388 = vunpack.c.l.b16 %v97
  %v389 = vunpack.c.l.b16 %v98
  %v390 = vunpack.c.l.b16 %v99
  %v391 = vunpack.c.l.b16 %v100
  %v392 = vunpack.c.l.b16 %v101
  %v393 = vunpack.c.l.b16 %v102
  %v394 = vunpack.c.l.b16 %v103
  %v395 = vunpack.c.l.b16 %v104
  %v396 = vunpack.c.l.b16 %v105
  %v397 = vunpack.c.l.b16 %v106
  %v398 = vunpack.c.l.b16 %v107
  %v399 = vunpack.c.l.b16 %v108
  %v400 = vunpack.c.l.b16 %v109
  %v401 = vunpack.c.l.b16 %v110
  %v402 = vunpack.c.l.b16 %v111
  %v403 = vunpack.c.l.b16 %v112
  %v404 = vunpack.c.l.b16 %v113
  %v405 = vunpack.c.l.b16 %v114
  %v406 = vunpack.c.l.b16 %v115
  %v407 = vunpack.c.l.b16 %v116
  %v408 = vunpack.c.l.b16 %v117
  %v409 = vunpack.c.l.b16 %v118
  %v410 = vunpack.c.l.b16 %v119
  %v411 = vunpack.c.l.b16 %v120
  %v412 = vunpack.c.l.b16 %v121
  %v413 = vunpack.c.l.b16 %v122
  %v414 = vunpack.c.l.b16 %v123
  %v415 = vunpack.c.l.b16 %v124
  %v416 = vunpack.c.l.b16 %v125
  %v417 = vunpack.c.l.b16 %v126
  %v418 = vunpack.c.l.b16 %v127
  %v419 = vunpack.c.l.b16 %v128
  %v420 = vunpack.c.l.b16 %v129
  %v421 = vunpack.c.l.b16 %v130
  %v422 = vunpack.c.l.b16 %v131
  %v423 = vunpack.c.l.b16 %v132
  %v424 = vunpack.c.l.b16 %v133
  %v425 = vunpack.c.l.b16 %v134
  %v426 = vunpack.c.l.b16 %v135
  %v427 = vunpack.c.l.b16 %v136
  %v428 = vunpack.c.l.b16 %v137
  %v429 = vunpack.c.l.b16 %v138
  %v430 = vunpack.c.l.b16 %v139
  %v431 = vunpack.c.l.b16 %v140
  %v432 = vunpack.c.l.b16 %v141
  %v433 = vunpack.c.l.b16 %v142
  %v434 = vunpack.c.l.b16 %v143
  %v435 = vunpack.c.l.b16 %v144
  %v436 = vunpack.c.l.b16 %v145
  %v437 = vunpack.c.l.b16 %v146
  %v438 = vpack.c.b16 %v311, %v310
  %v439 = vpack.c.b16 %v313, %v312
  %v440 = vpack.c.b16 %v315, %v314
  %v441 = vpack.c.b16 %v317, %v316
  %v442 = vpack.c.b16 %v319, %v318
  %v443 = vpack.c.b16 %v321, %v320
  %v444 = vpack.c.b16 %v323, %v322
  %v445 = vpack.c.b16 %v325, %v324
  %v446 = vpack.c.b16 %v327, %v326
  %v447 = vpack.c.b16 %v329, %v328
  %v448 = vpack.c.b16 %v331, %v330
  %v449 = vpack.c.b16 %v333, %v332
  %v450 = vpack.c.b16 %v335, %v334
  %v451 = vpack.c.b16 %v337, %v336
  %v452 = vpack.c.b16 %v339, %v338
  %v453 = vpack.c.b16 %v341, %v340
  %v454 = vpack.c.b16 %v343, %v342
  %v455 = vpack.c.b16 %v345, %v344
  %v456 = vpack.c.b16 %v347, %v346
  %v457 = vpack.c.b16 %v349, %v348
  %v458 = vpack.c.b16 %v351, %v350
  %v459 = vpack.c.b16 %v353, %v352
  %v460 = vpack.c.b16 %v355, %v354
  %v461 = vpack.c.b16 %v357, %v356
  %v462 = vpack.c.b16 %v359, %v358
  %v463 = vpack.c.b16 %v361, %v360
  %v464 = vpack.c.b16 %v363, %v362
  %v465 = vpack.c.b16 %v365, %v364
  %v466 = vpack.c.b16 %v367, %v366
  %v467 = vpack.c.b16 %v369, %v368
  %v468 = vpack.c.b16 %v371, %v370
  %v469 = vpack.c.b16 %v373, %v372
  %v470 = vpack.c.b16 %v375, %v374
  %v471 = vpack.c.b16 %v377, %v376
  %v472 = vpack.c.b16 %v379, %v378
  %v473 = vpack.c.b16 %v381, %v380
  %v474 = vpack.c.b16 %v383, %v382
  %v475 = vpack.c.b16 %v385, %v384
  %v476 = vpack.c.b16 %v387, %v386
  %v477 = vpack.c.b16 %v389, %v388
  %v478 = vpack.c.b16 %v391, %v390
  %v479 = vpack.c.b16 %v393, %v392
  %v480 = vpack.c.b16 %v395, %v394
  %v481 = vpack.c.b16 %v397, %v396
  %v482 = vpack.c.b16 %v399, %v398
  %v483 = vpack.c.b16 %v401, %v400
  %v484 = vpack.c.b16 %v403, %v402
  %v485 = vpack.c.b16 %v405, %v404
  %v486 = vpack.c.b16 %v407, %v406
  %v487 = vpack.c.b16 %v409, %v408
  %v488 = vpack.c.b16 %v411, %v410
  %v489 = vpack.c.b16 %v413, %v412
  %v490 = vpack.c.b16 %v415, %v414
  %v491 = vpack.c.b16 %v417, %v416
  %v492 = vpack.c.b16 %v419, %v418
  %v493 = vpack.c.b16 %v421, %v420
  %v494 = vpack.c.b16 %v423, %v422
  %v495 = vpack.c.b16 %v425, %v424
  %v496 = vpack.c.b16 %v427, %v426
  %v497 = vpack.c.b16 %v429, %v428
  %v498 = vpack.c.b16 %v431, %v430
  %v499 = vpack.c.b16 %v433, %v432
  %v500 = vpack.c.b16 %v435, %v434
  %v501 = vpack.c.b16 %v437, %v436
  %566 = vmatprep.subr.bf16.mxu0 0
  %567 = vmatpush1.bf16.msra.mxu0 %v438
  %568 = vmatprep.subr.bf16.mxu0 0
  %569 = vmatpush1.bf16.msra.mxu0 %v439
  %570 = vmatprep.subr.bf16.mxu0 0
  %571 = vmatpush1.bf16.msra.mxu0 %v440
  %572 = vmatprep.subr.bf16.mxu0 0
  %573 = vmatpush1.bf16.msra.mxu0 %v441
  %574 = vmatprep.subr.bf16.mxu0 0
  %575 = vmatpush1.bf16.msra.mxu0 %v442
  %576 = vmatprep.subr.bf16.mxu0 0
  %577 = vmatpush1.bf16.msra.mxu0 %v443
  %578 = vmatprep.subr.bf16.mxu0 0
  %579 = vmatpush1.bf16.msra.mxu0 %v444
  %580 = vmatprep.subr.bf16.mxu0 0
  %581 = vmatpush1.bf16.msra.mxu0 %v445
  %582 = vmatprep.subr.bf16.mxu0 0
  %583 = vmatpush1.bf16.msra.mxu0 %v446
  %584 = vmatprep.subr.bf16.mxu0 0
  %585 = vmatpush1.bf16.msra.mxu0 %v447
  %586 = vmatprep.subr.bf16.mxu0 0
  %587 = vmatpush1.bf16.msra.mxu0 %v448
  %588 = vmatprep.subr.bf16.mxu0 0
  %589 = vmatpush1.bf16.msra.mxu0 %v449
  %590 = vmatprep.subr.bf16.mxu0 0
  %591 = vmatpush1.bf16.msra.mxu0 %v450
  %592 = vmatprep.subr.bf16.mxu0 0
  %593 = vmatpush1.bf16.msra.mxu0 %v451
  %594 = vmatprep.subr.bf16.mxu0 0
  %595 = vmatpush1.bf16.msra.mxu0 %v452
  %596 = vmatprep.subr.bf16.mxu0 0
  %597 = vmatpush1.bf16.msra.mxu0 %v453
  %598 = vmatprep.mubr.bf16.mxu0 %v167
  %599 = vmatmul.mubr.bf16.gmra.mrb[0].mxu0 %v166
  %v600 = vpop.f32.mrb[0].mxu0
  %v601 = vadd.f32 %v152, %v600
  %v602 = vpop.f32.mrb[0].mxu0
  %v603 = vpop.f32.mrb[0].mxu0
  %v604 = vpop.f32.mrb[0].mxu0
  %605 = vdwg.mxu0
  %606 = vmatprep.subr.bf16.mxu0 0
  %607 = vmatpush1.bf16.msra.mxu0 %v454
  %608 = vmatprep.subr.bf16.mxu0 0
  %609 = vmatpush1.bf16.msra.mxu0 %v455
  %610 = vmatprep.subr.bf16.mxu0 0
  %611 = vmatpush1.bf16.msra.mxu0 %v456
  %612 = vmatprep.subr.bf16.mxu0 0
  %613 = vmatpush1.bf16.msra.mxu0 %v457
  %614 = vmatprep.subr.bf16.mxu0 0
  %615 = vmatpush1.bf16.msra.mxu0 %v458
  %616 = vmatprep.subr.bf16.mxu0 0
  %617 = vmatpush1.bf16.msra.mxu0 %v459
  %618 = vmatprep.subr.bf16.mxu0 0
  %619 = vmatpush1.bf16.msra.mxu0 %v460
  %620 = vmatprep.subr.bf16.mxu0 0
  %621 = vmatpush1.bf16.msra.mxu0 %v461
  %622 = vmatprep.subr.bf16.mxu0 0
  %623 = vmatpush1.bf16.msra.mxu0 %v462
  %624 = vmatprep.subr.bf16.mxu0 0
  %625 = vmatpush1.bf16.msra.mxu0 %v463
  %626 = vmatprep.subr.bf16.mxu0 0
  %627 = vmatpush1.bf16.msra.mxu0 %v464
  %628 = vmatprep.subr.bf16.mxu0 0
  %629 = vmatpush1.bf16.msra.mxu0 %v465
  %630 = vmatprep.subr.bf16.mxu0 0
  %631 = vmatpush1.bf16.msra.mxu0 %v466
  %632 = vmatprep.subr.bf16.mxu0 0
  %633 = vmatpush1.bf16.msra.mxu0 %v467
  %634 = vmatprep.subr.bf16.mxu0 0
  %635 = vmatpush1.bf16.msra.mxu0 %v468
  %636 = vmatprep.subr.bf16.mxu0 0
  %637 = vmatpush1.bf16.msra.mxu0 %v469
  %638 = vmatprep.mubr.bf16.mxu0 %v169
  %639 = vmatmul.mubr.bf16.gmra.mrb[0].mxu0 %v168
  %v640 = vpop.f32.mrb[0].mxu0
  %v641 = vadd.f32 %v601, %v640
  %v642 = vpop.f32.mrb[0].mxu0
  %v643 = vpop.f32.mrb[0].mxu0
  %v644 = vpop.f32.mrb[0].mxu0
  %645 = vdwg.mxu0
  %646 = vmatprep.subr.bf16.mxu0 0
  %647 = vmatpush1.bf16.msra.mxu0 %v470
  %648 = vmatprep.subr.bf16.mxu0 0
  %649 = vmatpush1.bf16.msra.mxu0 %v471
  %650 = vmatprep.subr.bf16.mxu0 0
  %651 = vmatpush1.bf16.msra.mxu0 %v472
  %652 = vmatprep.subr.bf16.mxu0 0
  %653 = vmatpush1.bf16.msra.mxu0 %v473
  %654 = vmatprep.subr.bf16.mxu0 0
  %655 = vmatpush1.bf16.msra.mxu0 %v474
  %656 = vmatprep.subr.bf16.mxu0 0
  %657 = vmatpush1.bf16.msra.mxu0 %v475
  %658 = vmatprep.subr.bf16.mxu0 0
  %659 = vmatpush1.bf16.msra.mxu0 %v476
  %660 = vmatprep.subr.bf16.mxu0 0
  %661 = vmatpush1.bf16.msra.mxu0 %v477
  %662 = vmatprep.subr.bf16.mxu0 0
  %663 = vmatpush1.bf16.msra.mxu0 %v478
  %664 = vmatprep.subr.bf16.mxu0 0
  %665 = vmatpush1.bf16.msra.mxu0 %v479
  %666 = vmatprep.subr.bf16.mxu0 0
  %667 = vmatpush1.bf16.msra.mxu0 %v480
  %668 = vmatprep.subr.bf16.mxu0 0
  %669 = vmatpush1.bf16.msra.mxu0 %v481
  %670 = vmatprep.subr.bf16.mxu0 0
  %671 = vmatpush1.bf16.msra.mxu0 %v482
  %672 = vmatprep.subr.bf16.mxu0 0
  %673 = vmatpush1.bf16.msra.mxu0 %v483
  %674 = vmatprep.subr.bf16.mxu0 0
  %675 = vmatpush1.bf16.msra.mxu0 %v484
  %676 = vmatprep.subr.bf16.mxu0 0
  %677 = vmatpush1.bf16.msra.mxu0 %v485
  %678 = vmatprep.mubr.bf16.mxu0 %v171
  %679 = vmatmul.mubr.bf16.gmra.mrb[0].mxu0 %v170
  %v680 = vpop.f32.mrb[0].mxu0
  %v681 = vadd.f32 %v641, %v680
  %v682 = vpop.f32.mrb[0].mxu0
  %v683 = vpop.f32.mrb[0].mxu0
  %v684 = vpop.f32.mrb[0].mxu0
  %685 = vdwg.mxu0
  %686 = vmatprep.subr.bf16.mxu0 0
  %687 = vmatpush1.bf16.msra.mxu0 %v486
  %688 = vmatprep.subr.bf16.mxu0 0
  %689 = vmatpush1.bf16.msra.mxu0 %v487
  %690 = vmatprep.subr.bf16.mxu0 0
  %691 = vmatpush1.bf16.msra.mxu0 %v488
  %692 = vmatprep.subr.bf16.mxu0 0
  %693 = vmatpush1.bf16.msra.mxu0 %v489
  %694 = vmatprep.subr.bf16.mxu0 0
  %695 = vmatpush1.bf16.msra.mxu0 %v490
  %696 = vmatprep.subr.bf16.mxu0 0
  %697 = vmatpush1.bf16.msra.mxu0 %v491
  %698 = vmatprep.subr.bf16.mxu0 0
  %699 = vmatpush1.bf16.msra.mxu0 %v492
  %700 = vmatprep.subr.bf16.mxu0 0
  %701 = vmatpush1.bf16.msra.mxu0 %v493
  %702 = vmatprep.subr.bf16.mxu0 0
  %703 = vmatpush1.bf16.msra.mxu0 %v494
  %704 = vmatprep.subr.bf16.mxu0 0
  %705 = vmatpush1.bf16.msra.mxu0 %v495
  %706 = vmatprep.subr.bf16.mxu0 0
  %707 = vmatpush1.bf16.msra.mxu0 %v496
  %708 = vmatprep.subr.bf16.mxu0 0
  %709 = vmatpush1.bf16.msra.mxu0 %v497
  %710 = vmatprep.subr.bf16.mxu0 0
  %711 = vmatpush1.bf16.msra.mxu0 %v498
  %712 = vmatprep.subr.bf16.mxu0 0
  %713 = vmatpush1.bf16.msra.mxu0 %v499
  %714 = vmatprep.subr.bf16.mxu0 0
  %715 = vmatpush1.bf16.msra.mxu0 %v500
  %716 = vmatprep.subr.bf16.mxu0 0
  %717 = vmatpush1.bf16.msra.mxu0 %v501
  %718 = vmatprep.mubr.bf16.mxu0 %v173
  %719 = vmatmul.mubr.bf16.gmra.mrb[0].mxu0 %v172
  %v720 = vpop.f32.mrb[0].mxu0
  %v721 = vadd.f32 %v681, %v720
  %v722 = vpop.f32.mrb[0].mxu0
  %v723 = vpop.f32.mrb[0].mxu0
  %v724 = vpop.f32.mrb[0].mxu0
  %725 = vdwg.mxu0
  %v726 = vsub.f32 0.0, %v721
  %v727 = vmul.f32 %v726, 1.442695
  %v728 = vpow.pop %v727
  %v729 = vadd.f32 %v728, 1.0
  %v730 = vrcp.pop %v729
  %v731 = vmul.f32 1.0, %v730
  %732 = vst [vmem:[%s3] sm:$0xff] %v731
  // Predicated region
  $region14: #{discriminator_forward.9} parent=0 // pred_check
    _
  $region15: #{discriminator_forward.9} parent=0 // pred_check_branch
    %734 = sbr.rel (0) target = $region17
  $region16: #{discriminator_forward.9} parent=0 // pred_region
    _
  $region17: #{discriminator_forward.9} parent=0 // pred_fallthru
    _
  // Predicated region
  $region18: #{discriminator_forward.9} parent=0 // pred_check
    _
  $region19: #{discriminator_forward.9} parent=0 // pred_check_branch
    %736 = sbr.rel (0) target = $region21
  $region20: #{discriminator_forward.9} parent=0 // pred_region
    _
  $region21: #{discriminator_forward.9} parent=0 // pred_fallthru
    _

</llo_original>
